<compile_context>
chip_gen: v6e
topology: v6e:2x2x1
jax: 0.10.0
libtpu: 0.0.40
codegen_flags: <defaults>
</compile_context>

<pallas_src>
import jax
import jax.numpy as jnp
from jax.experimental import pallas as pl
from jax.experimental.pallas import tpu as pltpu

NUM_INP = 8
HIDDEN = 64


def _make_kernel(t_seq, batch):
    H = HIDDEN

    def act(g):
        # PyTorch gate order: i, f, g(cand), o
        i = jax.nn.sigmoid(g[:, 0 * H:1 * H])
        f = jax.nn.sigmoid(g[:, 1 * H:2 * H])
        cand = jnp.tanh(g[:, 2 * H:3 * H])
        o = jax.nn.sigmoid(g[:, 3 * H:4 * H])
        return i, f, cand, o

    def kernel(gates_ref,                     # (t_seq*B, 4H) precomputed x@Wih0^T + b0, time-major
               whh0_ref,                      # (H, 4H)
               wih1_ref, whh1_ref, b1_ref,    # (H, 4H) (H, 4H) (1, 4H)
               mw1_ref, mb1_ref,              # (H, 64) (1, 64)
               mw2_ref, mb2_ref,              # (1, 64) (1, 1)
               out_ref,                       # (B, 1)
               h0_ref, c0_ref, h1_ref, c1_ref):   # carries (B, H), persist across grid steps
        s = pl.program_id(0)

        @pl.when(s == 0)
        def _init():
            h0_ref[...] = jnp.zeros_like(h0_ref)
            c0_ref[...] = jnp.zeros_like(c0_ref)
            h1_ref[...] = jnp.zeros_like(h1_ref)
            c1_ref[...] = jnp.zeros_like(c1_ref)

        # Only a tiny hoist (<=2 vregs at B<=8); weights are re-read from VMEM refs
        # inside the loop so no big values are pinned across the unrolled recurrence.
        b1 = jnp.broadcast_to(b1_ref[...], (batch, 4 * H))

        h0 = h0_ref[...]
        c0 = c0_ref[...]
        h1 = h1_ref[...]
        c1 = c1_ref[...]

        def step(row, h0, c0, h1, c1):
            # Per-timestep slice of the precomputed layer-0 input gates (VMEM load,
            # hides under MXU latency).
            g0_x = gates_ref[pl.ds(row, batch), :]

            # Layer-1's h1-recurrent matmul depends only on h1_{t-1}: issue it first
            # so it overlaps layer-0's recurrent matmul on the MXU.
            g1_rec = jnp.dot(h1, whh1_ref[...], preferred_element_type=jnp.float32)

            # Layer 0: only the K=64 recurrent matmul remains on the serial chain.
            g0 = g0_x + jnp.dot(h0, whh0_ref[...], preferred_element_type=jnp.float32)
            i0, f0, cand0, o0 = act(g0)
            c0 = f0 * c0 + i0 * cand0
            h0 = o0 * jnp.tanh(c0)

            # Layer 1: remaining input-half matmul once h0_t is ready (no concat).
            g1 = g1_rec + b1 + jnp.dot(h0, wih1_ref[...],
                                       preferred_element_type=jnp.float32)
            i1, f1, cand1, o1 = act(g1)
            c1 = f1 * c1 + i1 * cand1
            h1 = o1 * jnp.tanh(c1)
            return h0, c0, h1, c1

        if t_seq <= 32:
            # Small compile-time trip count: full static unroll, grid step bounds
            # the live ranges.
            for t in range(t_seq):
                h0, c0, h1, c1 = step(t * batch, h0, c0, h1, c1)
        else:
            def body(t, carry):
                h0, c0, h1, c1 = carry
                row = pl.multiple_of(t * batch, 8)   # batch is a multiple of 8
                return step(row, h0, c0, h1, c1)
            h0, c0, h1, c1 = jax.lax.fori_loop(
                0, t_seq, body, (h0, c0, h1, c1), unroll=8)

        h0_ref[...] = h0
        c0_ref[...] = c0
        h1_ref[...] = h1
        c1_ref[...] = c1

        @pl.when(s == pl.num_programs(0) - 1)
        def _finish():
            # MLP head: Linear(64,64) -> Dropout(identity, eval) -> ReLU -> Linear(64,1)
            hid = jnp.dot(h1, mw1_ref[...],
                          preferred_element_type=jnp.float32) + mb1_ref[...]
            hid = jnp.maximum(hid, 0.0)
            # Linear(64,1) as VPU multiply + lane reduce (avoid an N=1 MXU pass).
            out_ref[...] = (jnp.sum(hid * mw2_ref[...], axis=-1, keepdims=True)
                            + mb2_ref[...])

    return kernel


def _pick_tseq(seq, batch_padded):
    """Largest block length dividing `seq` whose double-buffered gates stream
    (2 * t_seq * Bp * 4H * 4 bytes) stays far below VMEM limits on every
    generation (incl. v7x's 64 MiB)."""
    H = HIDDEN
    budget = 8 * 1024 * 1024   # double-buffered block budget
    for cand in (128, 64, 32, 16, 8, 4, 2, 1):
        if seq % cand == 0 and 2 * cand * batch_padded * 4 * H * 4 <= budget:
            return cand
    return 1


def init_params(key):
    """Deterministic init matching PyTorch parameter shapes (LSTM 8->64, 2 layers; MLP)."""
    H = HIDDEN
    k_lstm = 1.0 / jnp.sqrt(H)
    keys = jax.random.split(key, 12)

    def u(k, shape, bound):
        return jax.random.uniform(k, shape, jnp.float32, -bound, bound)

    params = {
        # layer 0
        "w_ih_l0": u(keys[0], (4 * H, NUM_INP), k_lstm),
        "w_hh_l0": u(keys[1], (4 * H, H), k_lstm),
        "b_ih_l0": u(keys[2], (4 * H,), k_lstm),
        "b_hh_l0": u(keys[3], (4 * H,), k_lstm),
        # layer 1
        "w_ih_l1": u(keys[4], (4 * H, H), k_lstm),
        "w_hh_l1": u(keys[5], (4 * H, H), k_lstm),
        "b_ih_l1": u(keys[6], (4 * H,), k_lstm),
        "b_hh_l1": u(keys[7], (4 * H,), k_lstm),
        # MLP
        "mlp_w1": u(keys[8], (64, H), 1.0 / jnp.sqrt(H)),
        "mlp_b1": u(keys[9], (64,), 1.0 / jnp.sqrt(H)),
        "mlp_w2": u(keys[10], (1, 64), 1.0 / jnp.sqrt(64)),
        "mlp_b2": u(keys[11], (1,), 1.0 / jnp.sqrt(64)),
    }
    return params


def ts_rnn2_forward(x, params):
    """x: (batch, seq_len, NUM_INP) float32 -> (batch,) float32."""
    B, S, D = x.shape
    assert D == NUM_INP
    H = HIDDEN

    # Pad batch to a sublane multiple (8): aligned per-t slices / carries, and
    # throughput scales with batch for free (the serial chain is unchanged).
    Bp = ((B + 7) // 8) * 8

    # transpose(inp, 0, 1): batch-major -> time-major; pad batch; flatten so the
    # precomputed input-gates stream is 2-D with row t*Bp + b == x[t, b].
    xt = jnp.transpose(x, (1, 0, 2)).astype(jnp.float32)           # (S, B, D)
    if Bp != B:
        xt = jnp.pad(xt, ((0, 0), (0, Bp - B), (0, 0)))
    x2d = xt.reshape(S * Bp, D)

    # Hoisted layer-0 input projection (no serial dependence) as a plain XLA
    # matmul: the kernel streams a lane-dense (t_seq*Bp, 256) block instead of
    # a lane-sparse 8-wide input, and the K=8 matmul leaves the kernel entirely.
    wih0 = params["w_ih_l0"].T                                      # (D, 4H)
    b0 = (params["b_ih_l0"] + params["b_hh_l0"]).reshape(1, 4 * H)
    gates0 = x2d @ wih0 + b0                                        # (S*Bp, 4H)

    whh0 = params["w_hh_l0"].T                                      # (H, 4H)
    wih1 = params["w_ih_l1"].T                                      # (H, 4H)
    whh1 = params["w_hh_l1"].T                                      # (H, 4H)
    b1 = (params["b_ih_l1"] + params["b_hh_l1"]).reshape(1, 4 * H)
    mw1 = params["mlp_w1"].T                                        # (H, 64)
    mb1 = params["mlp_b1"].reshape(1, 64)
    mw2 = params["mlp_w2"].reshape(1, 64)                           # row vector (VPU head)
    mb2 = params["mlp_b2"].reshape(1, 1)

    t_seq = _pick_tseq(S, Bp)
    n_blocks = S // t_seq

    def full_spec(shape):
        n = len(shape)
        return pl.BlockSpec(shape, lambda s, _n=n: (0,) * _n)

    kernel = _make_kernel(t_seq, Bp)

    out = pl.pallas_call(
        kernel,
        out_shape=jax.ShapeDtypeStruct((Bp, 1), jnp.float32),
        grid=(n_blocks,),
        in_specs=[
            pl.BlockSpec((t_seq * Bp, 4 * H), lambda s: (s, 0)),  # gates0 stream, blocked over seq
            full_spec((H, 4 * H)),       # whh0
            full_spec((H, 4 * H)),       # wih1
            full_spec((H, 4 * H)),       # whh1
            full_spec((1, 4 * H)),       # b1
            full_spec((H, 64)),          # mw1
            full_spec((1, 64)),          # mb1
            full_spec((1, 64)),          # mw2 (row)
            full_spec((1, 1)),           # mb2
        ],
        out_specs=pl.BlockSpec((Bp, 1), lambda s: (0, 0)),
        scratch_shapes=[pltpu.VMEM((Bp, H), jnp.float32)] * 4,      # h0, c0, h1, c1
        compiler_params=pltpu.CompilerParams(
            dimension_semantics=("arbitrary",),                      # serial recurrence
            vmem_limit_bytes=32 * 1024 * 1024),
    )(gates0, whh0, wih1, whh1, b1, mw1, mb1, mw2, mb2)

    # out_rnn[:, -1, :].squeeze() keeps (B, H) for B>1; final out.squeeze() -> (B,)
    return out[:B, 0]


def _reference_forward(x, params):
    """Pure-JAX reference of the same math (for a sanity check)."""
    H = HIDDEN
    B, S, D = x.shape
    xt = jnp.transpose(x, (1, 0, 2)).astype(jnp.float32)

    def cell(x_t, h, c, wih, whh, b):
        gates = x_t @ wih.T + h @ whh.T + b
        i = jax.nn.sigmoid(gates[:, 0 * H:1 * H])
        f = jax.nn.sigmoid(gates[:, 1 * H:2 * H])
        g = jnp.tanh(gates[:, 2 * H:3 * H])
        o = jax.nn.sigmoid(gates[:, 3 * H:4 * H])
        c_new = f * c + i * g
        return o * jnp.tanh(c_new), c_new

    b0 = params["b_ih_l0"] + params["b_hh_l0"]
    b1 = params["b_ih_l1"] + params["b_hh_l1"]
    h0 = c0 = h1 = c1 = jnp.zeros((B, H), jnp.float32)
    for t in range(S):
        h0, c0 = cell(xt[t], h0, c0, params["w_ih_l0"], params["w_hh_l0"], b0)
        h1, c1 = cell(h0, h1, c1, params["w_ih_l1"], params["w_hh_l1"], b1)
    hid = jnp.maximum(h1 @ params["mlp_w1"].T + params["mlp_b1"], 0.0)
    return (hid @ params["mlp_w2"].T + params["mlp_b2"])[:, 0]


if __name__ == "__main__":
    key = jax.random.PRNGKey(0)
    k_x, k_p = jax.random.split(key)

    batch, seq_len = 2, 8
    x = jax.random.normal(k_x, (batch, seq_len, NUM_INP), jnp.float32)
    params = init_params(k_p)

    out = jax.block_until_ready(ts_rnn2_forward(x, params))
    ref = jax.block_until_ready(_reference_forward(x, params))

    assert out.shape == (batch,)
    assert jnp.allclose(out, ref, atol=1e-4, rtol=1e-4), (out, ref)
    print("KERNEL_OK")
</pallas_src>

<mosaic_0001>
module attributes {stable_mosaic.version = 11 : i64} {
  func.func @kernel(%arg0: i32, %arg1: memref<64x256xf32, #tpu.memory_space<vmem>>, %arg2: memref<64x256xf32, #tpu.memory_space<vmem>>, %arg3: memref<64x256xf32, #tpu.memory_space<vmem>>, %arg4: memref<64x256xf32, #tpu.memory_space<vmem>>, %arg5: memref<1x256xf32, #tpu.memory_space<vmem>>, %arg6: memref<64x64xf32, #tpu.memory_space<vmem>>, %arg7: memref<1x64xf32, #tpu.memory_space<vmem>>, %arg8: memref<1x64xf32, #tpu.memory_space<vmem>>, %arg9: memref<1x1xf32, #tpu.memory_space<vmem>>, %arg10: memref<8x1xf32, #tpu.memory_space<vmem>>, %arg11: memref<8x64xf32, #tpu.memory_space<vmem>>, %arg12: memref<8x64xf32, #tpu.memory_space<vmem>>, %arg13: memref<8x64xf32, #tpu.memory_space<vmem>>, %arg14: memref<8x64xf32, #tpu.memory_space<vmem>>) attributes {dimension_semantics = [#tpu.dimension_semantics<arbitrary>], iteration_bounds = array<i64: 1>, scalar_prefetch = 0 : i64, scratch_operands = 4 : i64, tpu.core_type = #tpu.core_type<tc>, window_params = [{transform_indices = @transform_0, window_bounds = array<i64: 64, 256>}, {pipeline_mode = #tpu.pipeline_mode<synchronous>, transform_indices = @transform_1, window_bounds = array<i64: 64, 256>}, {pipeline_mode = #tpu.pipeline_mode<synchronous>, transform_indices = @transform_2, window_bounds = array<i64: 64, 256>}, {pipeline_mode = #tpu.pipeline_mode<synchronous>, transform_indices = @transform_3, window_bounds = array<i64: 64, 256>}, {pipeline_mode = #tpu.pipeline_mode<synchronous>, transform_indices = @transform_4, window_bounds = array<i64: 1, 256>}, {pipeline_mode = #tpu.pipeline_mode<synchronous>, transform_indices = @transform_5, window_bounds = array<i64: 64, 64>}, {pipeline_mode = #tpu.pipeline_mode<synchronous>, transform_indices = @transform_6, window_bounds = array<i64: 1, 64>}, {pipeline_mode = #tpu.pipeline_mode<synchronous>, transform_indices = @transform_7, window_bounds = array<i64: 1, 64>}, {pipeline_mode = #tpu.pipeline_mode<synchronous>, transform_indices = @transform_8, window_bounds = array<i64: 1, 1>}, {pipeline_mode = #tpu.pipeline_mode<synchronous>, transform_indices = @transform_9, window_bounds = array<i64: 8, 1>}]} {
    %c0_i32 = arith.constant 0 : i32
    %0 = arith.cmpi eq, %arg0, %c0_i32 : i32
    %1 = arith.extui %0 : i1 to i32
    %c0_i32_0 = arith.constant 0 : i32
    %2 = arith.cmpi ne, %1, %c0_i32_0 : i32
    scf.if %2 {
      %cst_148 = arith.constant 0.000000e+00 : f32
      %497 = vector.broadcast %cst_148 : f32 to vector<8x64xf32>
      %c0_149 = arith.constant 0 : index
      %c0_150 = arith.constant 0 : index
      %498 = vector.load %arg11[%c0_149, %c0_150] : memref<8x64xf32, #tpu.memory_space<vmem>>, vector<8x64xf32>
      tpu.vector_store %arg11[%c0_149, %c0_150], %497 {strides = array<i32>} : memref<8x64xf32, #tpu.memory_space<vmem>>, vector<8x64xf32>,
      %cst_151 = arith.constant 0.000000e+00 : f32
      %499 = vector.broadcast %cst_151 : f32 to vector<8x64xf32>
      %c0_152 = arith.constant 0 : index
      %c0_153 = arith.constant 0 : index
      %500 = vector.load %arg12[%c0_152, %c0_153] : memref<8x64xf32, #tpu.memory_space<vmem>>, vector<8x64xf32>
      tpu.vector_store %arg12[%c0_152, %c0_153], %499 {strides = array<i32>} : memref<8x64xf32, #tpu.memory_space<vmem>>, vector<8x64xf32>,
      %cst_154 = arith.constant 0.000000e+00 : f32
      %501 = vector.broadcast %cst_154 : f32 to vector<8x64xf32>
      %c0_155 = arith.constant 0 : index
      %c0_156 = arith.constant 0 : index
      %502 = vector.load %arg13[%c0_155, %c0_156] : memref<8x64xf32, #tpu.memory_space<vmem>>, vector<8x64xf32>
      tpu.vector_store %arg13[%c0_155, %c0_156], %501 {strides = array<i32>} : memref<8x64xf32, #tpu.memory_space<vmem>>, vector<8x64xf32>,
      %cst_157 = arith.constant 0.000000e+00 : f32
      %503 = vector.broadcast %cst_157 : f32 to vector<8x64xf32>
      %c0_158 = arith.constant 0 : index
      %c0_159 = arith.constant 0 : index
      %504 = vector.load %arg14[%c0_158, %c0_159] : memref<8x64xf32, #tpu.memory_space<vmem>>, vector<8x64xf32>
      tpu.vector_store %arg14[%c0_158, %c0_159], %503 {strides = array<i32>} : memref<8x64xf32, #tpu.memory_space<vmem>>, vector<8x64xf32>,
    } else {
    }
    %c0 = arith.constant 0 : index
    %c0_1 = arith.constant 0 : index
    %3 = vector.load %arg5[%c0, %c0_1] : memref<1x256xf32, #tpu.memory_space<vmem>>, vector<1x256xf32>
    %4 = vector.shape_cast %3 : vector<1x256xf32> to vector<1x256xf32>
    %5 = vector.broadcast %4 : vector<1x256xf32> to vector<8x256xf32>
    %c0_2 = arith.constant 0 : index
    %c0_3 = arith.constant 0 : index
    %6 = vector.load %arg11[%c0_2, %c0_3] : memref<8x64xf32, #tpu.memory_space<vmem>>, vector<8x64xf32>
    %c0_4 = arith.constant 0 : index
    %c0_5 = arith.constant 0 : index
    %7 = vector.load %arg12[%c0_4, %c0_5] : memref<8x64xf32, #tpu.memory_space<vmem>>, vector<8x64xf32>
    %c0_6 = arith.constant 0 : index
    %c0_7 = arith.constant 0 : index
    %8 = vector.load %arg13[%c0_6, %c0_7] : memref<8x64xf32, #tpu.memory_space<vmem>>, vector<8x64xf32>
    %c0_8 = arith.constant 0 : index
    %c0_9 = arith.constant 0 : index
    %9 = vector.load %arg14[%c0_8, %c0_9] : memref<8x64xf32, #tpu.memory_space<vmem>>, vector<8x64xf32>
    %c0_10 = arith.constant 0 : index
    %c0_11 = arith.constant 0 : index
    %10 = vector.load %arg1[%c0_10, %c0_11] : memref<64x256xf32, #tpu.memory_space<vmem>>, vector<8x256xf32>
    %c0_12 = arith.constant 0 : index
    %c0_13 = arith.constant 0 : index
    %11 = vector.load %arg4[%c0_12, %c0_13] : memref<64x256xf32, #tpu.memory_space<vmem>>, vector<64x256xf32>
    %cst = arith.constant dense<0.000000e+00> : vector<8x256xf32>
    %12 = tpu.matmul %8, %11, %cst {dimension_numbers = #tpu.dot_dimension_numbers<[1], [0], [0], [1], [0, 0, 1, 1], [], []>} : vector<8x64xf32>, vector<64x256xf32>, vector<8x256xf32> -> vector<8x256xf32>
    %c0_14 = arith.constant 0 : index
    %c0_15 = arith.constant 0 : index
    %13 = vector.load %arg2[%c0_14, %c0_15] : memref<64x256xf32, #tpu.memory_space<vmem>>, vector<64x256xf32>
    %cst_16 = arith.constant dense<0.000000e+00> : vector<8x256xf32>
    %14 = tpu.matmul %6, %13, %cst_16 {dimension_numbers = #tpu.dot_dimension_numbers<[1], [0], [0], [1], [0, 0, 1, 1], [], []>} : vector<8x64xf32>, vector<64x256xf32>, vector<8x256xf32> -> vector<8x256xf32>
    %15 = arith.addf %10, %14 : vector<8x256xf32>
    %16 = vector.extract_strided_slice %15 {offsets = [0, 0], sizes = [8, 64], strides = [1, 1]} : vector<8x256xf32> to vector<8x64xf32>
    %17 = arith.negf %16 : vector<8x64xf32>
    %18 = math.exp %17 : vector<8x64xf32>
    %cst_17 = arith.constant 1.000000e+00 : f32
    %19 = vector.broadcast %cst_17 : f32 to vector<8x64xf32>
    %20 = arith.addf %19, %18 : vector<8x64xf32>
    %21 = arith.divf %19, %20 : vector<8x64xf32>
    %22 = vector.extract_strided_slice %15 {offsets = [0, 64], sizes = [8, 64], strides = [1, 1]} : vector<8x256xf32> to vector<8x64xf32>
    %23 = arith.negf %22 : vector<8x64xf32>
    %24 = math.exp %23 : vector<8x64xf32>
    %cst_18 = arith.constant 1.000000e+00 : f32
    %25 = vector.broadcast %cst_18 : f32 to vector<8x64xf32>
    %26 = arith.addf %25, %24 : vector<8x64xf32>
    %27 = arith.divf %25, %26 : vector<8x64xf32>
    %28 = vector.extract_strided_slice %15 {offsets = [0, 128], sizes = [8, 64], strides = [1, 1]} : vector<8x256xf32> to vector<8x64xf32>
    %29 = math.tanh %28 : vector<8x64xf32>
    %30 = vector.extract_strided_slice %15 {offsets = [0, 192], sizes = [8, 64], strides = [1, 1]} : vector<8x256xf32> to vector<8x64xf32>
    %31 = arith.negf %30 : vector<8x64xf32>
    %32 = math.exp %31 : vector<8x64xf32>
    %cst_19 = arith.constant 1.000000e+00 : f32
    %33 = vector.broadcast %cst_19 : f32 to vector<8x64xf32>
    %34 = arith.addf %33, %32 : vector<8x64xf32>
    %35 = arith.divf %33, %34 : vector<8x64xf32>
    %36 = arith.mulf %27, %7 : vector<8x64xf32>
    %37 = arith.mulf %21, %29 : vector<8x64xf32>
    %38 = arith.addf %36, %37 : vector<8x64xf32>
    %39 = math.tanh %38 : vector<8x64xf32>
    %40 = arith.mulf %35, %39 : vector<8x64xf32>
    %41 = arith.addf %12, %5 : vector<8x256xf32>
    %c0_20 = arith.constant 0 : index
    %c0_21 = arith.constant 0 : index
    %42 = vector.load %arg3[%c0_20, %c0_21] : memref<64x256xf32, #tpu.memory_space<vmem>>, vector<64x256xf32>
    %cst_22 = arith.constant dense<0.000000e+00> : vector<8x256xf32>
    %43 = tpu.matmul %40, %42, %cst_22 {dimension_numbers = #tpu.dot_dimension_numbers<[1], [0], [0], [1], [0, 0, 1, 1], [], []>} : vector<8x64xf32>, vector<64x256xf32>, vector<8x256xf32> -> vector<8x256xf32>
    %44 = arith.addf %41, %43 : vector<8x256xf32>
    %45 = vector.extract_strided_slice %44 {offsets = [0, 0], sizes = [8, 64], strides = [1, 1]} : vector<8x256xf32> to vector<8x64xf32>
    %46 = arith.negf %45 : vector<8x64xf32>
    %47 = math.exp %46 : vector<8x64xf32>
    %cst_23 = arith.constant 1.000000e+00 : f32
    %48 = vector.broadcast %cst_23 : f32 to vector<8x64xf32>
    %49 = arith.addf %48, %47 : vector<8x64xf32>
    %50 = arith.divf %48, %49 : vector<8x64xf32>
    %51 = vector.extract_strided_slice %44 {offsets = [0, 64], sizes = [8, 64], strides = [1, 1]} : vector<8x256xf32> to vector<8x64xf32>
    %52 = arith.negf %51 : vector<8x64xf32>
    %53 = math.exp %52 : vector<8x64xf32>
    %cst_24 = arith.constant 1.000000e+00 : f32
    %54 = vector.broadcast %cst_24 : f32 to vector<8x64xf32>
    %55 = arith.addf %54, %53 : vector<8x64xf32>
    %56 = arith.divf %54, %55 : vector<8x64xf32>
    %57 = vector.extract_strided_slice %44 {offsets = [0, 128], sizes = [8, 64], strides = [1, 1]} : vector<8x256xf32> to vector<8x64xf32>
    %58 = math.tanh %57 : vector<8x64xf32>
    %59 = vector.extract_strided_slice %44 {offsets = [0, 192], sizes = [8, 64], strides = [1, 1]} : vector<8x256xf32> to vector<8x64xf32>
    %60 = arith.negf %59 : vector<8x64xf32>
    %61 = math.exp %60 : vector<8x64xf32>
    %cst_25 = arith.constant 1.000000e+00 : f32
    %62 = vector.broadcast %cst_25 : f32 to vector<8x64xf32>
    %63 = arith.addf %62, %61 : vector<8x64xf32>
    %64 = arith.divf %62, %63 : vector<8x64xf32>
    %65 = arith.mulf %56, %9 : vector<8x64xf32>
    %66 = arith.mulf %50, %58 : vector<8x64xf32>
    %67 = arith.addf %65, %66 : vector<8x64xf32>
    %68 = math.tanh %67 : vector<8x64xf32>
    %69 = arith.mulf %64, %68 : vector<8x64xf32>
    %c8 = arith.constant 8 : index
    %c0_26 = arith.constant 0 : index
    %70 = vector.load %arg1[%c8, %c0_26] : memref<64x256xf32, #tpu.memory_space<vmem>>, vector<8x256xf32>
    %c0_27 = arith.constant 0 : index
    %c0_28 = arith.constant 0 : index
    %71 = vector.load %arg4[%c0_27, %c0_28] : memref<64x256xf32, #tpu.memory_space<vmem>>, vector<64x256xf32>
    %cst_29 = arith.constant dense<0.000000e+00> : vector<8x256xf32>
    %72 = tpu.matmul %69, %71, %cst_29 {dimension_numbers = #tpu.dot_dimension_numbers<[1], [0], [0], [1], [0, 0, 1, 1], [], []>} : vector<8x64xf32>, vector<64x256xf32>, vector<8x256xf32> -> vector<8x256xf32>
    %c0_30 = arith.constant 0 : index
    %c0_31 = arith.constant 0 : index
    %73 = vector.load %arg2[%c0_30, %c0_31] : memref<64x256xf32, #tpu.memory_space<vmem>>, vector<64x256xf32>
    %cst_32 = arith.constant dense<0.000000e+00> : vector<8x256xf32>
    %74 = tpu.matmul %40, %73, %cst_32 {dimension_numbers = #tpu.dot_dimension_numbers<[1], [0], [0], [1], [0, 0, 1, 1], [], []>} : vector<8x64xf32>, vector<64x256xf32>, vector<8x256xf32> -> vector<8x256xf32>
    %75 = arith.addf %70, %74 : vector<8x256xf32>
    %76 = vector.extract_strided_slice %75 {offsets = [0, 0], sizes = [8, 64], strides = [1, 1]} : vector<8x256xf32> to vector<8x64xf32>
    %77 = arith.negf %76 : vector<8x64xf32>
    %78 = math.exp %77 : vector<8x64xf32>
    %cst_33 = arith.constant 1.000000e+00 : f32
    %79 = vector.broadcast %cst_33 : f32 to vector<8x64xf32>
    %80 = arith.addf %79, %78 : vector<8x64xf32>
    %81 = arith.divf %79, %80 : vector<8x64xf32>
    %82 = vector.extract_strided_slice %75 {offsets = [0, 64], sizes = [8, 64], strides = [1, 1]} : vector<8x256xf32> to vector<8x64xf32>
    %83 = arith.negf %82 : vector<8x64xf32>
    %84 = math.exp %83 : vector<8x64xf32>
    %cst_34 = arith.constant 1.000000e+00 : f32
    %85 = vector.broadcast %cst_34 : f32 to vector<8x64xf32>
    %86 = arith.addf %85, %84 : vector<8x64xf32>
    %87 = arith.divf %85, %86 : vector<8x64xf32>
    %88 = vector.extract_strided_slice %75 {offsets = [0, 128], sizes = [8, 64], strides = [1, 1]} : vector<8x256xf32> to vector<8x64xf32>
    %89 = math.tanh %88 : vector<8x64xf32>
    %90 = vector.extract_strided_slice %75 {offsets = [0, 192], sizes = [8, 64], strides = [1, 1]} : vector<8x256xf32> to vector<8x64xf32>
    %91 = arith.negf %90 : vector<8x64xf32>
    %92 = math.exp %91 : vector<8x64xf32>
    %cst_35 = arith.constant 1.000000e+00 : f32
    %93 = vector.broadcast %cst_35 : f32 to vector<8x64xf32>
    %94 = arith.addf %93, %92 : vector<8x64xf32>
    %95 = arith.divf %93, %94 : vector<8x64xf32>
    %96 = arith.mulf %87, %38 : vector<8x64xf32>
    %97 = arith.mulf %81, %89 : vector<8x64xf32>
    %98 = arith.addf %96, %97 : vector<8x64xf32>
    %99 = math.tanh %98 : vector<8x64xf32>
    %100 = arith.mulf %95, %99 : vector<8x64xf32>
    %101 = arith.addf %72, %5 : vector<8x256xf32>
    %c0_36 = arith.constant 0 : index
    %c0_37 = arith.constant 0 : index
    %102 = vector.load %arg3[%c0_36, %c0_37] : memref<64x256xf32, #tpu.memory_space<vmem>>, vector<64x256xf32>
    %cst_38 = arith.constant dense<0.000000e+00> : vector<8x256xf32>
    %103 = tpu.matmul %100, %102, %cst_38 {dimension_numbers = #tpu.dot_dimension_numbers<[1], [0], [0], [1], [0, 0, 1, 1], [], []>} : vector<8x64xf32>, vector<64x256xf32>, vector<8x256xf32> -> vector<8x256xf32>
    %104 = arith.addf %101, %103 : vector<8x256xf32>
    %105 = vector.extract_strided_slice %104 {offsets = [0, 0], sizes = [8, 64], strides = [1, 1]} : vector<8x256xf32> to vector<8x64xf32>
    %106 = arith.negf %105 : vector<8x64xf32>
    %107 = math.exp %106 : vector<8x64xf32>
    %cst_39 = arith.constant 1.000000e+00 : f32
    %108 = vector.broadcast %cst_39 : f32 to vector<8x64xf32>
    %109 = arith.addf %108, %107 : vector<8x64xf32>
    %110 = arith.divf %108, %109 : vector<8x64xf32>
    %111 = vector.extract_strided_slice %104 {offsets = [0, 64], sizes = [8, 64], strides = [1, 1]} : vector<8x256xf32> to vector<8x64xf32>
    %112 = arith.negf %111 : vector<8x64xf32>
    %113 = math.exp %112 : vector<8x64xf32>
    %cst_40 = arith.constant 1.000000e+00 : f32
    %114 = vector.broadcast %cst_40 : f32 to vector<8x64xf32>
    %115 = arith.addf %114, %113 : vector<8x64xf32>
    %116 = arith.divf %114, %115 : vector<8x64xf32>
    %117 = vector.extract_strided_slice %104 {offsets = [0, 128], sizes = [8, 64], strides = [1, 1]} : vector<8x256xf32> to vector<8x64xf32>
    %118 = math.tanh %117 : vector<8x64xf32>
    %119 = vector.extract_strided_slice %104 {offsets = [0, 192], sizes = [8, 64], strides = [1, 1]} : vector<8x256xf32> to vector<8x64xf32>
    %120 = arith.negf %119 : vector<8x64xf32>
    %121 = math.exp %120 : vector<8x64xf32>
    %cst_41 = arith.constant 1.000000e+00 : f32
    %122 = vector.broadcast %cst_41 : f32 to vector<8x64xf32>
    %123 = arith.addf %122, %121 : vector<8x64xf32>
    %124 = arith.divf %122, %123 : vector<8x64xf32>
    %125 = arith.mulf %116, %67 : vector<8x64xf32>
    %126 = arith.mulf %110, %118 : vector<8x64xf32>
    %127 = arith.addf %125, %126 : vector<8x64xf32>
    %128 = math.tanh %127 : vector<8x64xf32>
    %129 = arith.mulf %124, %128 : vector<8x64xf32>
    %c16 = arith.constant 16 : index
    %c0_42 = arith.constant 0 : index
    %130 = vector.load %arg1[%c16, %c0_42] : memref<64x256xf32, #tpu.memory_space<vmem>>, vector<8x256xf32>
    %c0_43 = arith.constant 0 : index
    %c0_44 = arith.constant 0 : index
    %131 = vector.load %arg4[%c0_43, %c0_44] : memref<64x256xf32, #tpu.memory_space<vmem>>, vector<64x256xf32>
    %cst_45 = arith.constant dense<0.000000e+00> : vector<8x256xf32>
    %132 = tpu.matmul %129, %131, %cst_45 {dimension_numbers = #tpu.dot_dimension_numbers<[1], [0], [0], [1], [0, 0, 1, 1], [], []>} : vector<8x64xf32>, vector<64x256xf32>, vector<8x256xf32> -> vector<8x256xf32>
    %c0_46 = arith.constant 0 : index
    %c0_47 = arith.constant 0 : index
    %133 = vector.load %arg2[%c0_46, %c0_47] : memref<64x256xf32, #tpu.memory_space<vmem>>, vector<64x256xf32>
    %cst_48 = arith.constant dense<0.000000e+00> : vector<8x256xf32>
    %134 = tpu.matmul %100, %133, %cst_48 {dimension_numbers = #tpu.dot_dimension_numbers<[1], [0], [0], [1], [0, 0, 1, 1], [], []>} : vector<8x64xf32>, vector<64x256xf32>, vector<8x256xf32> -> vector<8x256xf32>
    %135 = arith.addf %130, %134 : vector<8x256xf32>
    %136 = vector.extract_strided_slice %135 {offsets = [0, 0], sizes = [8, 64], strides = [1, 1]} : vector<8x256xf32> to vector<8x64xf32>
    %137 = arith.negf %136 : vector<8x64xf32>
    %138 = math.exp %137 : vector<8x64xf32>
    %cst_49 = arith.constant 1.000000e+00 : f32
    %139 = vector.broadcast %cst_49 : f32 to vector<8x64xf32>
    %140 = arith.addf %139, %138 : vector<8x64xf32>
    %141 = arith.divf %139, %140 : vector<8x64xf32>
    %142 = vector.extract_strided_slice %135 {offsets = [0, 64], sizes = [8, 64], strides = [1, 1]} : vector<8x256xf32> to vector<8x64xf32>
    %143 = arith.negf %142 : vector<8x64xf32>
    %144 = math.exp %143 : vector<8x64xf32>
    %cst_50 = arith.constant 1.000000e+00 : f32
    %145 = vector.broadcast %cst_50 : f32 to vector<8x64xf32>
    %146 = arith.addf %145, %144 : vector<8x64xf32>
    %147 = arith.divf %145, %146 : vector<8x64xf32>
    %148 = vector.extract_strided_slice %135 {offsets = [0, 128], sizes = [8, 64], strides = [1, 1]} : vector<8x256xf32> to vector<8x64xf32>
    %149 = math.tanh %148 : vector<8x64xf32>
    %150 = vector.extract_strided_slice %135 {offsets = [0, 192], sizes = [8, 64], strides = [1, 1]} : vector<8x256xf32> to vector<8x64xf32>
    %151 = arith.negf %150 : vector<8x64xf32>
    %152 = math.exp %151 : vector<8x64xf32>
    %cst_51 = arith.constant 1.000000e+00 : f32
    %153 = vector.broadcast %cst_51 : f32 to vector<8x64xf32>
    %154 = arith.addf %153, %152 : vector<8x64xf32>
    %155 = arith.divf %153, %154 : vector<8x64xf32>
    %156 = arith.mulf %147, %98 : vector<8x64xf32>
    %157 = arith.mulf %141, %149 : vector<8x64xf32>
    %158 = arith.addf %156, %157 : vector<8x64xf32>
    %159 = math.tanh %158 : vector<8x64xf32>
    %160 = arith.mulf %155, %159 : vector<8x64xf32>
    %161 = arith.addf %132, %5 : vector<8x256xf32>
    %c0_52 = arith.constant 0 : index
    %c0_53 = arith.constant 0 : index
    %162 = vector.load %arg3[%c0_52, %c0_53] : memref<64x256xf32, #tpu.memory_space<vmem>>, vector<64x256xf32>
    %cst_54 = arith.constant dense<0.000000e+00> : vector<8x256xf32>
    %163 = tpu.matmul %160, %162, %cst_54 {dimension_numbers = #tpu.dot_dimension_numbers<[1], [0], [0], [1], [0, 0, 1, 1], [], []>} : vector<8x64xf32>, vector<64x256xf32>, vector<8x256xf32> -> vector<8x256xf32>
    %164 = arith.addf %161, %163 : vector<8x256xf32>
    %165 = vector.extract_strided_slice %164 {offsets = [0, 0], sizes = [8, 64], strides = [1, 1]} : vector<8x256xf32> to vector<8x64xf32>
    %166 = arith.negf %165 : vector<8x64xf32>
    %167 = math.exp %166 : vector<8x64xf32>
    %cst_55 = arith.constant 1.000000e+00 : f32
    %168 = vector.broadcast %cst_55 : f32 to vector<8x64xf32>
    %169 = arith.addf %168, %167 : vector<8x64xf32>
    %170 = arith.divf %168, %169 : vector<8x64xf32>
    %171 = vector.extract_strided_slice %164 {offsets = [0, 64], sizes = [8, 64], strides = [1, 1]} : vector<8x256xf32> to vector<8x64xf32>
    %172 = arith.negf %171 : vector<8x64xf32>
    %173 = math.exp %172 : vector<8x64xf32>
    %cst_56 = arith.constant 1.000000e+00 : f32
    %174 = vector.broadcast %cst_56 : f32 to vector<8x64xf32>
    %175 = arith.addf %174, %173 : vector<8x64xf32>
    %176 = arith.divf %174, %175 : vector<8x64xf32>
    %177 = vector.extract_strided_slice %164 {offsets = [0, 128], sizes = [8, 64], strides = [1, 1]} : vector<8x256xf32> to vector<8x64xf32>
    %178 = math.tanh %177 : vector<8x64xf32>
    %179 = vector.extract_strided_slice %164 {offsets = [0, 192], sizes = [8, 64], strides = [1, 1]} : vector<8x256xf32> to vector<8x64xf32>
    %180 = arith.negf %179 : vector<8x64xf32>
    %181 = math.exp %180 : vector<8x64xf32>
    %cst_57 = arith.constant 1.000000e+00 : f32
    %182 = vector.broadcast %cst_57 : f32 to vector<8x64xf32>
    %183 = arith.addf %182, %181 : vector<8x64xf32>
    %184 = arith.divf %182, %183 : vector<8x64xf32>
    %185 = arith.mulf %176, %127 : vector<8x64xf32>
    %186 = arith.mulf %170, %178 : vector<8x64xf32>
    %187 = arith.addf %185, %186 : vector<8x64xf32>
    %188 = math.tanh %187 : vector<8x64xf32>
    %189 = arith.mulf %184, %188 : vector<8x64xf32>
    %c24 = arith.constant 24 : index
    %c0_58 = arith.constant 0 : index
    %190 = vector.load %arg1[%c24, %c0_58] : memref<64x256xf32, #tpu.memory_space<vmem>>, vector<8x256xf32>
    %c0_59 = arith.constant 0 : index
    %c0_60 = arith.constant 0 : index
    %191 = vector.load %arg4[%c0_59, %c0_60] : memref<64x256xf32, #tpu.memory_space<vmem>>, vector<64x256xf32>
    %cst_61 = arith.constant dense<0.000000e+00> : vector<8x256xf32>
    %192 = tpu.matmul %189, %191, %cst_61 {dimension_numbers = #tpu.dot_dimension_numbers<[1], [0], [0], [1], [0, 0, 1, 1], [], []>} : vector<8x64xf32>, vector<64x256xf32>, vector<8x256xf32> -> vector<8x256xf32>
    %c0_62 = arith.constant 0 : index
    %c0_63 = arith.constant 0 : index
    %193 = vector.load %arg2[%c0_62, %c0_63] : memref<64x256xf32, #tpu.memory_space<vmem>>, vector<64x256xf32>
    %cst_64 = arith.constant dense<0.000000e+00> : vector<8x256xf32>
    %194 = tpu.matmul %160, %193, %cst_64 {dimension_numbers = #tpu.dot_dimension_numbers<[1], [0], [0], [1], [0, 0, 1, 1], [], []>} : vector<8x64xf32>, vector<64x256xf32>, vector<8x256xf32> -> vector<8x256xf32>
    %195 = arith.addf %190, %194 : vector<8x256xf32>
    %196 = vector.extract_strided_slice %195 {offsets = [0, 0], sizes = [8, 64], strides = [1, 1]} : vector<8x256xf32> to vector<8x64xf32>
    %197 = arith.negf %196 : vector<8x64xf32>
    %198 = math.exp %197 : vector<8x64xf32>
    %cst_65 = arith.constant 1.000000e+00 : f32
    %199 = vector.broadcast %cst_65 : f32 to vector<8x64xf32>
    %200 = arith.addf %199, %198 : vector<8x64xf32>
    %201 = arith.divf %199, %200 : vector<8x64xf32>
    %202 = vector.extract_strided_slice %195 {offsets = [0, 64], sizes = [8, 64], strides = [1, 1]} : vector<8x256xf32> to vector<8x64xf32>
    %203 = arith.negf %202 : vector<8x64xf32>
    %204 = math.exp %203 : vector<8x64xf32>
    %cst_66 = arith.constant 1.000000e+00 : f32
    %205 = vector.broadcast %cst_66 : f32 to vector<8x64xf32>
    %206 = arith.addf %205, %204 : vector<8x64xf32>
    %207 = arith.divf %205, %206 : vector<8x64xf32>
    %208 = vector.extract_strided_slice %195 {offsets = [0, 128], sizes = [8, 64], strides = [1, 1]} : vector<8x256xf32> to vector<8x64xf32>
    %209 = math.tanh %208 : vector<8x64xf32>
    %210 = vector.extract_strided_slice %195 {offsets = [0, 192], sizes = [8, 64], strides = [1, 1]} : vector<8x256xf32> to vector<8x64xf32>
    %211 = arith.negf %210 : vector<8x64xf32>
    %212 = math.exp %211 : vector<8x64xf32>
    %cst_67 = arith.constant 1.000000e+00 : f32
    %213 = vector.broadcast %cst_67 : f32 to vector<8x64xf32>
    %214 = arith.addf %213, %212 : vector<8x64xf32>
    %215 = arith.divf %213, %214 : vector<8x64xf32>
    %216 = arith.mulf %207, %158 : vector<8x64xf32>
    %217 = arith.mulf %201, %209 : vector<8x64xf32>
    %218 = arith.addf %216, %217 : vector<8x64xf32>
    %219 = math.tanh %218 : vector<8x64xf32>
    %220 = arith.mulf %215, %219 : vector<8x64xf32>
    %221 = arith.addf %192, %5 : vector<8x256xf32>
    %c0_68 = arith.constant 0 : index
    %c0_69 = arith.constant 0 : index
    %222 = vector.load %arg3[%c0_68, %c0_69] : memref<64x256xf32, #tpu.memory_space<vmem>>, vector<64x256xf32>
    %cst_70 = arith.constant dense<0.000000e+00> : vector<8x256xf32>
    %223 = tpu.matmul %220, %222, %cst_70 {dimension_numbers = #tpu.dot_dimension_numbers<[1], [0], [0], [1], [0, 0, 1, 1], [], []>} : vector<8x64xf32>, vector<64x256xf32>, vector<8x256xf32> -> vector<8x256xf32>
    %224 = arith.addf %221, %223 : vector<8x256xf32>
    %225 = vector.extract_strided_slice %224 {offsets = [0, 0], sizes = [8, 64], strides = [1, 1]} : vector<8x256xf32> to vector<8x64xf32>
    %226 = arith.negf %225 : vector<8x64xf32>
    %227 = math.exp %226 : vector<8x64xf32>
    %cst_71 = arith.constant 1.000000e+00 : f32
    %228 = vector.broadcast %cst_71 : f32 to vector<8x64xf32>
    %229 = arith.addf %228, %227 : vector<8x64xf32>
    %230 = arith.divf %228, %229 : vector<8x64xf32>
    %231 = vector.extract_strided_slice %224 {offsets = [0, 64], sizes = [8, 64], strides = [1, 1]} : vector<8x256xf32> to vector<8x64xf32>
    %232 = arith.negf %231 : vector<8x64xf32>
    %233 = math.exp %232 : vector<8x64xf32>
    %cst_72 = arith.constant 1.000000e+00 : f32
    %234 = vector.broadcast %cst_72 : f32 to vector<8x64xf32>
    %235 = arith.addf %234, %233 : vector<8x64xf32>
    %236 = arith.divf %234, %235 : vector<8x64xf32>
    %237 = vector.extract_strided_slice %224 {offsets = [0, 128], sizes = [8, 64], strides = [1, 1]} : vector<8x256xf32> to vector<8x64xf32>
    %238 = math.tanh %237 : vector<8x64xf32>
    %239 = vector.extract_strided_slice %224 {offsets = [0, 192], sizes = [8, 64], strides = [1, 1]} : vector<8x256xf32> to vector<8x64xf32>
    %240 = arith.negf %239 : vector<8x64xf32>
    %241 = math.exp %240 : vector<8x64xf32>
    %cst_73 = arith.constant 1.000000e+00 : f32
    %242 = vector.broadcast %cst_73 : f32 to vector<8x64xf32>
    %243 = arith.addf %242, %241 : vector<8x64xf32>
    %244 = arith.divf %242, %243 : vector<8x64xf32>
    %245 = arith.mulf %236, %187 : vector<8x64xf32>
    %246 = arith.mulf %230, %238 : vector<8x64xf32>
    %247 = arith.addf %245, %246 : vector<8x64xf32>
    %248 = math.tanh %247 : vector<8x64xf32>
    %249 = arith.mulf %244, %248 : vector<8x64xf32>
    %c32 = arith.constant 32 : index
    %c0_74 = arith.constant 0 : index
    %250 = vector.load %arg1[%c32, %c0_74] : memref<64x256xf32, #tpu.memory_space<vmem>>, vector<8x256xf32>
    %c0_75 = arith.constant 0 : index
    %c0_76 = arith.constant 0 : index
    %251 = vector.load %arg4[%c0_75, %c0_76] : memref<64x256xf32, #tpu.memory_space<vmem>>, vector<64x256xf32>
    %cst_77 = arith.constant dense<0.000000e+00> : vector<8x256xf32>
    %252 = tpu.matmul %249, %251, %cst_77 {dimension_numbers = #tpu.dot_dimension_numbers<[1], [0], [0], [1], [0, 0, 1, 1], [], []>} : vector<8x64xf32>, vector<64x256xf32>, vector<8x256xf32> -> vector<8x256xf32>
    %c0_78 = arith.constant 0 : index
    %c0_79 = arith.constant 0 : index
    %253 = vector.load %arg2[%c0_78, %c0_79] : memref<64x256xf32, #tpu.memory_space<vmem>>, vector<64x256xf32>
    %cst_80 = arith.constant dense<0.000000e+00> : vector<8x256xf32>
    %254 = tpu.matmul %220, %253, %cst_80 {dimension_numbers = #tpu.dot_dimension_numbers<[1], [0], [0], [1], [0, 0, 1, 1], [], []>} : vector<8x64xf32>, vector<64x256xf32>, vector<8x256xf32> -> vector<8x256xf32>
    %255 = arith.addf %250, %254 : vector<8x256xf32>
    %256 = vector.extract_strided_slice %255 {offsets = [0, 0], sizes = [8, 64], strides = [1, 1]} : vector<8x256xf32> to vector<8x64xf32>
    %257 = arith.negf %256 : vector<8x64xf32>
    %258 = math.exp %257 : vector<8x64xf32>
    %cst_81 = arith.constant 1.000000e+00 : f32
    %259 = vector.broadcast %cst_81 : f32 to vector<8x64xf32>
    %260 = arith.addf %259, %258 : vector<8x64xf32>
    %261 = arith.divf %259, %260 : vector<8x64xf32>
    %262 = vector.extract_strided_slice %255 {offsets = [0, 64], sizes = [8, 64], strides = [1, 1]} : vector<8x256xf32> to vector<8x64xf32>
    %263 = arith.negf %262 : vector<8x64xf32>
    %264 = math.exp %263 : vector<8x64xf32>
    %cst_82 = arith.constant 1.000000e+00 : f32
    %265 = vector.broadcast %cst_82 : f32 to vector<8x64xf32>
    %266 = arith.addf %265, %264 : vector<8x64xf32>
    %267 = arith.divf %265, %266 : vector<8x64xf32>
    %268 = vector.extract_strided_slice %255 {offsets = [0, 128], sizes = [8, 64], strides = [1, 1]} : vector<8x256xf32> to vector<8x64xf32>
    %269 = math.tanh %268 : vector<8x64xf32>
    %270 = vector.extract_strided_slice %255 {offsets = [0, 192], sizes = [8, 64], strides = [1, 1]} : vector<8x256xf32> to vector<8x64xf32>
    %271 = arith.negf %270 : vector<8x64xf32>
    %272 = math.exp %271 : vector<8x64xf32>
    %cst_83 = arith.constant 1.000000e+00 : f32
    %273 = vector.broadcast %cst_83 : f32 to vector<8x64xf32>
    %274 = arith.addf %273, %272 : vector<8x64xf32>
    %275 = arith.divf %273, %274 : vector<8x64xf32>
    %276 = arith.mulf %267, %218 : vector<8x64xf32>
    %277 = arith.mulf %261, %269 : vector<8x64xf32>
    %278 = arith.addf %276, %277 : vector<8x64xf32>
    %279 = math.tanh %278 : vector<8x64xf32>
    %280 = arith.mulf %275, %279 : vector<8x64xf32>
    %281 = arith.addf %252, %5 : vector<8x256xf32>
    %c0_84 = arith.constant 0 : index
    %c0_85 = arith.constant 0 : index
    %282 = vector.load %arg3[%c0_84, %c0_85] : memref<64x256xf32, #tpu.memory_space<vmem>>, vector<64x256xf32>
    %cst_86 = arith.constant dense<0.000000e+00> : vector<8x256xf32>
    %283 = tpu.matmul %280, %282, %cst_86 {dimension_numbers = #tpu.dot_dimension_numbers<[1], [0], [0], [1], [0, 0, 1, 1], [], []>} : vector<8x64xf32>, vector<64x256xf32>, vector<8x256xf32> -> vector<8x256xf32>
    %284 = arith.addf %281, %283 : vector<8x256xf32>
    %285 = vector.extract_strided_slice %284 {offsets = [0, 0], sizes = [8, 64], strides = [1, 1]} : vector<8x256xf32> to vector<8x64xf32>
    %286 = arith.negf %285 : vector<8x64xf32>
    %287 = math.exp %286 : vector<8x64xf32>
    %cst_87 = arith.constant 1.000000e+00 : f32
    %288 = vector.broadcast %cst_87 : f32 to vector<8x64xf32>
    %289 = arith.addf %288, %287 : vector<8x64xf32>
    %290 = arith.divf %288, %289 : vector<8x64xf32>
    %291 = vector.extract_strided_slice %284 {offsets = [0, 64], sizes = [8, 64], strides = [1, 1]} : vector<8x256xf32> to vector<8x64xf32>
    %292 = arith.negf %291 : vector<8x64xf32>
    %293 = math.exp %292 : vector<8x64xf32>
    %cst_88 = arith.constant 1.000000e+00 : f32
    %294 = vector.broadcast %cst_88 : f32 to vector<8x64xf32>
    %295 = arith.addf %294, %293 : vector<8x64xf32>
    %296 = arith.divf %294, %295 : vector<8x64xf32>
    %297 = vector.extract_strided_slice %284 {offsets = [0, 128], sizes = [8, 64], strides = [1, 1]} : vector<8x256xf32> to vector<8x64xf32>
    %298 = math.tanh %297 : vector<8x64xf32>
    %299 = vector.extract_strided_slice %284 {offsets = [0, 192], sizes = [8, 64], strides = [1, 1]} : vector<8x256xf32> to vector<8x64xf32>
    %300 = arith.negf %299 : vector<8x64xf32>
    %301 = math.exp %300 : vector<8x64xf32>
    %cst_89 = arith.constant 1.000000e+00 : f32
    %302 = vector.broadcast %cst_89 : f32 to vector<8x64xf32>
    %303 = arith.addf %302, %301 : vector<8x64xf32>
    %304 = arith.divf %302, %303 : vector<8x64xf32>
    %305 = arith.mulf %296, %247 : vector<8x64xf32>
    %306 = arith.mulf %290, %298 : vector<8x64xf32>
    %307 = arith.addf %305, %306 : vector<8x64xf32>
    %308 = math.tanh %307 : vector<8x64xf32>
    %309 = arith.mulf %304, %308 : vector<8x64xf32>
    %c40 = arith.constant 40 : index
    %c0_90 = arith.constant 0 : index
    %310 = vector.load %arg1[%c40, %c0_90] : memref<64x256xf32, #tpu.memory_space<vmem>>, vector<8x256xf32>
    %c0_91 = arith.constant 0 : index
    %c0_92 = arith.constant 0 : index
    %311 = vector.load %arg4[%c0_91, %c0_92] : memref<64x256xf32, #tpu.memory_space<vmem>>, vector<64x256xf32>
    %cst_93 = arith.constant dense<0.000000e+00> : vector<8x256xf32>
    %312 = tpu.matmul %309, %311, %cst_93 {dimension_numbers = #tpu.dot_dimension_numbers<[1], [0], [0], [1], [0, 0, 1, 1], [], []>} : vector<8x64xf32>, vector<64x256xf32>, vector<8x256xf32> -> vector<8x256xf32>
    %c0_94 = arith.constant 0 : index
    %c0_95 = arith.constant 0 : index
    %313 = vector.load %arg2[%c0_94, %c0_95] : memref<64x256xf32, #tpu.memory_space<vmem>>, vector<64x256xf32>
    %cst_96 = arith.constant dense<0.000000e+00> : vector<8x256xf32>
    %314 = tpu.matmul %280, %313, %cst_96 {dimension_numbers = #tpu.dot_dimension_numbers<[1], [0], [0], [1], [0, 0, 1, 1], [], []>} : vector<8x64xf32>, vector<64x256xf32>, vector<8x256xf32> -> vector<8x256xf32>
    %315 = arith.addf %310, %314 : vector<8x256xf32>
    %316 = vector.extract_strided_slice %315 {offsets = [0, 0], sizes = [8, 64], strides = [1, 1]} : vector<8x256xf32> to vector<8x64xf32>
    %317 = arith.negf %316 : vector<8x64xf32>
    %318 = math.exp %317 : vector<8x64xf32>
    %cst_97 = arith.constant 1.000000e+00 : f32
    %319 = vector.broadcast %cst_97 : f32 to vector<8x64xf32>
    %320 = arith.addf %319, %318 : vector<8x64xf32>
    %321 = arith.divf %319, %320 : vector<8x64xf32>
    %322 = vector.extract_strided_slice %315 {offsets = [0, 64], sizes = [8, 64], strides = [1, 1]} : vector<8x256xf32> to vector<8x64xf32>
    %323 = arith.negf %322 : vector<8x64xf32>
    %324 = math.exp %323 : vector<8x64xf32>
    %cst_98 = arith.constant 1.000000e+00 : f32
    %325 = vector.broadcast %cst_98 : f32 to vector<8x64xf32>
    %326 = arith.addf %325, %324 : vector<8x64xf32>
    %327 = arith.divf %325, %326 : vector<8x64xf32>
    %328 = vector.extract_strided_slice %315 {offsets = [0, 128], sizes = [8, 64], strides = [1, 1]} : vector<8x256xf32> to vector<8x64xf32>
    %329 = math.tanh %328 : vector<8x64xf32>
    %330 = vector.extract_strided_slice %315 {offsets = [0, 192], sizes = [8, 64], strides = [1, 1]} : vector<8x256xf32> to vector<8x64xf32>
    %331 = arith.negf %330 : vector<8x64xf32>
    %332 = math.exp %331 : vector<8x64xf32>
    %cst_99 = arith.constant 1.000000e+00 : f32
    %333 = vector.broadcast %cst_99 : f32 to vector<8x64xf32>
    %334 = arith.addf %333, %332 : vector<8x64xf32>
    %335 = arith.divf %333, %334 : vector<8x64xf32>
    %336 = arith.mulf %327, %278 : vector<8x64xf32>
    %337 = arith.mulf %321, %329 : vector<8x64xf32>
    %338 = arith.addf %336, %337 : vector<8x64xf32>
    %339 = math.tanh %338 : vector<8x64xf32>
    %340 = arith.mulf %335, %339 : vector<8x64xf32>
    %341 = arith.addf %312, %5 : vector<8x256xf32>
    %c0_100 = arith.constant 0 : index
    %c0_101 = arith.constant 0 : index
    %342 = vector.load %arg3[%c0_100, %c0_101] : memref<64x256xf32, #tpu.memory_space<vmem>>, vector<64x256xf32>
    %cst_102 = arith.constant dense<0.000000e+00> : vector<8x256xf32>
    %343 = tpu.matmul %340, %342, %cst_102 {dimension_numbers = #tpu.dot_dimension_numbers<[1], [0], [0], [1], [0, 0, 1, 1], [], []>} : vector<8x64xf32>, vector<64x256xf32>, vector<8x256xf32> -> vector<8x256xf32>
    %344 = arith.addf %341, %343 : vector<8x256xf32>
    %345 = vector.extract_strided_slice %344 {offsets = [0, 0], sizes = [8, 64], strides = [1, 1]} : vector<8x256xf32> to vector<8x64xf32>
    %346 = arith.negf %345 : vector<8x64xf32>
    %347 = math.exp %346 : vector<8x64xf32>
    %cst_103 = arith.constant 1.000000e+00 : f32
    %348 = vector.broadcast %cst_103 : f32 to vector<8x64xf32>
    %349 = arith.addf %348, %347 : vector<8x64xf32>
    %350 = arith.divf %348, %349 : vector<8x64xf32>
    %351 = vector.extract_strided_slice %344 {offsets = [0, 64], sizes = [8, 64], strides = [1, 1]} : vector<8x256xf32> to vector<8x64xf32>
    %352 = arith.negf %351 : vector<8x64xf32>
    %353 = math.exp %352 : vector<8x64xf32>
    %cst_104 = arith.constant 1.000000e+00 : f32
    %354 = vector.broadcast %cst_104 : f32 to vector<8x64xf32>
    %355 = arith.addf %354, %353 : vector<8x64xf32>
    %356 = arith.divf %354, %355 : vector<8x64xf32>
    %357 = vector.extract_strided_slice %344 {offsets = [0, 128], sizes = [8, 64], strides = [1, 1]} : vector<8x256xf32> to vector<8x64xf32>
    %358 = math.tanh %357 : vector<8x64xf32>
    %359 = vector.extract_strided_slice %344 {offsets = [0, 192], sizes = [8, 64], strides = [1, 1]} : vector<8x256xf32> to vector<8x64xf32>
    %360 = arith.negf %359 : vector<8x64xf32>
    %361 = math.exp %360 : vector<8x64xf32>
    %cst_105 = arith.constant 1.000000e+00 : f32
    %362 = vector.broadcast %cst_105 : f32 to vector<8x64xf32>
    %363 = arith.addf %362, %361 : vector<8x64xf32>
    %364 = arith.divf %362, %363 : vector<8x64xf32>
    %365 = arith.mulf %356, %307 : vector<8x64xf32>
    %366 = arith.mulf %350, %358 : vector<8x64xf32>
    %367 = arith.addf %365, %366 : vector<8x64xf32>
    %368 = math.tanh %367 : vector<8x64xf32>
    %369 = arith.mulf %364, %368 : vector<8x64xf32>
    %c48 = arith.constant 48 : index
    %c0_106 = arith.constant 0 : index
    %370 = vector.load %arg1[%c48, %c0_106] : memref<64x256xf32, #tpu.memory_space<vmem>>, vector<8x256xf32>
    %c0_107 = arith.constant 0 : index
    %c0_108 = arith.constant 0 : index
    %371 = vector.load %arg4[%c0_107, %c0_108] : memref<64x256xf32, #tpu.memory_space<vmem>>, vector<64x256xf32>
    %cst_109 = arith.constant dense<0.000000e+00> : vector<8x256xf32>
    %372 = tpu.matmul %369, %371, %cst_109 {dimension_numbers = #tpu.dot_dimension_numbers<[1], [0], [0], [1], [0, 0, 1, 1], [], []>} : vector<8x64xf32>, vector<64x256xf32>, vector<8x256xf32> -> vector<8x256xf32>
    %c0_110 = arith.constant 0 : index
    %c0_111 = arith.constant 0 : index
    %373 = vector.load %arg2[%c0_110, %c0_111] : memref<64x256xf32, #tpu.memory_space<vmem>>, vector<64x256xf32>
    %cst_112 = arith.constant dense<0.000000e+00> : vector<8x256xf32>
    %374 = tpu.matmul %340, %373, %cst_112 {dimension_numbers = #tpu.dot_dimension_numbers<[1], [0], [0], [1], [0, 0, 1, 1], [], []>} : vector<8x64xf32>, vector<64x256xf32>, vector<8x256xf32> -> vector<8x256xf32>
    %375 = arith.addf %370, %374 : vector<8x256xf32>
    %376 = vector.extract_strided_slice %375 {offsets = [0, 0], sizes = [8, 64], strides = [1, 1]} : vector<8x256xf32> to vector<8x64xf32>
    %377 = arith.negf %376 : vector<8x64xf32>
    %378 = math.exp %377 : vector<8x64xf32>
    %cst_113 = arith.constant 1.000000e+00 : f32
    %379 = vector.broadcast %cst_113 : f32 to vector<8x64xf32>
    %380 = arith.addf %379, %378 : vector<8x64xf32>
    %381 = arith.divf %379, %380 : vector<8x64xf32>
    %382 = vector.extract_strided_slice %375 {offsets = [0, 64], sizes = [8, 64], strides = [1, 1]} : vector<8x256xf32> to vector<8x64xf32>
    %383 = arith.negf %382 : vector<8x64xf32>
    %384 = math.exp %383 : vector<8x64xf32>
    %cst_114 = arith.constant 1.000000e+00 : f32
    %385 = vector.broadcast %cst_114 : f32 to vector<8x64xf32>
    %386 = arith.addf %385, %384 : vector<8x64xf32>
    %387 = arith.divf %385, %386 : vector<8x64xf32>
    %388 = vector.extract_strided_slice %375 {offsets = [0, 128], sizes = [8, 64], strides = [1, 1]} : vector<8x256xf32> to vector<8x64xf32>
    %389 = math.tanh %388 : vector<8x64xf32>
    %390 = vector.extract_strided_slice %375 {offsets = [0, 192], sizes = [8, 64], strides = [1, 1]} : vector<8x256xf32> to vector<8x64xf32>
    %391 = arith.negf %390 : vector<8x64xf32>
    %392 = math.exp %391 : vector<8x64xf32>
    %cst_115 = arith.constant 1.000000e+00 : f32
    %393 = vector.broadcast %cst_115 : f32 to vector<8x64xf32>
    %394 = arith.addf %393, %392 : vector<8x64xf32>
    %395 = arith.divf %393, %394 : vector<8x64xf32>
    %396 = arith.mulf %387, %338 : vector<8x64xf32>
    %397 = arith.mulf %381, %389 : vector<8x64xf32>
    %398 = arith.addf %396, %397 : vector<8x64xf32>
    %399 = math.tanh %398 : vector<8x64xf32>
    %400 = arith.mulf %395, %399 : vector<8x64xf32>
    %401 = arith.addf %372, %5 : vector<8x256xf32>
    %c0_116 = arith.constant 0 : index
    %c0_117 = arith.constant 0 : index
    %402 = vector.load %arg3[%c0_116, %c0_117] : memref<64x256xf32, #tpu.memory_space<vmem>>, vector<64x256xf32>
    %cst_118 = arith.constant dense<0.000000e+00> : vector<8x256xf32>
    %403 = tpu.matmul %400, %402, %cst_118 {dimension_numbers = #tpu.dot_dimension_numbers<[1], [0], [0], [1], [0, 0, 1, 1], [], []>} : vector<8x64xf32>, vector<64x256xf32>, vector<8x256xf32> -> vector<8x256xf32>
    %404 = arith.addf %401, %403 : vector<8x256xf32>
    %405 = vector.extract_strided_slice %404 {offsets = [0, 0], sizes = [8, 64], strides = [1, 1]} : vector<8x256xf32> to vector<8x64xf32>
    %406 = arith.negf %405 : vector<8x64xf32>
    %407 = math.exp %406 : vector<8x64xf32>
    %cst_119 = arith.constant 1.000000e+00 : f32
    %408 = vector.broadcast %cst_119 : f32 to vector<8x64xf32>
    %409 = arith.addf %408, %407 : vector<8x64xf32>
    %410 = arith.divf %408, %409 : vector<8x64xf32>
    %411 = vector.extract_strided_slice %404 {offsets = [0, 64], sizes = [8, 64], strides = [1, 1]} : vector<8x256xf32> to vector<8x64xf32>
    %412 = arith.negf %411 : vector<8x64xf32>
    %413 = math.exp %412 : vector<8x64xf32>
    %cst_120 = arith.constant 1.000000e+00 : f32
    %414 = vector.broadcast %cst_120 : f32 to vector<8x64xf32>
    %415 = arith.addf %414, %413 : vector<8x64xf32>
    %416 = arith.divf %414, %415 : vector<8x64xf32>
    %417 = vector.extract_strided_slice %404 {offsets = [0, 128], sizes = [8, 64], strides = [1, 1]} : vector<8x256xf32> to vector<8x64xf32>
    %418 = math.tanh %417 : vector<8x64xf32>
    %419 = vector.extract_strided_slice %404 {offsets = [0, 192], sizes = [8, 64], strides = [1, 1]} : vector<8x256xf32> to vector<8x64xf32>
    %420 = arith.negf %419 : vector<8x64xf32>
    %421 = math.exp %420 : vector<8x64xf32>
    %cst_121 = arith.constant 1.000000e+00 : f32
    %422 = vector.broadcast %cst_121 : f32 to vector<8x64xf32>
    %423 = arith.addf %422, %421 : vector<8x64xf32>
    %424 = arith.divf %422, %423 : vector<8x64xf32>
    %425 = arith.mulf %416, %367 : vector<8x64xf32>
    %426 = arith.mulf %410, %418 : vector<8x64xf32>
    %427 = arith.addf %425, %426 : vector<8x64xf32>
    %428 = math.tanh %427 : vector<8x64xf32>
    %429 = arith.mulf %424, %428 : vector<8x64xf32>
    %c56 = arith.constant 56 : index
    %c0_122 = arith.constant 0 : index
    %430 = vector.load %arg1[%c56, %c0_122] : memref<64x256xf32, #tpu.memory_space<vmem>>, vector<8x256xf32>
    %c0_123 = arith.constant 0 : index
    %c0_124 = arith.constant 0 : index
    %431 = vector.load %arg4[%c0_123, %c0_124] : memref<64x256xf32, #tpu.memory_space<vmem>>, vector<64x256xf32>
    %cst_125 = arith.constant dense<0.000000e+00> : vector<8x256xf32>
    %432 = tpu.matmul %429, %431, %cst_125 {dimension_numbers = #tpu.dot_dimension_numbers<[1], [0], [0], [1], [0, 0, 1, 1], [], []>} : vector<8x64xf32>, vector<64x256xf32>, vector<8x256xf32> -> vector<8x256xf32>
    %c0_126 = arith.constant 0 : index
    %c0_127 = arith.constant 0 : index
    %433 = vector.load %arg2[%c0_126, %c0_127] : memref<64x256xf32, #tpu.memory_space<vmem>>, vector<64x256xf32>
    %cst_128 = arith.constant dense<0.000000e+00> : vector<8x256xf32>
    %434 = tpu.matmul %400, %433, %cst_128 {dimension_numbers = #tpu.dot_dimension_numbers<[1], [0], [0], [1], [0, 0, 1, 1], [], []>} : vector<8x64xf32>, vector<64x256xf32>, vector<8x256xf32> -> vector<8x256xf32>
    %435 = arith.addf %430, %434 : vector<8x256xf32>
    %436 = vector.extract_strided_slice %435 {offsets = [0, 0], sizes = [8, 64], strides = [1, 1]} : vector<8x256xf32> to vector<8x64xf32>
    %437 = arith.negf %436 : vector<8x64xf32>
    %438 = math.exp %437 : vector<8x64xf32>
    %cst_129 = arith.constant 1.000000e+00 : f32
    %439 = vector.broadcast %cst_129 : f32 to vector<8x64xf32>
    %440 = arith.addf %439, %438 : vector<8x64xf32>
    %441 = arith.divf %439, %440 : vector<8x64xf32>
    %442 = vector.extract_strided_slice %435 {offsets = [0, 64], sizes = [8, 64], strides = [1, 1]} : vector<8x256xf32> to vector<8x64xf32>
    %443 = arith.negf %442 : vector<8x64xf32>
    %444 = math.exp %443 : vector<8x64xf32>
    %cst_130 = arith.constant 1.000000e+00 : f32
    %445 = vector.broadcast %cst_130 : f32 to vector<8x64xf32>
    %446 = arith.addf %445, %444 : vector<8x64xf32>
    %447 = arith.divf %445, %446 : vector<8x64xf32>
    %448 = vector.extract_strided_slice %435 {offsets = [0, 128], sizes = [8, 64], strides = [1, 1]} : vector<8x256xf32> to vector<8x64xf32>
    %449 = math.tanh %448 : vector<8x64xf32>
    %450 = vector.extract_strided_slice %435 {offsets = [0, 192], sizes = [8, 64], strides = [1, 1]} : vector<8x256xf32> to vector<8x64xf32>
    %451 = arith.negf %450 : vector<8x64xf32>
    %452 = math.exp %451 : vector<8x64xf32>
    %cst_131 = arith.constant 1.000000e+00 : f32
    %453 = vector.broadcast %cst_131 : f32 to vector<8x64xf32>
    %454 = arith.addf %453, %452 : vector<8x64xf32>
    %455 = arith.divf %453, %454 : vector<8x64xf32>
    %456 = arith.mulf %447, %398 : vector<8x64xf32>
    %457 = arith.mulf %441, %449 : vector<8x64xf32>
    %458 = arith.addf %456, %457 : vector<8x64xf32>
    %459 = math.tanh %458 : vector<8x64xf32>
    %460 = arith.mulf %455, %459 : vector<8x64xf32>
    %461 = arith.addf %432, %5 : vector<8x256xf32>
    %c0_132 = arith.constant 0 : index
    %c0_133 = arith.constant 0 : index
    %462 = vector.load %arg3[%c0_132, %c0_133] : memref<64x256xf32, #tpu.memory_space<vmem>>, vector<64x256xf32>
    %cst_134 = arith.constant dense<0.000000e+00> : vector<8x256xf32>
    %463 = tpu.matmul %460, %462, %cst_134 {dimension_numbers = #tpu.dot_dimension_numbers<[1], [0], [0], [1], [0, 0, 1, 1], [], []>} : vector<8x64xf32>, vector<64x256xf32>, vector<8x256xf32> -> vector<8x256xf32>
    %464 = arith.addf %461, %463 : vector<8x256xf32>
    %465 = vector.extract_strided_slice %464 {offsets = [0, 0], sizes = [8, 64], strides = [1, 1]} : vector<8x256xf32> to vector<8x64xf32>
    %466 = arith.negf %465 : vector<8x64xf32>
    %467 = math.exp %466 : vector<8x64xf32>
    %cst_135 = arith.constant 1.000000e+00 : f32
    %468 = vector.broadcast %cst_135 : f32 to vector<8x64xf32>
    %469 = arith.addf %468, %467 : vector<8x64xf32>
    %470 = arith.divf %468, %469 : vector<8x64xf32>
    %471 = vector.extract_strided_slice %464 {offsets = [0, 64], sizes = [8, 64], strides = [1, 1]} : vector<8x256xf32> to vector<8x64xf32>
    %472 = arith.negf %471 : vector<8x64xf32>
    %473 = math.exp %472 : vector<8x64xf32>
    %cst_136 = arith.constant 1.000000e+00 : f32
    %474 = vector.broadcast %cst_136 : f32 to vector<8x64xf32>
    %475 = arith.addf %474, %473 : vector<8x64xf32>
    %476 = arith.divf %474, %475 : vector<8x64xf32>
    %477 = vector.extract_strided_slice %464 {offsets = [0, 128], sizes = [8, 64], strides = [1, 1]} : vector<8x256xf32> to vector<8x64xf32>
    %478 = math.tanh %477 : vector<8x64xf32>
    %479 = vector.extract_strided_slice %464 {offsets = [0, 192], sizes = [8, 64], strides = [1, 1]} : vector<8x256xf32> to vector<8x64xf32>
    %480 = arith.negf %479 : vector<8x64xf32>
    %481 = math.exp %480 : vector<8x64xf32>
    %cst_137 = arith.constant 1.000000e+00 : f32
    %482 = vector.broadcast %cst_137 : f32 to vector<8x64xf32>
    %483 = arith.addf %482, %481 : vector<8x64xf32>
    %484 = arith.divf %482, %483 : vector<8x64xf32>
    %485 = arith.mulf %476, %427 : vector<8x64xf32>
    %486 = arith.mulf %470, %478 : vector<8x64xf32>
    %487 = arith.addf %485, %486 : vector<8x64xf32>
    %488 = math.tanh %487 : vector<8x64xf32>
    %489 = arith.mulf %484, %488 : vector<8x64xf32>
    %c0_138 = arith.constant 0 : index
    %c0_139 = arith.constant 0 : index
    %490 = vector.load %arg11[%c0_138, %c0_139] : memref<8x64xf32, #tpu.memory_space<vmem>>, vector<8x64xf32>
    tpu.vector_store %arg11[%c0_138, %c0_139], %460 {strides = array<i32>} : memref<8x64xf32, #tpu.memory_space<vmem>>, vector<8x64xf32>,
    %c0_140 = arith.constant 0 : index
    %c0_141 = arith.constant 0 : index
    %491 = vector.load %arg12[%c0_140, %c0_141] : memref<8x64xf32, #tpu.memory_space<vmem>>, vector<8x64xf32>
    tpu.vector_store %arg12[%c0_140, %c0_141], %458 {strides = array<i32>} : memref<8x64xf32, #tpu.memory_space<vmem>>, vector<8x64xf32>,
    %c0_142 = arith.constant 0 : index
    %c0_143 = arith.constant 0 : index
    %492 = vector.load %arg13[%c0_142, %c0_143] : memref<8x64xf32, #tpu.memory_space<vmem>>, vector<8x64xf32>
    tpu.vector_store %arg13[%c0_142, %c0_143], %489 {strides = array<i32>} : memref<8x64xf32, #tpu.memory_space<vmem>>, vector<8x64xf32>,
    %c0_144 = arith.constant 0 : index
    %c0_145 = arith.constant 0 : index
    %493 = vector.load %arg14[%c0_144, %c0_145] : memref<8x64xf32, #tpu.memory_space<vmem>>, vector<8x64xf32>
    tpu.vector_store %arg14[%c0_144, %c0_145], %487 {strides = array<i32>} : memref<8x64xf32, #tpu.memory_space<vmem>>, vector<8x64xf32>,
    %c0_i32_146 = arith.constant 0 : i32
    %494 = arith.cmpi eq, %arg0, %c0_i32_146 : i32
    %495 = arith.extui %494 : i1 to i32
    %c0_i32_147 = arith.constant 0 : i32
    %496 = arith.cmpi ne, %495, %c0_i32_147 : i32
    scf.if %496 {
      %c0_148 = arith.constant 0 : index
      %c0_149 = arith.constant 0 : index
      %497 = vector.load %arg6[%c0_148, %c0_149] : memref<64x64xf32, #tpu.memory_space<vmem>>, vector<64x64xf32>
      %cst_150 = arith.constant dense<0.000000e+00> : vector<8x64xf32>
      %498 = tpu.matmul %489, %497, %cst_150 {dimension_numbers = #tpu.dot_dimension_numbers<[1], [0], [0], [1], [0, 0, 1, 1], [], []>} : vector<8x64xf32>, vector<64x64xf32>, vector<8x64xf32> -> vector<8x64xf32>
      %c0_151 = arith.constant 0 : index
      %c0_152 = arith.constant 0 : index
      %499 = vector.load %arg7[%c0_151, %c0_152] : memref<1x64xf32, #tpu.memory_space<vmem>>, vector<1x64xf32>
      %500 = vector.broadcast %499 : vector<1x64xf32> to vector<8x64xf32>
      %501 = arith.addf %498, %500 : vector<8x64xf32>
      %cst_153 = arith.constant 0.000000e+00 : f32
      %502 = vector.broadcast %cst_153 : f32 to vector<8x64xf32>
      %503 = arith.maximumf %501, %502 : vector<8x64xf32>
      %c0_154 = arith.constant 0 : index
      %c0_155 = arith.constant 0 : index
      %504 = vector.load %arg8[%c0_154, %c0_155] : memref<1x64xf32, #tpu.memory_space<vmem>>, vector<1x64xf32>
      %505 = vector.broadcast %504 : vector<1x64xf32> to vector<8x64xf32>
      %506 = arith.mulf %503, %505 : vector<8x64xf32>
      %cst_156 = arith.constant dense<0.000000e+00> : vector<8xf32>
      %507 = vector.multi_reduction <add>, %506, %cst_156 [1] : vector<8x64xf32> to vector<8xf32>
      %508 = vector.shape_cast %507 : vector<8xf32> to vector<8x1xf32>
      %c0_157 = arith.constant 0 : index
      %c0_158 = arith.constant 0 : index
      %509 = vector.load %arg9[%c0_157, %c0_158] : memref<1x1xf32, #tpu.memory_space<vmem>>, vector<1x1xf32>
      %510 = vector.broadcast %509 : vector<1x1xf32> to vector<8x1xf32>
      %511 = arith.addf %508, %510 : vector<8x1xf32>
      %c0_159 = arith.constant 0 : index
      %c0_160 = arith.constant 0 : index
      %512 = vector.load %arg10[%c0_159, %c0_160] : memref<8x1xf32, #tpu.memory_space<vmem>>, vector<8x1xf32>
      tpu.vector_store %arg10[%c0_159, %c0_160], %511 {strides = array<i32>} : memref<8x1xf32, #tpu.memory_space<vmem>>, vector<8x1xf32>,
    } else {
    }
    return
  }
  func.func @transform_0(%arg0: i32) -> (i32, i32) {
    %c0_i32 = arith.constant 0 : i32
    %c0_i32_0 = arith.constant 0 : i32
    return %arg0, %c0_i32 : i32, i32
  }
  func.func @transform_1(%arg0: i32) -> (i32, i32) {
    %c0_i32 = arith.constant 0 : i32
    %c0_i32_0 = arith.constant 0 : i32
    %c0_i32_1 = arith.constant 0 : i32
    return %c0_i32, %c0_i32_0 : i32, i32
  }
  func.func @transform_2(%arg0: i32) -> (i32, i32) {
    %c0_i32 = arith.constant 0 : i32
    %c0_i32_0 = arith.constant 0 : i32
    %c0_i32_1 = arith.constant 0 : i32
    return %c0_i32, %c0_i32_0 : i32, i32
  }
  func.func @transform_3(%arg0: i32) -> (i32, i32) {
    %c0_i32 = arith.constant 0 : i32
    %c0_i32_0 = arith.constant 0 : i32
    %c0_i32_1 = arith.constant 0 : i32
    return %c0_i32, %c0_i32_0 : i32, i32
  }
  func.func @transform_4(%arg0: i32) -> (i32, i32) {
    %c0_i32 = arith.constant 0 : i32
    %c0_i32_0 = arith.constant 0 : i32
    %c0_i32_1 = arith.constant 0 : i32
    return %c0_i32, %c0_i32_0 : i32, i32
  }
  func.func @transform_5(%arg0: i32) -> (i32, i32) {
    %c0_i32 = arith.constant 0 : i32
    %c0_i32_0 = arith.constant 0 : i32
    %c0_i32_1 = arith.constant 0 : i32
    return %c0_i32, %c0_i32_0 : i32, i32
  }
  func.func @transform_6(%arg0: i32) -> (i32, i32) {
    %c0_i32 = arith.constant 0 : i32
    %c0_i32_0 = arith.constant 0 : i32
    %c0_i32_1 = arith.constant 0 : i32
    return %c0_i32, %c0_i32_0 : i32, i32
  }
  func.func @transform_7(%arg0: i32) -> (i32, i32) {
    %c0_i32 = arith.constant 0 : i32
    %c0_i32_0 = arith.constant 0 : i32
    %c0_i32_1 = arith.constant 0 : i32
    return %c0_i32, %c0_i32_0 : i32, i32
  }
  func.func @transform_8(%arg0: i32) -> (i32, i32) {
    %c0_i32 = arith.constant 0 : i32
    %c0_i32_0 = arith.constant 0 : i32
    %c0_i32_1 = arith.constant 0 : i32
    return %c0_i32, %c0_i32_0 : i32, i32
  }
  func.func @transform_9(%arg0: i32) -> (i32, i32) {
    %c0_i32 = arith.constant 0 : i32
    %c0_i32_0 = arith.constant 0 : i32
    %c0_i32_1 = arith.constant 0 : i32
    return %c0_i32, %c0_i32_0 : i32, i32
  }
}

</mosaic_0001>

<llo_original>
// kernel: tpu_custom_call.1
$region0: #{tpu_custom_call.1}
  #allocation0 [shape = 'u32[]', space=smem, size = 0x4, offset = 0x4, fixed_abs, tag = 'smem constant byte address 0x4 - core index']
  #allocation1 [shape = 'u32[144,128]{1,0:T(1,128)}', space=vmem, size = 0x12000, scoped, tag = 'internal scratch']
  #allocation2 [shape = 'f32[8,64]{1,0:T(8,128)}', space=vmem, size = 0x1000, scoped, tag = 'scratch operand']
  #allocation3 [shape = 'f32[8,64]{1,0:T(8,128)}', space=vmem, size = 0x1000, scoped, tag = 'scratch operand']
  #allocation4 [shape = 'f32[8,64]{1,0:T(8,128)}', space=vmem, size = 0x1000, scoped, tag = 'scratch operand']
  #allocation5 [shape = 'f32[8,64]{1,0:T(8,128)}', space=vmem, size = 0x1000, scoped, tag = 'scratch operand']
  #allocation6 [shape = 'f32[1,1]{1,0:T(1,128)S(1)}', space=vmem, size = 0x200, scoped, tag = 'scoped memory for tpu_custom_call.1']
  %s0 = inlined_call_operand.hbm [shape: f32[64,256], index: 0, kind: input, shape index: {}]
  %s1 = inlined_call_operand.hbm [shape: f32[64,256], index: 1, kind: input, shape index: {}]
  %s2 = inlined_call_operand.hbm [shape: f32[64,256], index: 2, kind: input, shape index: {}]
  %s3 = inlined_call_operand.hbm [shape: f32[64,256], index: 3, kind: input, shape index: {}]
  %s4 = inlined_call_operand.vmem [shape: f32[1,256], index: 4, kind: input, shape index: {}]
  %s5 = inlined_call_operand.hbm [shape: f32[64,64], index: 5, kind: input, shape index: {}]
  %s6 = inlined_call_operand.vmem [shape: f32[1,64], index: 6, kind: input, shape index: {}]
  %s7 = inlined_call_operand.vmem [shape: f32[1,64], index: 7, kind: input, shape index: {}]
  %s8 = inlined_call_operand.<no memory space> [shape: f32[1,1], index: 8, kind: input, shape index: {}]
  %s9 = inlined_call_operand.vmem [shape: f32[8,1], index: 9, kind: output, shape index: {}]
  %s10 = sld [smem:[#allocation0]]
  $region74: #{tpu_custom_call.1} parent=0
    _
  %s12 = ssub.s32 1, %s10
  %s13 = scalar_select 0, %s12, %s10
  %v14 = vstv %s8
  %15 = vst [vmem:[#allocation6] sm:$0x1] %v14
  $region1: #{tpu_custom_call.1} parent=0
    #allocation7 [shape = 'u8[65536]{0}', space=vmem, size = 0x10000, scoped, tag = 'input window, operand 0, single buffered']
    #allocation8 [shape = 's32[1]{0}', space=sflag, size = 0x4, scoped, tag = 'scoped memory for tpu_custom_call.1']
    #allocation9 [shape = 'u8[65536]{0}', space=vmem, size = 0x10000, scoped, tag = 'input window, operand 1, single buffered']
    #allocation10 [shape = 's32[1]{0}', space=sflag, size = 0x4, scoped, tag = 'scoped memory for tpu_custom_call.1']
    #allocation11 [shape = 'u8[65536]{0}', space=vmem, size = 0x10000, scoped, tag = 'input window, operand 2, single buffered']
    #allocation12 [shape = 'u8[65536]{0}', space=vmem, size = 0x10000, scoped, tag = 'input window, operand 3, single buffered']
    #allocation13 [shape = 's32[1]{0}', space=sflag, size = 0x4, scoped, tag = 'scoped memory for tpu_custom_call.1']
    #allocation14 [shape = 'u8[32768]{0}', space=vmem, size = 0x8000, scoped, tag = 'input window, operand 5, single buffered']
    %16 = vsyncpa [#allocation8], 0
    %17 = vsyncpa [#allocation10], 0
    %18 = vsyncpa [#allocation13], 0
    // Predicated region
    $region2: #{tpu_custom_call.1} parent=1 // pred_check
      _
    $region3: #{tpu_custom_call.1} parent=1 // pred_check_branch
      %20 = sbr.rel (0) target = $region5
    $region4: #{tpu_custom_call.1} parent=1 // pred_region
      %s22 = ssub.s32 2048, 2048
      %23 = vsyncadd [#allocation8], %s22
      %s24 = sshll.u32 [#allocation7], 4
      %s25 = int_to_ptr.vmem [resolvable:$true] %s24
      %30 = dma.hbm_to_vmem [thread:$0]  %s0, 2048, %s25, [#allocation8], 256, 256, 16
    $region5: #{tpu_custom_call.1} parent=1 // pred_fallthru
      _
    // Predicated region
    $region6: #{tpu_custom_call.1} parent=1 // pred_check
      _
    $region7: #{tpu_custom_call.1} parent=1 // pred_check_branch
      %32 = sbr.rel (0) target = $region9
    $region8: #{tpu_custom_call.1} parent=1 // pred_region
      %s34 = ssub.s32 2048, 2048
      %35 = vsyncadd [#allocation10], %s34
      %s36 = sshll.u32 [#allocation9], 4
      %s37 = int_to_ptr.vmem [resolvable:$true] %s36
      %42 = dma.hbm_to_vmem [thread:$0]  %s1, 2048, %s37, [#allocation10], 256, 256, 16
    $region9: #{tpu_custom_call.1} parent=1 // pred_fallthru
      _
    // Predicated region
    $region10: #{tpu_custom_call.1} parent=1 // pred_check
      _
    $region11: #{tpu_custom_call.1} parent=1 // pred_check_branch
      %44 = sbr.rel (0) target = $region13
    $region12: #{tpu_custom_call.1} parent=1 // pred_region
      %s46 = ssub.s32 2048, 2048
      %47 = vsyncadd [#allocation10], %s46
      %s48 = sshll.u32 [#allocation11], 4
      %s49 = int_to_ptr.vmem [resolvable:$true] %s48
      %54 = dma.hbm_to_vmem [thread:$0]  %s2, 2048, %s49, [#allocation10], 256, 256, 16
    $region13: #{tpu_custom_call.1} parent=1 // pred_fallthru
      _
    // Predicated region
    $region14: #{tpu_custom_call.1} parent=1 // pred_check
      _
    $region15: #{tpu_custom_call.1} parent=1 // pred_check_branch
      %56 = sbr.rel (0) target = $region17
    $region16: #{tpu_custom_call.1} parent=1 // pred_region
      %s58 = ssub.s32 2048, 2048
      %59 = vsyncadd [#allocation13], %s58
      %s60 = sshll.u32 [#allocation12], 4
      %s61 = int_to_ptr.vmem [resolvable:$true] %s60
      %66 = dma.hbm_to_vmem [thread:$0]  %s3, 2048, %s61, [#allocation13], 256, 256, 16
    $region17: #{tpu_custom_call.1} parent=1 // pred_fallthru
      _
    // Predicated region
    $region18: #{tpu_custom_call.1} parent=1 // pred_check
      _
    $region19: #{tpu_custom_call.1} parent=1 // pred_check_branch
      %68 = sbr.rel (0) target = $region21
    $region20: #{tpu_custom_call.1} parent=1 // pred_region
      _
    $region21: #{tpu_custom_call.1} parent=1 // pred_fallthru
      _
    // Predicated region
    $region22: #{tpu_custom_call.1} parent=1 // pred_check
      _
    $region23: #{tpu_custom_call.1} parent=1 // pred_check_branch
      %70 = sbr.rel (0) target = $region25
    $region24: #{tpu_custom_call.1} parent=1 // pred_region
      %s72 = ssub.s32 1024, 1024
      %73 = vsyncadd [#allocation13], %s72
      %s74 = sshll.u32 [#allocation14], 4
      %s75 = int_to_ptr.vmem [resolvable:$true] %s74
      %80 = dma.hbm_to_vmem [thread:$0]  %s5, 1024, %s75, [#allocation13], 128, 128, 8
    $region25: #{tpu_custom_call.1} parent=1 // pred_fallthru
      _
    // Predicated region
    $region26: #{tpu_custom_call.1} parent=1 // pred_check
      _
    $region27: #{tpu_custom_call.1} parent=1 // pred_check_branch
      %82 = sbr.rel (0) target = $region29
    $region28: #{tpu_custom_call.1} parent=1 // pred_region
      _
    $region29: #{tpu_custom_call.1} parent=1 // pred_fallthru
      _
    // Predicated region
    $region30: #{tpu_custom_call.1} parent=1 // pred_check
      _
    $region31: #{tpu_custom_call.1} parent=1 // pred_check_branch
      %84 = sbr.rel (0) target = $region33
    $region32: #{tpu_custom_call.1} parent=1 // pred_region
      _
    $region33: #{tpu_custom_call.1} parent=1 // pred_fallthru
      _
    // Predicated region
    $region34: #{tpu_custom_call.1} parent=1 // pred_check
      _
    $region35: #{tpu_custom_call.1} parent=1 // pred_check_branch
      %86 = sbr.rel (0) target = $region37
    $region36: #{tpu_custom_call.1} parent=1 // pred_region
      _
    $region37: #{tpu_custom_call.1} parent=1 // pred_fallthru
      _
    // Predicated region
    $region38: #{tpu_custom_call.1} parent=1 // pred_check
      _
    $region39: #{tpu_custom_call.1} parent=1 // pred_check_branch
      %88 = sbr.rel (0) target = $region41
    $region40: #{tpu_custom_call.1} parent=1 // pred_region
      %89 = dma.done [#allocation8], 2048
    $region41: #{tpu_custom_call.1} parent=1 // pred_fallthru
      _
    // Predicated region
    $region42: #{tpu_custom_call.1} parent=1 // pred_check
      _
    $region43: #{tpu_custom_call.1} parent=1 // pred_check_branch
      %91 = sbr.rel (0) target = $region45
    $region44: #{tpu_custom_call.1} parent=1 // pred_region
      %92 = dma.done [#allocation10], 2048
    $region45: #{tpu_custom_call.1} parent=1 // pred_fallthru
      _
    // Predicated region
    $region46: #{tpu_custom_call.1} parent=1 // pred_check
      _
    $region47: #{tpu_custom_call.1} parent=1 // pred_check_branch
      %94 = sbr.rel (0) target = $region49
    $region48: #{tpu_custom_call.1} parent=1 // pred_region
      %95 = dma.done [#allocation10], 2048
    $region49: #{tpu_custom_call.1} parent=1 // pred_fallthru
      _
    // Predicated region
    $region50: #{tpu_custom_call.1} parent=1 // pred_check
      _
    $region51: #{tpu_custom_call.1} parent=1 // pred_check_branch
      %97 = sbr.rel (0) target = $region53
    $region52: #{tpu_custom_call.1} parent=1 // pred_region
      %98 = dma.done [#allocation13], 2048
    $region53: #{tpu_custom_call.1} parent=1 // pred_fallthru
      _
    // Predicated region
    $region54: #{tpu_custom_call.1} parent=1 // pred_check
      _
    $region55: #{tpu_custom_call.1} parent=1 // pred_check_branch
      %100 = sbr.rel (0) target = $region57
    $region56: #{tpu_custom_call.1} parent=1 // pred_region
      %101 = dma.done [#allocation13], 1024
    $region57: #{tpu_custom_call.1} parent=1 // pred_fallthru
      _
    %p102 = scmp.eq.s32.totalorder 0, 0
    // Predicated region
    $region58: #{tpu_custom_call.1} parent=1 // pred_check
      %p103 = pneg %p102
    $region59: #{tpu_custom_call.1} parent=1 // pred_check_branch
      %105 = sbr.rel (%p103) target = $region61
    $region60: #{tpu_custom_call.1} parent=1 // pred_region
      %vm106 = vcmask 523264
      %107 = vst.msk [vmem:[#allocation2] sm:$0xff] %vm106, 0.0
      %108 = vst.msk [vmem:[#allocation3] sm:$0xff] %vm106, 0.0
      %109 = vst.msk [vmem:[#allocation4] sm:$0xff] %vm106, 0.0
      %110 = vst.msk [vmem:[#allocation5] sm:$0xff] %vm106, 0.0
    $region61: #{tpu_custom_call.1} parent=1 // pred_fallthru
      _
    %v111 = vld [vmem:[%s4] sm:$0x3]
    %v113 = vlaneseq
    %v114 = vshrl.u32 %v113, 7
    %v115 = vsub.s32 0, %v114
    %v116 = vrot.slane %v111, %v115
    %v117 = vlaneseq
    %v118 = vshrl.u32 %v117, 7
    %v119 = vsub.s32 1, %v118
    %v120 = vrot.slane %v111, %v119
    %v123 = vld [vmem:[#allocation2] sm:$0xff]
    %v124 = vld [vmem:[#allocation3] sm:$0xff]
    %v125 = vld [vmem:[#allocation4] sm:$0xff]
    %v126 = vld [vmem:[#allocation5] sm:$0xff]
    %v127 = vld [vmem:[#allocation7] sm:$0xff]
    %v128 = vld [vmem:[#allocation7 + $0x8] sm:$0xff]
    %v129 = vld [vmem:[#allocation12] sm:$0xff]
    %v130 = vld [vmem:[#allocation12 + $0x8] sm:$0xff]
    %v131 = vld [vmem:[#allocation12 + $0x10] sm:$0xff]
    %v132 = vld [vmem:[#allocation12 + $0x18] sm:$0xff]
    %v133 = vld [vmem:[#allocation12 + $0x20] sm:$0xff]
    %v134 = vld [vmem:[#allocation12 + $0x28] sm:$0xff]
    %v135 = vld [vmem:[#allocation12 + $0x30] sm:$0xff]
    %v136 = vld [vmem:[#allocation12 + $0x38] sm:$0xff]
    %v137 = vld [vmem:[#allocation12 + $0x40] sm:$0xff]
    %v138 = vld [vmem:[#allocation12 + $0x48] sm:$0xff]
    %v139 = vld [vmem:[#allocation12 + $0x50] sm:$0xff]
    %v140 = vld [vmem:[#allocation12 + $0x58] sm:$0xff]
    %v141 = vld [vmem:[#allocation12 + $0x60] sm:$0xff]
    %v142 = vld [vmem:[#allocation12 + $0x68] sm:$0xff]
    %v143 = vld [vmem:[#allocation12 + $0x70] sm:$0xff]
    %v144 = vld [vmem:[#allocation12 + $0x78] sm:$0xff]
    %v145 = vld [vmem:[#allocation9] sm:$0xff]
    %v146 = vld [vmem:[#allocation9 + $0x8] sm:$0xff]
    %v147 = vld [vmem:[#allocation9 + $0x10] sm:$0xff]
    %v148 = vld [vmem:[#allocation9 + $0x18] sm:$0xff]
    %v149 = vld [vmem:[#allocation9 + $0x20] sm:$0xff]
    %v150 = vld [vmem:[#allocation9 + $0x28] sm:$0xff]
    %v151 = vld [vmem:[#allocation9 + $0x30] sm:$0xff]
    %v152 = vld [vmem:[#allocation9 + $0x38] sm:$0xff]
    %v153 = vld [vmem:[#allocation9 + $0x40] sm:$0xff]
    %v154 = vld [vmem:[#allocation9 + $0x48] sm:$0xff]
    %v155 = vld [vmem:[#allocation9 + $0x50] sm:$0xff]
    %v156 = vld [vmem:[#allocation9 + $0x58] sm:$0xff]
    %v157 = vld [vmem:[#allocation9 + $0x60] sm:$0xff]
    %v158 = vld [vmem:[#allocation9 + $0x68] sm:$0xff]
    %v159 = vld [vmem:[#allocation9 + $0x70] sm:$0xff]
    %v160 = vld [vmem:[#allocation9 + $0x78] sm:$0xff]
    %vm161 = vcmask 523264
    %v163 = vsel %vm161, %v123, 0
    %165 = vmatprep.subr.mxu0 0.0
    %166 = vmatpush1.msra.mxu0 0.0
    %167 = vmatprep.subr.mxu0 0.0
    %168 = vmatpush1.msra.mxu0 0.0
    %169 = vmatprep.subr.mxu0 0.0
    %170 = vmatpush1.msra.mxu0 0.0
    %171 = vmatprep.subr.mxu0 0.0
    %172 = vmatpush1.msra.mxu0 0.0
    %173 = vmatprep.subr.mxu0 0.0
    %174 = vmatpush1.msra.mxu0 0.0
    %175 = vmatprep.subr.mxu0 0.0
    %176 = vmatpush1.msra.mxu0 0.0
    %177 = vmatprep.subr.mxu0 0.0
    %178 = vmatpush1.msra.mxu0 0.0
    %179 = vmatprep.subr.mxu0 0.0
    %180 = vmatpush1.msra.mxu0 0.0
    %181 = vmatprep.subr.mxu0 %v160
    %182 = vmatpush1.msra.mxu0 %v159
    %183 = vmatprep.subr.mxu0 %v158
    %184 = vmatpush1.msra.mxu0 %v157
    %185 = vmatprep.subr.mxu0 %v156
    %186 = vmatpush1.msra.mxu0 %v155
    %187 = vmatprep.subr.mxu0 %v154
    %188 = vmatpush1.msra.mxu0 %v153
    %189 = vmatprep.subr.mxu0 %v152
    %190 = vmatpush1.msra.mxu0 %v151
    %191 = vmatprep.subr.mxu0 %v150
    %192 = vmatpush1.msra.mxu0 %v149
    %193 = vmatprep.subr.mxu0 %v148
    %194 = vmatpush1.msra.mxu0 %v147
    %195 = vmatprep.subr.mxu0 %v146
    %196 = vmatpush1.msra.mxu0 %v145
    %197 = vmatprep.subr.mxu0 0.0
    %198 = vmatpush2.msra.mxu0 0.0
    %199 = vmatprep.subr.mxu0 0.0
    %200 = vmatpush2.msra.mxu0 0.0
    %201 = vmatprep.subr.mxu0 0.0
    %202 = vmatpush2.msra.mxu0 0.0
    %203 = vmatprep.subr.mxu0 0.0
    %204 = vmatpush2.msra.mxu0 0.0
    %205 = vmatprep.subr.mxu0 0.0
    %206 = vmatpush2.msra.mxu0 0.0
    %207 = vmatprep.subr.mxu0 0.0
    %208 = vmatpush2.msra.mxu0 0.0
    %209 = vmatprep.subr.mxu0 0.0
    %210 = vmatpush2.msra.mxu0 0.0
    %211 = vmatprep.subr.mxu0 0.0
    %212 = vmatpush2.msra.mxu0 0.0
    %213 = vmatprep.subr.mxu0 0.0
    %214 = vmatpush2.msra.mxu0 0.0
    %215 = vmatprep.subr.mxu0 0.0
    %216 = vmatpush2.msra.mxu0 0.0
    %217 = vmatprep.subr.mxu0 0.0
    %218 = vmatpush2.msra.mxu0 0.0
    %219 = vmatprep.subr.mxu0 0.0
    %220 = vmatpush2.msra.mxu0 0.0
    %221 = vmatprep.subr.mxu0 0.0
    %222 = vmatpush2.msra.mxu0 0.0
    %223 = vmatprep.subr.mxu0 0.0
    %224 = vmatpush2.msra.mxu0 0.0
    %225 = vmatprep.subr.mxu0 0.0
    %226 = vmatpush2.msra.mxu0 0.0
    %227 = vmatprep.subr.mxu0 0.0
    %228 = vmatpush2.msra.mxu0 0.0
    %229 = vmatprep.mubr.f32.mxu0 0.0
    %230 = vmatmul.mubr.f32.gmra.mxu0 %v163
    %v231 = vpop.f32.mrf.mxu0
    %v232 = vadd.f32 0.0, %v231
    %v233 = vpop.f32.mrf.mxu0
    %v234 = vadd.f32 0.0, %v233
    %235 = vdwg.mxu0
    %v236 = vadd.f32 %v127, %v232
    %v237 = vadd.f32 %v128, %v234
    %v238 = vxor.u32 %v236, 2147483648
    %v239 = vmul.f32 %v238, 1.442695
    %v240 = vpow.pop %v239
    %v241 = vadd.f32 %v240, 1.0
    %v242 = vrcp.pop %v241
    %v243 = vmul.f32 1.0, %v242
    %v244 = vtanh.pop %v237
    %v245 = vxor.u32 %v237, 2147483648
    %v246 = vmul.f32 %v245, 1.442695
    %v247 = vpow.pop %v246
    %v248 = vadd.f32 %v247, 1.0
    %v249 = vrcp.pop %v248
    %v250 = vmul.f32 1.0, %v249
    %252 = vrot.lane.b32.xlu0 %v124, 64
    %v253 = vpop.permute.xlu0 %252
    %v255 = vmul.f32 %v243, %v253
    %v256 = vmul.f32 %v243, %v244
    %258 = vrot.lane.b32.xlu0 %v256, 64
    %v259 = vpop.permute.xlu0 %258
    %v261 = vadd.f32 %v255, %v259
    %v262 = vtanh.pop %v261
    %v263 = vmul.f32 %v250, %v262
    %v265 = vsel %vm161, %v125, 0
    %267 = vmatprep.subr.mxu0 0.0
    %268 = vmatpush1.msra.mxu0 0.0
    %269 = vmatprep.subr.mxu0 0.0
    %270 = vmatpush1.msra.mxu0 0.0
    %271 = vmatprep.subr.mxu0 0.0
    %272 = vmatpush1.msra.mxu0 0.0
    %273 = vmatprep.subr.mxu0 0.0
    %274 = vmatpush1.msra.mxu0 0.0
    %275 = vmatprep.subr.mxu0 0.0
    %276 = vmatpush1.msra.mxu0 0.0
    %277 = vmatprep.subr.mxu0 0.0
    %278 = vmatpush1.msra.mxu0 0.0
    %279 = vmatprep.subr.mxu0 0.0
    %280 = vmatpush1.msra.mxu0 0.0
    %281 = vmatprep.subr.mxu0 0.0
    %282 = vmatpush1.msra.mxu0 0.0
    %283 = vmatprep.subr.mxu0 %v144
    %284 = vmatpush1.msra.mxu0 %v143
    %285 = vmatprep.subr.mxu0 %v142
    %286 = vmatpush1.msra.mxu0 %v141
    %287 = vmatprep.subr.mxu0 %v140
    %288 = vmatpush1.msra.mxu0 %v139
    %289 = vmatprep.subr.mxu0 %v138
    %290 = vmatpush1.msra.mxu0 %v137
    %291 = vmatprep.subr.mxu0 %v136
    %292 = vmatpush1.msra.mxu0 %v135
    %293 = vmatprep.subr.mxu0 %v134
    %294 = vmatpush1.msra.mxu0 %v133
    %295 = vmatprep.subr.mxu0 %v132
    %296 = vmatpush1.msra.mxu0 %v131
    %297 = vmatprep.subr.mxu0 %v130
    %298 = vmatpush1.msra.mxu0 %v129
    %299 = vmatprep.subr.mxu0 0.0
    %300 = vmatpush2.msra.mxu0 0.0
    %301 = vmatprep.subr.mxu0 0.0
    %302 = vmatpush2.msra.mxu0 0.0
    %303 = vmatprep.subr.mxu0 0.0
    %304 = vmatpush2.msra.mxu0 0.0
    %305 = vmatprep.subr.mxu0 0.0
    %306 = vmatpush2.msra.mxu0 0.0
    %307 = vmatprep.subr.mxu0 0.0
    %308 = vmatpush2.msra.mxu0 0.0
    %309 = vmatprep.subr.mxu0 0.0
    %310 = vmatpush2.msra.mxu0 0.0
    %311 = vmatprep.subr.mxu0 0.0
    %312 = vmatpush2.msra.mxu0 0.0
    %313 = vmatprep.subr.mxu0 0.0
    %314 = vmatpush2.msra.mxu0 0.0
    %315 = vmatprep.subr.mxu0 0.0
    %316 = vmatpush2.msra.mxu0 0.0
    %317 = vmatprep.subr.mxu0 0.0
    %318 = vmatpush2.msra.mxu0 0.0
    %319 = vmatprep.subr.mxu0 0.0
    %320 = vmatpush2.msra.mxu0 0.0
    %321 = vmatprep.subr.mxu0 0.0
    %322 = vmatpush2.msra.mxu0 0.0
    %323 = vmatprep.subr.mxu0 0.0
    %324 = vmatpush2.msra.mxu0 0.0
    %325 = vmatprep.subr.mxu0 0.0
    %326 = vmatpush2.msra.mxu0 0.0
    %327 = vmatprep.subr.mxu0 0.0
    %328 = vmatpush2.msra.mxu0 0.0
    %329 = vmatprep.subr.mxu0 0.0
    %330 = vmatpush2.msra.mxu0 0.0
    %331 = vmatprep.mubr.f32.mxu0 0.0
    %332 = vmatmul.mubr.f32.gmra.mxu0 %v265
    %v333 = vpop.f32.mrf.mxu0
    %v334 = vadd.f32 %v116, %v333
    %v335 = vpop.f32.mrf.mxu0
    %v336 = vadd.f32 %v120, %v335
    %337 = vdwg.mxu0
    %v338 = vld [vmem:[#allocation11] sm:$0xff]
    %v339 = vld [vmem:[#allocation11 + $0x8] sm:$0xff]
    %v340 = vld [vmem:[#allocation11 + $0x10] sm:$0xff]
    %v341 = vld [vmem:[#allocation11 + $0x18] sm:$0xff]
    %v342 = vld [vmem:[#allocation11 + $0x20] sm:$0xff]
    %v343 = vld [vmem:[#allocation11 + $0x28] sm:$0xff]
    %v344 = vld [vmem:[#allocation11 + $0x30] sm:$0xff]
    %v345 = vld [vmem:[#allocation11 + $0x38] sm:$0xff]
    %v346 = vld [vmem:[#allocation11 + $0x40] sm:$0xff]
    %v347 = vld [vmem:[#allocation11 + $0x48] sm:$0xff]
    %v348 = vld [vmem:[#allocation11 + $0x50] sm:$0xff]
    %v349 = vld [vmem:[#allocation11 + $0x58] sm:$0xff]
    %v350 = vld [vmem:[#allocation11 + $0x60] sm:$0xff]
    %v351 = vld [vmem:[#allocation11 + $0x68] sm:$0xff]
    %v352 = vld [vmem:[#allocation11 + $0x70] sm:$0xff]
    %v353 = vld [vmem:[#allocation11 + $0x78] sm:$0xff]
    %355 = vrot.lane.b32.xlu0 %v263, 64
    %v356 = vpop.permute.xlu0 %355
    %v357 = vsel %vm161, %v356, 0
    %359 = vmatprep.subr.mxu0 0.0
    %360 = vmatpush1.msra.mxu0 0.0
    %361 = vmatprep.subr.mxu0 0.0
    %362 = vmatpush1.msra.mxu0 0.0
    %363 = vmatprep.subr.mxu0 0.0
    %364 = vmatpush1.msra.mxu0 0.0
    %365 = vmatprep.subr.mxu0 0.0
    %366 = vmatpush1.msra.mxu0 0.0
    %367 = vmatprep.subr.mxu0 0.0
    %368 = vmatpush1.msra.mxu0 0.0
    %369 = vmatprep.subr.mxu0 0.0
    %370 = vmatpush1.msra.mxu0 0.0
    %371 = vmatprep.subr.mxu0 0.0
    %372 = vmatpush1.msra.mxu0 0.0
    %373 = vmatprep.subr.mxu0 0.0
    %374 = vmatpush1.msra.mxu0 0.0
    %375 = vmatprep.subr.mxu0 %v353
    %376 = vmatpush1.msra.mxu0 %v352
    %377 = vmatprep.subr.mxu0 %v351
    %378 = vmatpush1.msra.mxu0 %v350
    %379 = vmatprep.subr.mxu0 %v349
    %380 = vmatpush1.msra.mxu0 %v348
    %381 = vmatprep.subr.mxu0 %v347
    %382 = vmatpush1.msra.mxu0 %v346
    %383 = vmatprep.subr.mxu0 %v345
    %384 = vmatpush1.msra.mxu0 %v344
    %385 = vmatprep.subr.mxu0 %v343
    %386 = vmatpush1.msra.mxu0 %v342
    %387 = vmatprep.subr.mxu0 %v341
    %388 = vmatpush1.msra.mxu0 %v340
    %389 = vmatprep.subr.mxu0 %v339
    %390 = vmatpush1.msra.mxu0 %v338
    %391 = vmatprep.subr.mxu0 0.0
    %392 = vmatpush2.msra.mxu0 0.0
    %393 = vmatprep.subr.mxu0 0.0
    %394 = vmatpush2.msra.mxu0 0.0
    %395 = vmatprep.subr.mxu0 0.0
    %396 = vmatpush2.msra.mxu0 0.0
    %397 = vmatprep.subr.mxu0 0.0
    %398 = vmatpush2.msra.mxu0 0.0
    %399 = vmatprep.subr.mxu0 0.0
    %400 = vmatpush2.msra.mxu0 0.0
    %401 = vmatprep.subr.mxu0 0.0
    %402 = vmatpush2.msra.mxu0 0.0
    %403 = vmatprep.subr.mxu0 0.0
    %404 = vmatpush2.msra.mxu0 0.0
    %405 = vmatprep.subr.mxu0 0.0
    %406 = vmatpush2.msra.mxu0 0.0
    %407 = vmatprep.subr.mxu0 0.0
    %408 = vmatpush2.msra.mxu0 0.0
    %409 = vmatprep.subr.mxu0 0.0
    %410 = vmatpush2.msra.mxu0 0.0
    %411 = vmatprep.subr.mxu0 0.0
    %412 = vmatpush2.msra.mxu0 0.0
    %413 = vmatprep.subr.mxu0 0.0
    %414 = vmatpush2.msra.mxu0 0.0
    %415 = vmatprep.subr.mxu0 0.0
    %416 = vmatpush2.msra.mxu0 0.0
    %417 = vmatprep.subr.mxu0 0.0
    %418 = vmatpush2.msra.mxu0 0.0
    %419 = vmatprep.subr.mxu0 0.0
    %420 = vmatpush2.msra.mxu0 0.0
    %421 = vmatprep.subr.mxu0 0.0
    %422 = vmatpush2.msra.mxu0 0.0
    %423 = vmatprep.mubr.f32.mxu0 0.0
    %424 = vmatmul.mubr.f32.gmra.mxu0 %v357
    %v425 = vpop.f32.mrf.mxu0
    %v426 = vadd.f32 0.0, %v425
    %v427 = vpop.f32.mrf.mxu0
    %v428 = vadd.f32 0.0, %v427
    %429 = vdwg.mxu0
    %v430 = vadd.f32 %v334, %v426
    %v431 = vadd.f32 %v336, %v428
    %v432 = vxor.u32 %v430, 2147483648
    %v433 = vmul.f32 %v432, 1.442695
    %v434 = vpow.pop %v433
    %v435 = vadd.f32 %v434, 1.0
    %v436 = vrcp.pop %v435
    %v437 = vmul.f32 1.0, %v436
    %v438 = vtanh.pop %v431
    %v439 = vxor.u32 %v431, 2147483648
    %v440 = vmul.f32 %v439, 1.442695
    %v441 = vpow.pop %v440
    %v442 = vadd.f32 %v441, 1.0
    %v443 = vrcp.pop %v442
    %v444 = vmul.f32 1.0, %v443
    %446 = vrot.lane.b32.xlu0 %v126, 64
    %v447 = vpop.permute.xlu0 %446
    %v449 = vmul.f32 %v437, %v447
    %v450 = vmul.f32 %v437, %v438
    %452 = vrot.lane.b32.xlu0 %v450, 64
    %v453 = vpop.permute.xlu0 %452
    %v455 = vadd.f32 %v449, %v453
    %v456 = vtanh.pop %v455
    %v457 = vmul.f32 %v444, %v456
    %v458 = vld [vmem:[#allocation7 + $0x10] sm:$0xff]
    %v459 = vld [vmem:[#allocation7 + $0x18] sm:$0xff]
    %460 = vmatprep.subr.mxu0 0.0
    %461 = vmatpush1.msra.mxu0 0.0
    %462 = vmatprep.subr.mxu0 0.0
    %463 = vmatpush1.msra.mxu0 0.0
    %464 = vmatprep.subr.mxu0 0.0
    %465 = vmatpush1.msra.mxu0 0.0
    %466 = vmatprep.subr.mxu0 0.0
    %467 = vmatpush1.msra.mxu0 0.0
    %468 = vmatprep.subr.mxu0 0.0
    %469 = vmatpush1.msra.mxu0 0.0
    %470 = vmatprep.subr.mxu0 0.0
    %471 = vmatpush1.msra.mxu0 0.0
    %472 = vmatprep.subr.mxu0 0.0
    %473 = vmatpush1.msra.mxu0 0.0
    %474 = vmatprep.subr.mxu0 0.0
    %475 = vmatpush1.msra.mxu0 0.0
    %476 = vmatprep.subr.mxu0 %v160
    %477 = vmatpush1.msra.mxu0 %v159
    %478 = vmatprep.subr.mxu0 %v158
    %479 = vmatpush1.msra.mxu0 %v157
    %480 = vmatprep.subr.mxu0 %v156
    %481 = vmatpush1.msra.mxu0 %v155
    %482 = vmatprep.subr.mxu0 %v154
    %483 = vmatpush1.msra.mxu0 %v153
    %484 = vmatprep.subr.mxu0 %v152
    %485 = vmatpush1.msra.mxu0 %v151
    %486 = vmatprep.subr.mxu0 %v150
    %487 = vmatpush1.msra.mxu0 %v149
    %488 = vmatprep.subr.mxu0 %v148
    %489 = vmatpush1.msra.mxu0 %v147
    %490 = vmatprep.subr.mxu0 %v146
    %491 = vmatpush1.msra.mxu0 %v145
    %492 = vmatprep.subr.mxu0 0.0
    %493 = vmatpush2.msra.mxu0 0.0
    %494 = vmatprep.subr.mxu0 0.0
    %495 = vmatpush2.msra.mxu0 0.0
    %496 = vmatprep.subr.mxu0 0.0
    %497 = vmatpush2.msra.mxu0 0.0
    %498 = vmatprep.subr.mxu0 0.0
    %499 = vmatpush2.msra.mxu0 0.0
    %500 = vmatprep.subr.mxu0 0.0
    %501 = vmatpush2.msra.mxu0 0.0
    %502 = vmatprep.subr.mxu0 0.0
    %503 = vmatpush2.msra.mxu0 0.0
    %504 = vmatprep.subr.mxu0 0.0
    %505 = vmatpush2.msra.mxu0 0.0
    %506 = vmatprep.subr.mxu0 0.0
    %507 = vmatpush2.msra.mxu0 0.0
    %508 = vmatprep.subr.mxu0 0.0
    %509 = vmatpush2.msra.mxu0 0.0
    %510 = vmatprep.subr.mxu0 0.0
    %511 = vmatpush2.msra.mxu0 0.0
    %512 = vmatprep.subr.mxu0 0.0
    %513 = vmatpush2.msra.mxu0 0.0
    %514 = vmatprep.subr.mxu0 0.0
    %515 = vmatpush2.msra.mxu0 0.0
    %516 = vmatprep.subr.mxu0 0.0
    %517 = vmatpush2.msra.mxu0 0.0
    %518 = vmatprep.subr.mxu0 0.0
    %519 = vmatpush2.msra.mxu0 0.0
    %520 = vmatprep.subr.mxu0 0.0
    %521 = vmatpush2.msra.mxu0 0.0
    %522 = vmatprep.subr.mxu0 0.0
    %523 = vmatpush2.msra.mxu0 0.0
    %524 = vmatprep.mubr.f32.mxu0 0.0
    %525 = vmatmul.mubr.f32.gmra.mxu0 %v357
    %v526 = vpop.f32.mrf.mxu0
    %v527 = vadd.f32 0.0, %v526
    %v528 = vpop.f32.mrf.mxu0
    %v529 = vadd.f32 0.0, %v528
    %530 = vdwg.mxu0
    %v531 = vadd.f32 %v458, %v527
    %v532 = vadd.f32 %v459, %v529
    %v533 = vxor.u32 %v531, 2147483648
    %v534 = vmul.f32 %v533, 1.442695
    %v535 = vpow.pop %v534
    %v536 = vadd.f32 %v535, 1.0
    %v537 = vrcp.pop %v536
    %v538 = vmul.f32 1.0, %v537
    %v539 = vtanh.pop %v532
    %v540 = vxor.u32 %v532, 2147483648
    %v541 = vmul.f32 %v540, 1.442695
    %v542 = vpow.pop %v541
    %v543 = vadd.f32 %v542, 1.0
    %v544 = vrcp.pop %v543
    %v545 = vmul.f32 1.0, %v544
    %v546 = vmul.f32 %v538, %v261
    %v547 = vmul.f32 %v538, %v539
    %549 = vrot.lane.b32.xlu0 %v547, 64
    %v550 = vpop.permute.xlu0 %549
    %v552 = vadd.f32 %v546, %v550
    %v553 = vtanh.pop %v552
    %v554 = vmul.f32 %v545, %v553
    %556 = vrot.lane.b32.xlu0 %v457, 64
    %v557 = vpop.permute.xlu0 %556
    %v558 = vsel %vm161, %v557, 0
    %560 = vmatprep.subr.mxu0 0.0
    %561 = vmatpush1.msra.mxu0 0.0
    %562 = vmatprep.subr.mxu0 0.0
    %563 = vmatpush1.msra.mxu0 0.0
    %564 = vmatprep.subr.mxu0 0.0
    %565 = vmatpush1.msra.mxu0 0.0
    %566 = vmatprep.subr.mxu0 0.0
    %567 = vmatpush1.msra.mxu0 0.0
    %568 = vmatprep.subr.mxu0 0.0
    %569 = vmatpush1.msra.mxu0 0.0
    %570 = vmatprep.subr.mxu0 0.0
    %571 = vmatpush1.msra.mxu0 0.0
    %572 = vmatprep.subr.mxu0 0.0
    %573 = vmatpush1.msra.mxu0 0.0
    %574 = vmatprep.subr.mxu0 0.0
    %575 = vmatpush1.msra.mxu0 0.0
    %576 = vmatprep.subr.mxu0 %v144
    %577 = vmatpush1.msra.mxu0 %v143
    %578 = vmatprep.subr.mxu0 %v142
    %579 = vmatpush1.msra.mxu0 %v141
    %580 = vmatprep.subr.mxu0 %v140
    %581 = vmatpush1.msra.mxu0 %v139
    %582 = vmatprep.subr.mxu0 %v138
    %583 = vmatpush1.msra.mxu0 %v137
    %584 = vmatprep.subr.mxu0 %v136
    %585 = vmatpush1.msra.mxu0 %v135
    %586 = vmatprep.subr.mxu0 %v134
    %587 = vmatpush1.msra.mxu0 %v133
    %588 = vmatprep.subr.mxu0 %v132
    %589 = vmatpush1.msra.mxu0 %v131
    %590 = vmatprep.subr.mxu0 %v130
    %591 = vmatpush1.msra.mxu0 %v129
    %592 = vmatprep.subr.mxu0 0.0
    %593 = vmatpush2.msra.mxu0 0.0
    %594 = vmatprep.subr.mxu0 0.0
    %595 = vmatpush2.msra.mxu0 0.0
    %596 = vmatprep.subr.mxu0 0.0
    %597 = vmatpush2.msra.mxu0 0.0
    %598 = vmatprep.subr.mxu0 0.0
    %599 = vmatpush2.msra.mxu0 0.0
    %600 = vmatprep.subr.mxu0 0.0
    %601 = vmatpush2.msra.mxu0 0.0
    %602 = vmatprep.subr.mxu0 0.0
    %603 = vmatpush2.msra.mxu0 0.0
    %604 = vmatprep.subr.mxu0 0.0
    %605 = vmatpush2.msra.mxu0 0.0
    %606 = vmatprep.subr.mxu0 0.0
    %607 = vmatpush2.msra.mxu0 0.0
    %608 = vmatprep.subr.mxu0 0.0
    %609 = vmatpush2.msra.mxu0 0.0
    %610 = vmatprep.subr.mxu0 0.0
    %611 = vmatpush2.msra.mxu0 0.0
    %612 = vmatprep.subr.mxu0 0.0
    %613 = vmatpush2.msra.mxu0 0.0
    %614 = vmatprep.subr.mxu0 0.0
    %615 = vmatpush2.msra.mxu0 0.0
    %616 = vmatprep.subr.mxu0 0.0
    %617 = vmatpush2.msra.mxu0 0.0
    %618 = vmatprep.subr.mxu0 0.0
    %619 = vmatpush2.msra.mxu0 0.0
    %620 = vmatprep.subr.mxu0 0.0
    %621 = vmatpush2.msra.mxu0 0.0
    %622 = vmatprep.subr.mxu0 0.0
    %623 = vmatpush2.msra.mxu0 0.0
    %624 = vmatprep.mubr.f32.mxu0 0.0
    %625 = vmatmul.mubr.f32.gmra.mxu0 %v558
    %v626 = vpop.f32.mrf.mxu0
    %v627 = vadd.f32 %v116, %v626
    %v628 = vpop.f32.mrf.mxu0
    %v629 = vadd.f32 %v120, %v628
    %630 = vdwg.mxu0
    %632 = vrot.lane.b32.xlu0 %v554, 64
    %v633 = vpop.permute.xlu0 %632
    %v634 = vsel %vm161, %v633, 0
    %636 = vmatprep.subr.mxu0 0.0
    %637 = vmatpush1.msra.mxu0 0.0
    %638 = vmatprep.subr.mxu0 0.0
    %639 = vmatpush1.msra.mxu0 0.0
    %640 = vmatprep.subr.mxu0 0.0
    %641 = vmatpush1.msra.mxu0 0.0
    %642 = vmatprep.subr.mxu0 0.0
    %643 = vmatpush1.msra.mxu0 0.0
    %644 = vmatprep.subr.mxu0 0.0
    %645 = vmatpush1.msra.mxu0 0.0
    %646 = vmatprep.subr.mxu0 0.0
    %647 = vmatpush1.msra.mxu0 0.0
    %648 = vmatprep.subr.mxu0 0.0
    %649 = vmatpush1.msra.mxu0 0.0
    %650 = vmatprep.subr.mxu0 0.0
    %651 = vmatpush1.msra.mxu0 0.0
    %652 = vmatprep.subr.mxu0 %v353
    %653 = vmatpush1.msra.mxu0 %v352
    %654 = vmatprep.subr.mxu0 %v351
    %655 = vmatpush1.msra.mxu0 %v350
    %656 = vmatprep.subr.mxu0 %v349
    %657 = vmatpush1.msra.mxu0 %v348
    %658 = vmatprep.subr.mxu0 %v347
    %659 = vmatpush1.msra.mxu0 %v346
    %660 = vmatprep.subr.mxu0 %v345
    %661 = vmatpush1.msra.mxu0 %v344
    %662 = vmatprep.subr.mxu0 %v343
    %663 = vmatpush1.msra.mxu0 %v342
    %664 = vmatprep.subr.mxu0 %v341
    %665 = vmatpush1.msra.mxu0 %v340
    %666 = vmatprep.subr.mxu0 %v339
    %667 = vmatpush1.msra.mxu0 %v338
    %668 = vmatprep.subr.mxu0 0.0
    %669 = vmatpush2.msra.mxu0 0.0
    %670 = vmatprep.subr.mxu0 0.0
    %671 = vmatpush2.msra.mxu0 0.0
    %672 = vmatprep.subr.mxu0 0.0
    %673 = vmatpush2.msra.mxu0 0.0
    %674 = vmatprep.subr.mxu0 0.0
    %675 = vmatpush2.msra.mxu0 0.0
    %676 = vmatprep.subr.mxu0 0.0
    %677 = vmatpush2.msra.mxu0 0.0
    %678 = vmatprep.subr.mxu0 0.0
    %679 = vmatpush2.msra.mxu0 0.0
    %680 = vmatprep.subr.mxu0 0.0
    %681 = vmatpush2.msra.mxu0 0.0
    %682 = vmatprep.subr.mxu0 0.0
    %683 = vmatpush2.msra.mxu0 0.0
    %684 = vmatprep.subr.mxu0 0.0
    %685 = vmatpush2.msra.mxu0 0.0
    %686 = vmatprep.subr.mxu0 0.0
    %687 = vmatpush2.msra.mxu0 0.0
    %688 = vmatprep.subr.mxu0 0.0
    %689 = vmatpush2.msra.mxu0 0.0
    %690 = vmatprep.subr.mxu0 0.0
    %691 = vmatpush2.msra.mxu0 0.0
    %692 = vmatprep.subr.mxu0 0.0
    %693 = vmatpush2.msra.mxu0 0.0
    %694 = vmatprep.subr.mxu0 0.0
    %695 = vmatpush2.msra.mxu0 0.0
    %696 = vmatprep.subr.mxu0 0.0
    %697 = vmatpush2.msra.mxu0 0.0
    %698 = vmatprep.subr.mxu0 0.0
    %699 = vmatpush2.msra.mxu0 0.0
    %700 = vmatprep.mubr.f32.mxu0 0.0
    %701 = vmatmul.mubr.f32.gmra.mxu0 %v634
    %v702 = vpop.f32.mrf.mxu0
    %v703 = vadd.f32 0.0, %v702
    %v704 = vpop.f32.mrf.mxu0
    %v705 = vadd.f32 0.0, %v704
    %706 = vdwg.mxu0
    %v707 = vadd.f32 %v627, %v703
    %v708 = vadd.f32 %v629, %v705
    %v709 = vxor.u32 %v707, 2147483648
    %v710 = vmul.f32 %v709, 1.442695
    %v711 = vpow.pop %v710
    %v712 = vadd.f32 %v711, 1.0
    %v713 = vrcp.pop %v712
    %v714 = vmul.f32 1.0, %v713
    %v715 = vtanh.pop %v708
    %v716 = vxor.u32 %v708, 2147483648
    %v717 = vmul.f32 %v716, 1.442695
    %v718 = vpow.pop %v717
    %v719 = vadd.f32 %v718, 1.0
    %v720 = vrcp.pop %v719
    %v721 = vmul.f32 1.0, %v720
    %v722 = vmul.f32 %v714, %v455
    %v723 = vmul.f32 %v714, %v715
    %725 = vrot.lane.b32.xlu0 %v723, 64
    %v726 = vpop.permute.xlu0 %725
    %v728 = vadd.f32 %v722, %v726
    %v729 = vtanh.pop %v728
    %v730 = vmul.f32 %v721, %v729
    %v731 = vld [vmem:[#allocation7 + $0x20] sm:$0xff]
    %v732 = vld [vmem:[#allocation7 + $0x28] sm:$0xff]
    %733 = vmatprep.subr.mxu0 0.0
    %734 = vmatpush1.msra.mxu0 0.0
    %735 = vmatprep.subr.mxu0 0.0
    %736 = vmatpush1.msra.mxu0 0.0
    %737 = vmatprep.subr.mxu0 0.0
    %738 = vmatpush1.msra.mxu0 0.0
    %739 = vmatprep.subr.mxu0 0.0
    %740 = vmatpush1.msra.mxu0 0.0
    %741 = vmatprep.subr.mxu0 0.0
    %742 = vmatpush1.msra.mxu0 0.0
    %743 = vmatprep.subr.mxu0 0.0
    %744 = vmatpush1.msra.mxu0 0.0
    %745 = vmatprep.subr.mxu0 0.0
    %746 = vmatpush1.msra.mxu0 0.0
    %747 = vmatprep.subr.mxu0 0.0
    %748 = vmatpush1.msra.mxu0 0.0
    %749 = vmatprep.subr.mxu0 %v160
    %750 = vmatpush1.msra.mxu0 %v159
    %751 = vmatprep.subr.mxu0 %v158
    %752 = vmatpush1.msra.mxu0 %v157
    %753 = vmatprep.subr.mxu0 %v156
    %754 = vmatpush1.msra.mxu0 %v155
    %755 = vmatprep.subr.mxu0 %v154
    %756 = vmatpush1.msra.mxu0 %v153
    %757 = vmatprep.subr.mxu0 %v152
    %758 = vmatpush1.msra.mxu0 %v151
    %759 = vmatprep.subr.mxu0 %v150
    %760 = vmatpush1.msra.mxu0 %v149
    %761 = vmatprep.subr.mxu0 %v148
    %762 = vmatpush1.msra.mxu0 %v147
    %763 = vmatprep.subr.mxu0 %v146
    %764 = vmatpush1.msra.mxu0 %v145
    %765 = vmatprep.subr.mxu0 0.0
    %766 = vmatpush2.msra.mxu0 0.0
    %767 = vmatprep.subr.mxu0 0.0
    %768 = vmatpush2.msra.mxu0 0.0
    %769 = vmatprep.subr.mxu0 0.0
    %770 = vmatpush2.msra.mxu0 0.0
    %771 = vmatprep.subr.mxu0 0.0
    %772 = vmatpush2.msra.mxu0 0.0
    %773 = vmatprep.subr.mxu0 0.0
    %774 = vmatpush2.msra.mxu0 0.0
    %775 = vmatprep.subr.mxu0 0.0
    %776 = vmatpush2.msra.mxu0 0.0
    %777 = vmatprep.subr.mxu0 0.0
    %778 = vmatpush2.msra.mxu0 0.0
    %779 = vmatprep.subr.mxu0 0.0
    %780 = vmatpush2.msra.mxu0 0.0
    %781 = vmatprep.subr.mxu0 0.0
    %782 = vmatpush2.msra.mxu0 0.0
    %783 = vmatprep.subr.mxu0 0.0
    %784 = vmatpush2.msra.mxu0 0.0
    %785 = vmatprep.subr.mxu0 0.0
    %786 = vmatpush2.msra.mxu0 0.0
    %787 = vmatprep.subr.mxu0 0.0
    %788 = vmatpush2.msra.mxu0 0.0
    %789 = vmatprep.subr.mxu0 0.0
    %790 = vmatpush2.msra.mxu0 0.0
    %791 = vmatprep.subr.mxu0 0.0
    %792 = vmatpush2.msra.mxu0 0.0
    %793 = vmatprep.subr.mxu0 0.0
    %794 = vmatpush2.msra.mxu0 0.0
    %795 = vmatprep.subr.mxu0 0.0
    %796 = vmatpush2.msra.mxu0 0.0
    %797 = vmatprep.mubr.f32.mxu0 0.0
    %798 = vmatmul.mubr.f32.gmra.mxu0 %v634
    %v799 = vpop.f32.mrf.mxu0
    %v800 = vadd.f32 0.0, %v799
    %v801 = vpop.f32.mrf.mxu0
    %v802 = vadd.f32 0.0, %v801
    %803 = vdwg.mxu0
    %v804 = vadd.f32 %v731, %v800
    %v805 = vadd.f32 %v732, %v802
    %v806 = vxor.u32 %v804, 2147483648
    %v807 = vmul.f32 %v806, 1.442695
    %v808 = vpow.pop %v807
    %v809 = vadd.f32 %v808, 1.0
    %v810 = vrcp.pop %v809
    %v811 = vmul.f32 1.0, %v810
    %v812 = vtanh.pop %v805
    %v813 = vxor.u32 %v805, 2147483648
    %v814 = vmul.f32 %v813, 1.442695
    %v815 = vpow.pop %v814
    %v816 = vadd.f32 %v815, 1.0
    %v817 = vrcp.pop %v816
    %v818 = vmul.f32 1.0, %v817
    %v819 = vmul.f32 %v811, %v552
    %v820 = vmul.f32 %v811, %v812
    %822 = vrot.lane.b32.xlu0 %v820, 64
    %v823 = vpop.permute.xlu0 %822
    %v825 = vadd.f32 %v819, %v823
    %v826 = vtanh.pop %v825
    %v827 = vmul.f32 %v818, %v826
    %829 = vrot.lane.b32.xlu0 %v730, 64
    %v830 = vpop.permute.xlu0 %829
    %v831 = vsel %vm161, %v830, 0
    %833 = vmatprep.subr.mxu0 0.0
    %834 = vmatpush1.msra.mxu0 0.0
    %835 = vmatprep.subr.mxu0 0.0
    %836 = vmatpush1.msra.mxu0 0.0
    %837 = vmatprep.subr.mxu0 0.0
    %838 = vmatpush1.msra.mxu0 0.0
    %839 = vmatprep.subr.mxu0 0.0
    %840 = vmatpush1.msra.mxu0 0.0
    %841 = vmatprep.subr.mxu0 0.0
    %842 = vmatpush1.msra.mxu0 0.0
    %843 = vmatprep.subr.mxu0 0.0
    %844 = vmatpush1.msra.mxu0 0.0
    %845 = vmatprep.subr.mxu0 0.0
    %846 = vmatpush1.msra.mxu0 0.0
    %847 = vmatprep.subr.mxu0 0.0
    %848 = vmatpush1.msra.mxu0 0.0
    %849 = vmatprep.subr.mxu0 %v144
    %850 = vmatpush1.msra.mxu0 %v143
    %851 = vmatprep.subr.mxu0 %v142
    %852 = vmatpush1.msra.mxu0 %v141
    %853 = vmatprep.subr.mxu0 %v140
    %854 = vmatpush1.msra.mxu0 %v139
    %855 = vmatprep.subr.mxu0 %v138
    %856 = vmatpush1.msra.mxu0 %v137
    %857 = vmatprep.subr.mxu0 %v136
    %858 = vmatpush1.msra.mxu0 %v135
    %859 = vmatprep.subr.mxu0 %v134
    %860 = vmatpush1.msra.mxu0 %v133
    %861 = vmatprep.subr.mxu0 %v132
    %862 = vmatpush1.msra.mxu0 %v131
    %863 = vmatprep.subr.mxu0 %v130
    %864 = vmatpush1.msra.mxu0 %v129
    %865 = vmatprep.subr.mxu0 0.0
    %866 = vmatpush2.msra.mxu0 0.0
    %867 = vmatprep.subr.mxu0 0.0
    %868 = vmatpush2.msra.mxu0 0.0
    %869 = vmatprep.subr.mxu0 0.0
    %870 = vmatpush2.msra.mxu0 0.0
    %871 = vmatprep.subr.mxu0 0.0
    %872 = vmatpush2.msra.mxu0 0.0
    %873 = vmatprep.subr.mxu0 0.0
    %874 = vmatpush2.msra.mxu0 0.0
    %875 = vmatprep.subr.mxu0 0.0
    %876 = vmatpush2.msra.mxu0 0.0
    %877 = vmatprep.subr.mxu0 0.0
    %878 = vmatpush2.msra.mxu0 0.0
    %879 = vmatprep.subr.mxu0 0.0
    %880 = vmatpush2.msra.mxu0 0.0
    %881 = vmatprep.subr.mxu0 0.0
    %882 = vmatpush2.msra.mxu0 0.0
    %883 = vmatprep.subr.mxu0 0.0
    %884 = vmatpush2.msra.mxu0 0.0
    %885 = vmatprep.subr.mxu0 0.0
    %886 = vmatpush2.msra.mxu0 0.0
    %887 = vmatprep.subr.mxu0 0.0
    %888 = vmatpush2.msra.mxu0 0.0
    %889 = vmatprep.subr.mxu0 0.0
    %890 = vmatpush2.msra.mxu0 0.0
    %891 = vmatprep.subr.mxu0 0.0
    %892 = vmatpush2.msra.mxu0 0.0
    %893 = vmatprep.subr.mxu0 0.0
    %894 = vmatpush2.msra.mxu0 0.0
    %895 = vmatprep.subr.mxu0 0.0
    %896 = vmatpush2.msra.mxu0 0.0
    %897 = vmatprep.mubr.f32.mxu0 0.0
    %898 = vmatmul.mubr.f32.gmra.mxu0 %v831
    %v899 = vpop.f32.mrf.mxu0
    %v900 = vadd.f32 %v116, %v899
    %v901 = vpop.f32.mrf.mxu0
    %v902 = vadd.f32 %v120, %v901
    %903 = vdwg.mxu0
    %905 = vrot.lane.b32.xlu0 %v827, 64
    %v906 = vpop.permute.xlu0 %905
    %v907 = vsel %vm161, %v906, 0
    %909 = vmatprep.subr.mxu0 0.0
    %910 = vmatpush1.msra.mxu0 0.0
    %911 = vmatprep.subr.mxu0 0.0
    %912 = vmatpush1.msra.mxu0 0.0
    %913 = vmatprep.subr.mxu0 0.0
    %914 = vmatpush1.msra.mxu0 0.0
    %915 = vmatprep.subr.mxu0 0.0
    %916 = vmatpush1.msra.mxu0 0.0
    %917 = vmatprep.subr.mxu0 0.0
    %918 = vmatpush1.msra.mxu0 0.0
    %919 = vmatprep.subr.mxu0 0.0
    %920 = vmatpush1.msra.mxu0 0.0
    %921 = vmatprep.subr.mxu0 0.0
    %922 = vmatpush1.msra.mxu0 0.0
    %923 = vmatprep.subr.mxu0 0.0
    %924 = vmatpush1.msra.mxu0 0.0
    %925 = vmatprep.subr.mxu0 %v353
    %926 = vmatpush1.msra.mxu0 %v352
    %927 = vmatprep.subr.mxu0 %v351
    %928 = vmatpush1.msra.mxu0 %v350
    %929 = vmatprep.subr.mxu0 %v349
    %930 = vmatpush1.msra.mxu0 %v348
    %931 = vmatprep.subr.mxu0 %v347
    %932 = vmatpush1.msra.mxu0 %v346
    %933 = vmatprep.subr.mxu0 %v345
    %934 = vmatpush1.msra.mxu0 %v344
    %935 = vmatprep.subr.mxu0 %v343
    %936 = vmatpush1.msra.mxu0 %v342
    %937 = vmatprep.subr.mxu0 %v341
    %938 = vmatpush1.msra.mxu0 %v340
    %939 = vmatprep.subr.mxu0 %v339
    %940 = vmatpush1.msra.mxu0 %v338
    %941 = vmatprep.subr.mxu0 0.0
    %942 = vmatpush2.msra.mxu0 0.0
    %943 = vmatprep.subr.mxu0 0.0
    %944 = vmatpush2.msra.mxu0 0.0
    %945 = vmatprep.subr.mxu0 0.0
    %946 = vmatpush2.msra.mxu0 0.0
    %947 = vmatprep.subr.mxu0 0.0
    %948 = vmatpush2.msra.mxu0 0.0
    %949 = vmatprep.subr.mxu0 0.0
    %950 = vmatpush2.msra.mxu0 0.0
    %951 = vmatprep.subr.mxu0 0.0
    %952 = vmatpush2.msra.mxu0 0.0
    %953 = vmatprep.subr.mxu0 0.0
    %954 = vmatpush2.msra.mxu0 0.0
    %955 = vmatprep.subr.mxu0 0.0
    %956 = vmatpush2.msra.mxu0 0.0
    %957 = vmatprep.subr.mxu0 0.0
    %958 = vmatpush2.msra.mxu0 0.0
    %959 = vmatprep.subr.mxu0 0.0
    %960 = vmatpush2.msra.mxu0 0.0
    %961 = vmatprep.subr.mxu0 0.0
    %962 = vmatpush2.msra.mxu0 0.0
    %963 = vmatprep.subr.mxu0 0.0
    %964 = vmatpush2.msra.mxu0 0.0
    %965 = vmatprep.subr.mxu0 0.0
    %966 = vmatpush2.msra.mxu0 0.0
    %967 = vmatprep.subr.mxu0 0.0
    %968 = vmatpush2.msra.mxu0 0.0
    %969 = vmatprep.subr.mxu0 0.0
    %970 = vmatpush2.msra.mxu0 0.0
    %971 = vmatprep.subr.mxu0 0.0
    %972 = vmatpush2.msra.mxu0 0.0
    %973 = vmatprep.mubr.f32.mxu0 0.0
    %974 = vmatmul.mubr.f32.gmra.mxu0 %v907
    %v975 = vpop.f32.mrf.mxu0
    %v976 = vadd.f32 0.0, %v975
    %v977 = vpop.f32.mrf.mxu0
    %v978 = vadd.f32 0.0, %v977
    %979 = vdwg.mxu0
    %v980 = vadd.f32 %v900, %v976
    %v981 = vadd.f32 %v902, %v978
    %v982 = vxor.u32 %v980, 2147483648
    %v983 = vmul.f32 %v982, 1.442695
    %v984 = vpow.pop %v983
    %v985 = vadd.f32 %v984, 1.0
    %v986 = vrcp.pop %v985
    %v987 = vmul.f32 1.0, %v986
    %v988 = vtanh.pop %v981
    %v989 = vxor.u32 %v981, 2147483648
    %v990 = vmul.f32 %v989, 1.442695
    %v991 = vpow.pop %v990
    %v992 = vadd.f32 %v991, 1.0
    %v993 = vrcp.pop %v992
    %v994 = vmul.f32 1.0, %v993
    %v995 = vmul.f32 %v987, %v728
    %v996 = vmul.f32 %v987, %v988
    %998 = vrot.lane.b32.xlu0 %v996, 64
    %v999 = vpop.permute.xlu0 %998
    %v1001 = vadd.f32 %v995, %v999
    %v1002 = vtanh.pop %v1001
    %v1003 = vmul.f32 %v994, %v1002
    %v1004 = vld [vmem:[#allocation7 + $0x30] sm:$0xff]
    %v1005 = vld [vmem:[#allocation7 + $0x38] sm:$0xff]
    %1006 = vmatprep.subr.mxu0 0.0
    %1007 = vmatpush1.msra.mxu0 0.0
    %1008 = vmatprep.subr.mxu0 0.0
    %1009 = vmatpush1.msra.mxu0 0.0
    %1010 = vmatprep.subr.mxu0 0.0
    %1011 = vmatpush1.msra.mxu0 0.0
    %1012 = vmatprep.subr.mxu0 0.0
    %1013 = vmatpush1.msra.mxu0 0.0
    %1014 = vmatprep.subr.mxu0 0.0
    %1015 = vmatpush1.msra.mxu0 0.0
    %1016 = vmatprep.subr.mxu0 0.0
    %1017 = vmatpush1.msra.mxu0 0.0
    %1018 = vmatprep.subr.mxu0 0.0
    %1019 = vmatpush1.msra.mxu0 0.0
    %1020 = vmatprep.subr.mxu0 0.0
    %1021 = vmatpush1.msra.mxu0 0.0
    %1022 = vmatprep.subr.mxu0 %v160
    %1023 = vmatpush1.msra.mxu0 %v159
    %1024 = vmatprep.subr.mxu0 %v158
    %1025 = vmatpush1.msra.mxu0 %v157
    %1026 = vmatprep.subr.mxu0 %v156
    %1027 = vmatpush1.msra.mxu0 %v155
    %1028 = vmatprep.subr.mxu0 %v154
    %1029 = vmatpush1.msra.mxu0 %v153
    %1030 = vmatprep.subr.mxu0 %v152
    %1031 = vmatpush1.msra.mxu0 %v151
    %1032 = vmatprep.subr.mxu0 %v150
    %1033 = vmatpush1.msra.mxu0 %v149
    %1034 = vmatprep.subr.mxu0 %v148
    %1035 = vmatpush1.msra.mxu0 %v147
    %1036 = vmatprep.subr.mxu0 %v146
    %1037 = vmatpush1.msra.mxu0 %v145
    %1038 = vmatprep.subr.mxu0 0.0
    %1039 = vmatpush2.msra.mxu0 0.0
    %1040 = vmatprep.subr.mxu0 0.0
    %1041 = vmatpush2.msra.mxu0 0.0
    %1042 = vmatprep.subr.mxu0 0.0
    %1043 = vmatpush2.msra.mxu0 0.0
    %1044 = vmatprep.subr.mxu0 0.0
    %1045 = vmatpush2.msra.mxu0 0.0
    %1046 = vmatprep.subr.mxu0 0.0
    %1047 = vmatpush2.msra.mxu0 0.0
    %1048 = vmatprep.subr.mxu0 0.0
    %1049 = vmatpush2.msra.mxu0 0.0
    %1050 = vmatprep.subr.mxu0 0.0
    %1051 = vmatpush2.msra.mxu0 0.0
    %1052 = vmatprep.subr.mxu0 0.0
    %1053 = vmatpush2.msra.mxu0 0.0
    %1054 = vmatprep.subr.mxu0 0.0
    %1055 = vmatpush2.msra.mxu0 0.0
    %1056 = vmatprep.subr.mxu0 0.0
    %1057 = vmatpush2.msra.mxu0 0.0
    %1058 = vmatprep.subr.mxu0 0.0
    %1059 = vmatpush2.msra.mxu0 0.0
    %1060 = vmatprep.subr.mxu0 0.0
    %1061 = vmatpush2.msra.mxu0 0.0
    %1062 = vmatprep.subr.mxu0 0.0
    %1063 = vmatpush2.msra.mxu0 0.0
    %1064 = vmatprep.subr.mxu0 0.0
    %1065 = vmatpush2.msra.mxu0 0.0
    %1066 = vmatprep.subr.mxu0 0.0
    %1067 = vmatpush2.msra.mxu0 0.0
    %1068 = vmatprep.subr.mxu0 0.0
    %1069 = vmatpush2.msra.mxu0 0.0
    %1070 = vmatprep.mubr.f32.mxu0 0.0
    %1071 = vmatmul.mubr.f32.gmra.mxu0 %v907
    %v1072 = vpop.f32.mrf.mxu0
    %v1073 = vadd.f32 0.0, %v1072
    %v1074 = vpop.f32.mrf.mxu0
    %v1075 = vadd.f32 0.0, %v1074
    %1076 = vdwg.mxu0
    %v1077 = vadd.f32 %v1004, %v1073
    %v1078 = vadd.f32 %v1005, %v1075
    %v1079 = vxor.u32 %v1077, 2147483648
    %v1080 = vmul.f32 %v1079, 1.442695
    %v1081 = vpow.pop %v1080
    %v1082 = vadd.f32 %v1081, 1.0
    %v1083 = vrcp.pop %v1082
    %v1084 = vmul.f32 1.0, %v1083
    %v1085 = vtanh.pop %v1078
    %v1086 = vxor.u32 %v1078, 2147483648
    %v1087 = vmul.f32 %v1086, 1.442695
    %v1088 = vpow.pop %v1087
    %v1089 = vadd.f32 %v1088, 1.0
    %v1090 = vrcp.pop %v1089
    %v1091 = vmul.f32 1.0, %v1090
    %v1092 = vmul.f32 %v1084, %v825
    %v1093 = vmul.f32 %v1084, %v1085
    %1095 = vrot.lane.b32.xlu0 %v1093, 64
    %v1096 = vpop.permute.xlu0 %1095
    %v1098 = vadd.f32 %v1092, %v1096
    %v1099 = vtanh.pop %v1098
    %v1100 = vmul.f32 %v1091, %v1099
    %1102 = vrot.lane.b32.xlu0 %v1003, 64
    %v1103 = vpop.permute.xlu0 %1102
    %v1104 = vsel %vm161, %v1103, 0
    %1106 = vmatprep.subr.mxu0 0.0
    %1107 = vmatpush1.msra.mxu0 0.0
    %1108 = vmatprep.subr.mxu0 0.0
    %1109 = vmatpush1.msra.mxu0 0.0
    %1110 = vmatprep.subr.mxu0 0.0
    %1111 = vmatpush1.msra.mxu0 0.0
    %1112 = vmatprep.subr.mxu0 0.0
    %1113 = vmatpush1.msra.mxu0 0.0
    %1114 = vmatprep.subr.mxu0 0.0
    %1115 = vmatpush1.msra.mxu0 0.0
    %1116 = vmatprep.subr.mxu0 0.0
    %1117 = vmatpush1.msra.mxu0 0.0
    %1118 = vmatprep.subr.mxu0 0.0
    %1119 = vmatpush1.msra.mxu0 0.0
    %1120 = vmatprep.subr.mxu0 0.0
    %1121 = vmatpush1.msra.mxu0 0.0
    %1122 = vmatprep.subr.mxu0 %v144
    %1123 = vmatpush1.msra.mxu0 %v143
    %1124 = vmatprep.subr.mxu0 %v142
    %1125 = vmatpush1.msra.mxu0 %v141
    %1126 = vmatprep.subr.mxu0 %v140
    %1127 = vmatpush1.msra.mxu0 %v139
    %1128 = vmatprep.subr.mxu0 %v138
    %1129 = vmatpush1.msra.mxu0 %v137
    %1130 = vmatprep.subr.mxu0 %v136
    %1131 = vmatpush1.msra.mxu0 %v135
    %1132 = vmatprep.subr.mxu0 %v134
    %1133 = vmatpush1.msra.mxu0 %v133
    %1134 = vmatprep.subr.mxu0 %v132
    %1135 = vmatpush1.msra.mxu0 %v131
    %1136 = vmatprep.subr.mxu0 %v130
    %1137 = vmatpush1.msra.mxu0 %v129
    %1138 = vmatprep.subr.mxu0 0.0
    %1139 = vmatpush2.msra.mxu0 0.0
    %1140 = vmatprep.subr.mxu0 0.0
    %1141 = vmatpush2.msra.mxu0 0.0
    %1142 = vmatprep.subr.mxu0 0.0
    %1143 = vmatpush2.msra.mxu0 0.0
    %1144 = vmatprep.subr.mxu0 0.0
    %1145 = vmatpush2.msra.mxu0 0.0
    %1146 = vmatprep.subr.mxu0 0.0
    %1147 = vmatpush2.msra.mxu0 0.0
    %1148 = vmatprep.subr.mxu0 0.0
    %1149 = vmatpush2.msra.mxu0 0.0
    %1150 = vmatprep.subr.mxu0 0.0
    %1151 = vmatpush2.msra.mxu0 0.0
    %1152 = vmatprep.subr.mxu0 0.0
    %1153 = vmatpush2.msra.mxu0 0.0
    %1154 = vmatprep.subr.mxu0 0.0
    %1155 = vmatpush2.msra.mxu0 0.0
    %1156 = vmatprep.subr.mxu0 0.0
    %1157 = vmatpush2.msra.mxu0 0.0
    %1158 = vmatprep.subr.mxu0 0.0
    %1159 = vmatpush2.msra.mxu0 0.0
    %1160 = vmatprep.subr.mxu0 0.0
    %1161 = vmatpush2.msra.mxu0 0.0
    %1162 = vmatprep.subr.mxu0 0.0
    %1163 = vmatpush2.msra.mxu0 0.0
    %1164 = vmatprep.subr.mxu0 0.0
    %1165 = vmatpush2.msra.mxu0 0.0
    %1166 = vmatprep.subr.mxu0 0.0
    %1167 = vmatpush2.msra.mxu0 0.0
    %1168 = vmatprep.subr.mxu0 0.0
    %1169 = vmatpush2.msra.mxu0 0.0
    %1170 = vmatprep.mubr.f32.mxu0 0.0
    %1171 = vmatmul.mubr.f32.gmra.mxu0 %v1104
    %v1172 = vpop.f32.mrf.mxu0
    %v1173 = vadd.f32 %v116, %v1172
    %v1174 = vpop.f32.mrf.mxu0
    %v1175 = vadd.f32 %v120, %v1174
    %1176 = vdwg.mxu0
    %1178 = vrot.lane.b32.xlu0 %v1100, 64
    %v1179 = vpop.permute.xlu0 %1178
    %v1180 = vsel %vm161, %v1179, 0
    %1182 = vmatprep.subr.mxu0 0.0
    %1183 = vmatpush1.msra.mxu0 0.0
    %1184 = vmatprep.subr.mxu0 0.0
    %1185 = vmatpush1.msra.mxu0 0.0
    %1186 = vmatprep.subr.mxu0 0.0
    %1187 = vmatpush1.msra.mxu0 0.0
    %1188 = vmatprep.subr.mxu0 0.0
    %1189 = vmatpush1.msra.mxu0 0.0
    %1190 = vmatprep.subr.mxu0 0.0
    %1191 = vmatpush1.msra.mxu0 0.0
    %1192 = vmatprep.subr.mxu0 0.0
    %1193 = vmatpush1.msra.mxu0 0.0
    %1194 = vmatprep.subr.mxu0 0.0
    %1195 = vmatpush1.msra.mxu0 0.0
    %1196 = vmatprep.subr.mxu0 0.0
    %1197 = vmatpush1.msra.mxu0 0.0
    %1198 = vmatprep.subr.mxu0 %v353
    %1199 = vmatpush1.msra.mxu0 %v352
    %1200 = vmatprep.subr.mxu0 %v351
    %1201 = vmatpush1.msra.mxu0 %v350
    %1202 = vmatprep.subr.mxu0 %v349
    %1203 = vmatpush1.msra.mxu0 %v348
    %1204 = vmatprep.subr.mxu0 %v347
    %1205 = vmatpush1.msra.mxu0 %v346
    %1206 = vmatprep.subr.mxu0 %v345
    %1207 = vmatpush1.msra.mxu0 %v344
    %1208 = vmatprep.subr.mxu0 %v343
    %1209 = vmatpush1.msra.mxu0 %v342
    %1210 = vmatprep.subr.mxu0 %v341
    %1211 = vmatpush1.msra.mxu0 %v340
    %1212 = vmatprep.subr.mxu0 %v339
    %1213 = vmatpush1.msra.mxu0 %v338
    %1214 = vmatprep.subr.mxu0 0.0
    %1215 = vmatpush2.msra.mxu0 0.0
    %1216 = vmatprep.subr.mxu0 0.0
    %1217 = vmatpush2.msra.mxu0 0.0
    %1218 = vmatprep.subr.mxu0 0.0
    %1219 = vmatpush2.msra.mxu0 0.0
    %1220 = vmatprep.subr.mxu0 0.0
    %1221 = vmatpush2.msra.mxu0 0.0
    %1222 = vmatprep.subr.mxu0 0.0
    %1223 = vmatpush2.msra.mxu0 0.0
    %1224 = vmatprep.subr.mxu0 0.0
    %1225 = vmatpush2.msra.mxu0 0.0
    %1226 = vmatprep.subr.mxu0 0.0
    %1227 = vmatpush2.msra.mxu0 0.0
    %1228 = vmatprep.subr.mxu0 0.0
    %1229 = vmatpush2.msra.mxu0 0.0
    %1230 = vmatprep.subr.mxu0 0.0
    %1231 = vmatpush2.msra.mxu0 0.0
    %1232 = vmatprep.subr.mxu0 0.0
    %1233 = vmatpush2.msra.mxu0 0.0
    %1234 = vmatprep.subr.mxu0 0.0
    %1235 = vmatpush2.msra.mxu0 0.0
    %1236 = vmatprep.subr.mxu0 0.0
    %1237 = vmatpush2.msra.mxu0 0.0
    %1238 = vmatprep.subr.mxu0 0.0
    %1239 = vmatpush2.msra.mxu0 0.0
    %1240 = vmatprep.subr.mxu0 0.0
    %1241 = vmatpush2.msra.mxu0 0.0
    %1242 = vmatprep.subr.mxu0 0.0
    %1243 = vmatpush2.msra.mxu0 0.0
    %1244 = vmatprep.subr.mxu0 0.0
    %1245 = vmatpush2.msra.mxu0 0.0
    %1246 = vmatprep.mubr.f32.mxu0 0.0
    %1247 = vmatmul.mubr.f32.gmra.mxu0 %v1180
    %v1248 = vpop.f32.mrf.mxu0
    %v1249 = vadd.f32 0.0, %v1248
    %v1250 = vpop.f32.mrf.mxu0
    %v1251 = vadd.f32 0.0, %v1250
    %1252 = vdwg.mxu0
    %v1253 = vadd.f32 %v1173, %v1249
    %v1254 = vadd.f32 %v1175, %v1251
    %v1255 = vxor.u32 %v1253, 2147483648
    %v1256 = vmul.f32 %v1255, 1.442695
    %v1257 = vpow.pop %v1256
    %v1258 = vadd.f32 %v1257, 1.0
    %v1259 = vrcp.pop %v1258
    %v1260 = vmul.f32 1.0, %v1259
    %v1261 = vtanh.pop %v1254
    %v1262 = vxor.u32 %v1254, 2147483648
    %v1263 = vmul.f32 %v1262, 1.442695
    %v1264 = vpow.pop %v1263
    %v1265 = vadd.f32 %v1264, 1.0
    %v1266 = vrcp.pop %v1265
    %v1267 = vmul.f32 1.0, %v1266
    %v1268 = vmul.f32 %v1260, %v1001
    %v1269 = vmul.f32 %v1260, %v1261
    %1271 = vrot.lane.b32.xlu0 %v1269, 64
    %v1272 = vpop.permute.xlu0 %1271
    %v1274 = vadd.f32 %v1268, %v1272
    %v1275 = vtanh.pop %v1274
    %v1276 = vmul.f32 %v1267, %v1275
    %v1277 = vld [vmem:[#allocation7 + $0x40] sm:$0xff]
    %v1278 = vld [vmem:[#allocation7 + $0x48] sm:$0xff]
    %1279 = vmatprep.subr.mxu0 0.0
    %1280 = vmatpush1.msra.mxu0 0.0
    %1281 = vmatprep.subr.mxu0 0.0
    %1282 = vmatpush1.msra.mxu0 0.0
    %1283 = vmatprep.subr.mxu0 0.0
    %1284 = vmatpush1.msra.mxu0 0.0
    %1285 = vmatprep.subr.mxu0 0.0
    %1286 = vmatpush1.msra.mxu0 0.0
    %1287 = vmatprep.subr.mxu0 0.0
    %1288 = vmatpush1.msra.mxu0 0.0
    %1289 = vmatprep.subr.mxu0 0.0
    %1290 = vmatpush1.msra.mxu0 0.0
    %1291 = vmatprep.subr.mxu0 0.0
    %1292 = vmatpush1.msra.mxu0 0.0
    %1293 = vmatprep.subr.mxu0 0.0
    %1294 = vmatpush1.msra.mxu0 0.0
    %1295 = vmatprep.subr.mxu0 %v160
    %1296 = vmatpush1.msra.mxu0 %v159
    %1297 = vmatprep.subr.mxu0 %v158
    %1298 = vmatpush1.msra.mxu0 %v157
    %1299 = vmatprep.subr.mxu0 %v156
    %1300 = vmatpush1.msra.mxu0 %v155
    %1301 = vmatprep.subr.mxu0 %v154
    %1302 = vmatpush1.msra.mxu0 %v153
    %1303 = vmatprep.subr.mxu0 %v152
    %1304 = vmatpush1.msra.mxu0 %v151
    %1305 = vmatprep.subr.mxu0 %v150
    %1306 = vmatpush1.msra.mxu0 %v149
    %1307 = vmatprep.subr.mxu0 %v148
    %1308 = vmatpush1.msra.mxu0 %v147
    %1309 = vmatprep.subr.mxu0 %v146
    %1310 = vmatpush1.msra.mxu0 %v145
    %1311 = vmatprep.subr.mxu0 0.0
    %1312 = vmatpush2.msra.mxu0 0.0
    %1313 = vmatprep.subr.mxu0 0.0
    %1314 = vmatpush2.msra.mxu0 0.0
    %1315 = vmatprep.subr.mxu0 0.0
    %1316 = vmatpush2.msra.mxu0 0.0
    %1317 = vmatprep.subr.mxu0 0.0
    %1318 = vmatpush2.msra.mxu0 0.0
    %1319 = vmatprep.subr.mxu0 0.0
    %1320 = vmatpush2.msra.mxu0 0.0
    %1321 = vmatprep.subr.mxu0 0.0
    %1322 = vmatpush2.msra.mxu0 0.0
    %1323 = vmatprep.subr.mxu0 0.0
    %1324 = vmatpush2.msra.mxu0 0.0
    %1325 = vmatprep.subr.mxu0 0.0
    %1326 = vmatpush2.msra.mxu0 0.0
    %1327 = vmatprep.subr.mxu0 0.0
    %1328 = vmatpush2.msra.mxu0 0.0
    %1329 = vmatprep.subr.mxu0 0.0
    %1330 = vmatpush2.msra.mxu0 0.0
    %1331 = vmatprep.subr.mxu0 0.0
    %1332 = vmatpush2.msra.mxu0 0.0
    %1333 = vmatprep.subr.mxu0 0.0
    %1334 = vmatpush2.msra.mxu0 0.0
    %1335 = vmatprep.subr.mxu0 0.0
    %1336 = vmatpush2.msra.mxu0 0.0
    %1337 = vmatprep.subr.mxu0 0.0
    %1338 = vmatpush2.msra.mxu0 0.0
    %1339 = vmatprep.subr.mxu0 0.0
    %1340 = vmatpush2.msra.mxu0 0.0
    %1341 = vmatprep.subr.mxu0 0.0
    %1342 = vmatpush2.msra.mxu0 0.0
    %1343 = vmatprep.mubr.f32.mxu0 0.0
    %1344 = vmatmul.mubr.f32.gmra.mxu0 %v1180
    %v1345 = vpop.f32.mrf.mxu0
    %v1346 = vadd.f32 0.0, %v1345
    %v1347 = vpop.f32.mrf.mxu0
    %v1348 = vadd.f32 0.0, %v1347
    %1349 = vdwg.mxu0
    %v1350 = vadd.f32 %v1277, %v1346
    %v1351 = vadd.f32 %v1278, %v1348
    %v1352 = vxor.u32 %v1350, 2147483648
    %v1353 = vmul.f32 %v1352, 1.442695
    %v1354 = vpow.pop %v1353
    %v1355 = vadd.f32 %v1354, 1.0
    %v1356 = vrcp.pop %v1355
    %v1357 = vmul.f32 1.0, %v1356
    %v1358 = vtanh.pop %v1351
    %v1359 = vxor.u32 %v1351, 2147483648
    %v1360 = vmul.f32 %v1359, 1.442695
    %v1361 = vpow.pop %v1360
    %v1362 = vadd.f32 %v1361, 1.0
    %v1363 = vrcp.pop %v1362
    %v1364 = vmul.f32 1.0, %v1363
    %v1365 = vmul.f32 %v1357, %v1098
    %v1366 = vmul.f32 %v1357, %v1358
    %1368 = vrot.lane.b32.xlu0 %v1366, 64
    %v1369 = vpop.permute.xlu0 %1368
    %v1371 = vadd.f32 %v1365, %v1369
    %v1372 = vtanh.pop %v1371
    %v1373 = vmul.f32 %v1364, %v1372
    %1375 = vrot.lane.b32.xlu0 %v1276, 64
    %v1376 = vpop.permute.xlu0 %1375
    %v1377 = vsel %vm161, %v1376, 0
    %1379 = vmatprep.subr.mxu0 0.0
    %1380 = vmatpush1.msra.mxu0 0.0
    %1381 = vmatprep.subr.mxu0 0.0
    %1382 = vmatpush1.msra.mxu0 0.0
    %1383 = vmatprep.subr.mxu0 0.0
    %1384 = vmatpush1.msra.mxu0 0.0
    %1385 = vmatprep.subr.mxu0 0.0
    %1386 = vmatpush1.msra.mxu0 0.0
    %1387 = vmatprep.subr.mxu0 0.0
    %1388 = vmatpush1.msra.mxu0 0.0
    %1389 = vmatprep.subr.mxu0 0.0
    %1390 = vmatpush1.msra.mxu0 0.0
    %1391 = vmatprep.subr.mxu0 0.0
    %1392 = vmatpush1.msra.mxu0 0.0
    %1393 = vmatprep.subr.mxu0 0.0
    %1394 = vmatpush1.msra.mxu0 0.0
    %1395 = vmatprep.subr.mxu0 %v144
    %1396 = vmatpush1.msra.mxu0 %v143
    %1397 = vmatprep.subr.mxu0 %v142
    %1398 = vmatpush1.msra.mxu0 %v141
    %1399 = vmatprep.subr.mxu0 %v140
    %1400 = vmatpush1.msra.mxu0 %v139
    %1401 = vmatprep.subr.mxu0 %v138
    %1402 = vmatpush1.msra.mxu0 %v137
    %1403 = vmatprep.subr.mxu0 %v136
    %1404 = vmatpush1.msra.mxu0 %v135
    %1405 = vmatprep.subr.mxu0 %v134
    %1406 = vmatpush1.msra.mxu0 %v133
    %1407 = vmatprep.subr.mxu0 %v132
    %1408 = vmatpush1.msra.mxu0 %v131
    %1409 = vmatprep.subr.mxu0 %v130
    %1410 = vmatpush1.msra.mxu0 %v129
    %1411 = vmatprep.subr.mxu0 0.0
    %1412 = vmatpush2.msra.mxu0 0.0
    %1413 = vmatprep.subr.mxu0 0.0
    %1414 = vmatpush2.msra.mxu0 0.0
    %1415 = vmatprep.subr.mxu0 0.0
    %1416 = vmatpush2.msra.mxu0 0.0
    %1417 = vmatprep.subr.mxu0 0.0
    %1418 = vmatpush2.msra.mxu0 0.0
    %1419 = vmatprep.subr.mxu0 0.0
    %1420 = vmatpush2.msra.mxu0 0.0
    %1421 = vmatprep.subr.mxu0 0.0
    %1422 = vmatpush2.msra.mxu0 0.0
    %1423 = vmatprep.subr.mxu0 0.0
    %1424 = vmatpush2.msra.mxu0 0.0
    %1425 = vmatprep.subr.mxu0 0.0
    %1426 = vmatpush2.msra.mxu0 0.0
    %1427 = vmatprep.subr.mxu0 0.0
    %1428 = vmatpush2.msra.mxu0 0.0
    %1429 = vmatprep.subr.mxu0 0.0
    %1430 = vmatpush2.msra.mxu0 0.0
    %1431 = vmatprep.subr.mxu0 0.0
    %1432 = vmatpush2.msra.mxu0 0.0
    %1433 = vmatprep.subr.mxu0 0.0
    %1434 = vmatpush2.msra.mxu0 0.0
    %1435 = vmatprep.subr.mxu0 0.0
    %1436 = vmatpush2.msra.mxu0 0.0
    %1437 = vmatprep.subr.mxu0 0.0
    %1438 = vmatpush2.msra.mxu0 0.0
    %1439 = vmatprep.subr.mxu0 0.0
    %1440 = vmatpush2.msra.mxu0 0.0
    %1441 = vmatprep.subr.mxu0 0.0
    %1442 = vmatpush2.msra.mxu0 0.0
    %1443 = vmatprep.mubr.f32.mxu0 0.0
    %1444 = vmatmul.mubr.f32.gmra.mxu0 %v1377
    %v1445 = vpop.f32.mrf.mxu0
    %v1446 = vadd.f32 %v116, %v1445
    %v1447 = vpop.f32.mrf.mxu0
    %v1448 = vadd.f32 %v120, %v1447
    %1449 = vdwg.mxu0
    %1451 = vrot.lane.b32.xlu0 %v1373, 64
    %v1452 = vpop.permute.xlu0 %1451
    %v1453 = vsel %vm161, %v1452, 0
    %1455 = vmatprep.subr.mxu0 0.0
    %1456 = vmatpush1.msra.mxu0 0.0
    %1457 = vmatprep.subr.mxu0 0.0
    %1458 = vmatpush1.msra.mxu0 0.0
    %1459 = vmatprep.subr.mxu0 0.0
    %1460 = vmatpush1.msra.mxu0 0.0
    %1461 = vmatprep.subr.mxu0 0.0
    %1462 = vmatpush1.msra.mxu0 0.0
    %1463 = vmatprep.subr.mxu0 0.0
    %1464 = vmatpush1.msra.mxu0 0.0
    %1465 = vmatprep.subr.mxu0 0.0
    %1466 = vmatpush1.msra.mxu0 0.0
    %1467 = vmatprep.subr.mxu0 0.0
    %1468 = vmatpush1.msra.mxu0 0.0
    %1469 = vmatprep.subr.mxu0 0.0
    %1470 = vmatpush1.msra.mxu0 0.0
    %1471 = vmatprep.subr.mxu0 %v353
    %1472 = vmatpush1.msra.mxu0 %v352
    %1473 = vmatprep.subr.mxu0 %v351
    %1474 = vmatpush1.msra.mxu0 %v350
    %1475 = vmatprep.subr.mxu0 %v349
    %1476 = vmatpush1.msra.mxu0 %v348
    %1477 = vmatprep.subr.mxu0 %v347
    %1478 = vmatpush1.msra.mxu0 %v346
    %1479 = vmatprep.subr.mxu0 %v345
    %1480 = vmatpush1.msra.mxu0 %v344
    %1481 = vmatprep.subr.mxu0 %v343
    %1482 = vmatpush1.msra.mxu0 %v342
    %1483 = vmatprep.subr.mxu0 %v341
    %1484 = vmatpush1.msra.mxu0 %v340
    %1485 = vmatprep.subr.mxu0 %v339
    %1486 = vmatpush1.msra.mxu0 %v338
    %1487 = vmatprep.subr.mxu0 0.0
    %1488 = vmatpush2.msra.mxu0 0.0
    %1489 = vmatprep.subr.mxu0 0.0
    %1490 = vmatpush2.msra.mxu0 0.0
    %1491 = vmatprep.subr.mxu0 0.0
    %1492 = vmatpush2.msra.mxu0 0.0
    %1493 = vmatprep.subr.mxu0 0.0
    %1494 = vmatpush2.msra.mxu0 0.0
    %1495 = vmatprep.subr.mxu0 0.0
    %1496 = vmatpush2.msra.mxu0 0.0
    %1497 = vmatprep.subr.mxu0 0.0
    %1498 = vmatpush2.msra.mxu0 0.0
    %1499 = vmatprep.subr.mxu0 0.0
    %1500 = vmatpush2.msra.mxu0 0.0
    %1501 = vmatprep.subr.mxu0 0.0
    %1502 = vmatpush2.msra.mxu0 0.0
    %1503 = vmatprep.subr.mxu0 0.0
    %1504 = vmatpush2.msra.mxu0 0.0
    %1505 = vmatprep.subr.mxu0 0.0
    %1506 = vmatpush2.msra.mxu0 0.0
    %1507 = vmatprep.subr.mxu0 0.0
    %1508 = vmatpush2.msra.mxu0 0.0
    %1509 = vmatprep.subr.mxu0 0.0
    %1510 = vmatpush2.msra.mxu0 0.0
    %1511 = vmatprep.subr.mxu0 0.0
    %1512 = vmatpush2.msra.mxu0 0.0
    %1513 = vmatprep.subr.mxu0 0.0
    %1514 = vmatpush2.msra.mxu0 0.0
    %1515 = vmatprep.subr.mxu0 0.0
    %1516 = vmatpush2.msra.mxu0 0.0
    %1517 = vmatprep.subr.mxu0 0.0
    %1518 = vmatpush2.msra.mxu0 0.0
    %1519 = vmatprep.mubr.f32.mxu0 0.0
    %1520 = vmatmul.mubr.f32.gmra.mxu0 %v1453
    %v1521 = vpop.f32.mrf.mxu0
    %v1522 = vadd.f32 0.0, %v1521
    %v1523 = vpop.f32.mrf.mxu0
    %v1524 = vadd.f32 0.0, %v1523
    %1525 = vdwg.mxu0
    %v1526 = vadd.f32 %v1446, %v1522
    %v1527 = vadd.f32 %v1448, %v1524
    %v1528 = vxor.u32 %v1526, 2147483648
    %v1529 = vmul.f32 %v1528, 1.442695
    %v1530 = vpow.pop %v1529
    %v1531 = vadd.f32 %v1530, 1.0
    %v1532 = vrcp.pop %v1531
    %v1533 = vmul.f32 1.0, %v1532
    %v1534 = vtanh.pop %v1527
    %v1535 = vxor.u32 %v1527, 2147483648
    %v1536 = vmul.f32 %v1535, 1.442695
    %v1537 = vpow.pop %v1536
    %v1538 = vadd.f32 %v1537, 1.0
    %v1539 = vrcp.pop %v1538
    %v1540 = vmul.f32 1.0, %v1539
    %v1541 = vmul.f32 %v1533, %v1274
    %v1542 = vmul.f32 %v1533, %v1534
    %1544 = vrot.lane.b32.xlu0 %v1542, 64
    %v1545 = vpop.permute.xlu0 %1544
    %v1547 = vadd.f32 %v1541, %v1545
    %v1548 = vtanh.pop %v1547
    %v1549 = vmul.f32 %v1540, %v1548
    %v1550 = vld [vmem:[#allocation7 + $0x50] sm:$0xff]
    %v1551 = vld [vmem:[#allocation7 + $0x58] sm:$0xff]
    %1552 = vmatprep.subr.mxu0 0.0
    %1553 = vmatpush1.msra.mxu0 0.0
    %1554 = vmatprep.subr.mxu0 0.0
    %1555 = vmatpush1.msra.mxu0 0.0
    %1556 = vmatprep.subr.mxu0 0.0
    %1557 = vmatpush1.msra.mxu0 0.0
    %1558 = vmatprep.subr.mxu0 0.0
    %1559 = vmatpush1.msra.mxu0 0.0
    %1560 = vmatprep.subr.mxu0 0.0
    %1561 = vmatpush1.msra.mxu0 0.0
    %1562 = vmatprep.subr.mxu0 0.0
    %1563 = vmatpush1.msra.mxu0 0.0
    %1564 = vmatprep.subr.mxu0 0.0
    %1565 = vmatpush1.msra.mxu0 0.0
    %1566 = vmatprep.subr.mxu0 0.0
    %1567 = vmatpush1.msra.mxu0 0.0
    %1568 = vmatprep.subr.mxu0 %v160
    %1569 = vmatpush1.msra.mxu0 %v159
    %1570 = vmatprep.subr.mxu0 %v158
    %1571 = vmatpush1.msra.mxu0 %v157
    %1572 = vmatprep.subr.mxu0 %v156
    %1573 = vmatpush1.msra.mxu0 %v155
    %1574 = vmatprep.subr.mxu0 %v154
    %1575 = vmatpush1.msra.mxu0 %v153
    %1576 = vmatprep.subr.mxu0 %v152
    %1577 = vmatpush1.msra.mxu0 %v151
    %1578 = vmatprep.subr.mxu0 %v150
    %1579 = vmatpush1.msra.mxu0 %v149
    %1580 = vmatprep.subr.mxu0 %v148
    %1581 = vmatpush1.msra.mxu0 %v147
    %1582 = vmatprep.subr.mxu0 %v146
    %1583 = vmatpush1.msra.mxu0 %v145
    %1584 = vmatprep.subr.mxu0 0.0
    %1585 = vmatpush2.msra.mxu0 0.0
    %1586 = vmatprep.subr.mxu0 0.0
    %1587 = vmatpush2.msra.mxu0 0.0
    %1588 = vmatprep.subr.mxu0 0.0
    %1589 = vmatpush2.msra.mxu0 0.0
    %1590 = vmatprep.subr.mxu0 0.0
    %1591 = vmatpush2.msra.mxu0 0.0
    %1592 = vmatprep.subr.mxu0 0.0
    %1593 = vmatpush2.msra.mxu0 0.0
    %1594 = vmatprep.subr.mxu0 0.0
    %1595 = vmatpush2.msra.mxu0 0.0
    %1596 = vmatprep.subr.mxu0 0.0
    %1597 = vmatpush2.msra.mxu0 0.0
    %1598 = vmatprep.subr.mxu0 0.0
    %1599 = vmatpush2.msra.mxu0 0.0
    %1600 = vmatprep.subr.mxu0 0.0
    %1601 = vmatpush2.msra.mxu0 0.0
    %1602 = vmatprep.subr.mxu0 0.0
    %1603 = vmatpush2.msra.mxu0 0.0
    %1604 = vmatprep.subr.mxu0 0.0
    %1605 = vmatpush2.msra.mxu0 0.0
    %1606 = vmatprep.subr.mxu0 0.0
    %1607 = vmatpush2.msra.mxu0 0.0
    %1608 = vmatprep.subr.mxu0 0.0
    %1609 = vmatpush2.msra.mxu0 0.0
    %1610 = vmatprep.subr.mxu0 0.0
    %1611 = vmatpush2.msra.mxu0 0.0
    %1612 = vmatprep.subr.mxu0 0.0
    %1613 = vmatpush2.msra.mxu0 0.0
    %1614 = vmatprep.subr.mxu0 0.0
    %1615 = vmatpush2.msra.mxu0 0.0
    %1616 = vmatprep.mubr.f32.mxu0 0.0
    %1617 = vmatmul.mubr.f32.gmra.mxu0 %v1453
    %v1618 = vpop.f32.mrf.mxu0
    %v1619 = vadd.f32 0.0, %v1618
    %v1620 = vpop.f32.mrf.mxu0
    %v1621 = vadd.f32 0.0, %v1620
    %1622 = vdwg.mxu0
    %v1623 = vadd.f32 %v1550, %v1619
    %v1624 = vadd.f32 %v1551, %v1621
    %v1625 = vxor.u32 %v1623, 2147483648
    %v1626 = vmul.f32 %v1625, 1.442695
    %v1627 = vpow.pop %v1626
    %v1628 = vadd.f32 %v1627, 1.0
    %v1629 = vrcp.pop %v1628
    %v1630 = vmul.f32 1.0, %v1629
    %v1631 = vtanh.pop %v1624
    %v1632 = vxor.u32 %v1624, 2147483648
    %v1633 = vmul.f32 %v1632, 1.442695
    %v1634 = vpow.pop %v1633
    %v1635 = vadd.f32 %v1634, 1.0
    %v1636 = vrcp.pop %v1635
    %v1637 = vmul.f32 1.0, %v1636
    %v1638 = vmul.f32 %v1630, %v1371
    %v1639 = vmul.f32 %v1630, %v1631
    %1641 = vrot.lane.b32.xlu0 %v1639, 64
    %v1642 = vpop.permute.xlu0 %1641
    %v1644 = vadd.f32 %v1638, %v1642
    %v1645 = vtanh.pop %v1644
    %v1646 = vmul.f32 %v1637, %v1645
    %1648 = vrot.lane.b32.xlu0 %v1549, 64
    %v1649 = vpop.permute.xlu0 %1648
    %v1650 = vsel %vm161, %v1649, 0
    %1652 = vmatprep.subr.mxu0 0.0
    %1653 = vmatpush1.msra.mxu0 0.0
    %1654 = vmatprep.subr.mxu0 0.0
    %1655 = vmatpush1.msra.mxu0 0.0
    %1656 = vmatprep.subr.mxu0 0.0
    %1657 = vmatpush1.msra.mxu0 0.0
    %1658 = vmatprep.subr.mxu0 0.0
    %1659 = vmatpush1.msra.mxu0 0.0
    %1660 = vmatprep.subr.mxu0 0.0
    %1661 = vmatpush1.msra.mxu0 0.0
    %1662 = vmatprep.subr.mxu0 0.0
    %1663 = vmatpush1.msra.mxu0 0.0
    %1664 = vmatprep.subr.mxu0 0.0
    %1665 = vmatpush1.msra.mxu0 0.0
    %1666 = vmatprep.subr.mxu0 0.0
    %1667 = vmatpush1.msra.mxu0 0.0
    %1668 = vmatprep.subr.mxu0 %v144
    %1669 = vmatpush1.msra.mxu0 %v143
    %1670 = vmatprep.subr.mxu0 %v142
    %1671 = vmatpush1.msra.mxu0 %v141
    %1672 = vmatprep.subr.mxu0 %v140
    %1673 = vmatpush1.msra.mxu0 %v139
    %1674 = vmatprep.subr.mxu0 %v138
    %1675 = vmatpush1.msra.mxu0 %v137
    %1676 = vmatprep.subr.mxu0 %v136
    %1677 = vmatpush1.msra.mxu0 %v135
    %1678 = vmatprep.subr.mxu0 %v134
    %1679 = vmatpush1.msra.mxu0 %v133
    %1680 = vmatprep.subr.mxu0 %v132
    %1681 = vmatpush1.msra.mxu0 %v131
    %1682 = vmatprep.subr.mxu0 %v130
    %1683 = vmatpush1.msra.mxu0 %v129
    %1684 = vmatprep.subr.mxu0 0.0
    %1685 = vmatpush2.msra.mxu0 0.0
    %1686 = vmatprep.subr.mxu0 0.0
    %1687 = vmatpush2.msra.mxu0 0.0
    %1688 = vmatprep.subr.mxu0 0.0
    %1689 = vmatpush2.msra.mxu0 0.0
    %1690 = vmatprep.subr.mxu0 0.0
    %1691 = vmatpush2.msra.mxu0 0.0
    %1692 = vmatprep.subr.mxu0 0.0
    %1693 = vmatpush2.msra.mxu0 0.0
    %1694 = vmatprep.subr.mxu0 0.0
    %1695 = vmatpush2.msra.mxu0 0.0
    %1696 = vmatprep.subr.mxu0 0.0
    %1697 = vmatpush2.msra.mxu0 0.0
    %1698 = vmatprep.subr.mxu0 0.0
    %1699 = vmatpush2.msra.mxu0 0.0
    %1700 = vmatprep.subr.mxu0 0.0
    %1701 = vmatpush2.msra.mxu0 0.0
    %1702 = vmatprep.subr.mxu0 0.0
    %1703 = vmatpush2.msra.mxu0 0.0
    %1704 = vmatprep.subr.mxu0 0.0
    %1705 = vmatpush2.msra.mxu0 0.0
    %1706 = vmatprep.subr.mxu0 0.0
    %1707 = vmatpush2.msra.mxu0 0.0
    %1708 = vmatprep.subr.mxu0 0.0
    %1709 = vmatpush2.msra.mxu0 0.0
    %1710 = vmatprep.subr.mxu0 0.0
    %1711 = vmatpush2.msra.mxu0 0.0
    %1712 = vmatprep.subr.mxu0 0.0
    %1713 = vmatpush2.msra.mxu0 0.0
    %1714 = vmatprep.subr.mxu0 0.0
    %1715 = vmatpush2.msra.mxu0 0.0
    %1716 = vmatprep.mubr.f32.mxu0 0.0
    %1717 = vmatmul.mubr.f32.gmra.mxu0 %v1650
    %v1718 = vpop.f32.mrf.mxu0
    %v1719 = vadd.f32 %v116, %v1718
    %v1720 = vpop.f32.mrf.mxu0
    %v1721 = vadd.f32 %v120, %v1720
    %1722 = vdwg.mxu0
    %1724 = vrot.lane.b32.xlu0 %v1646, 64
    %v1725 = vpop.permute.xlu0 %1724
    %v1726 = vsel %vm161, %v1725, 0
    %1728 = vmatprep.subr.mxu0 0.0
    %1729 = vmatpush1.msra.mxu0 0.0
    %1730 = vmatprep.subr.mxu0 0.0
    %1731 = vmatpush1.msra.mxu0 0.0
    %1732 = vmatprep.subr.mxu0 0.0
    %1733 = vmatpush1.msra.mxu0 0.0
    %1734 = vmatprep.subr.mxu0 0.0
    %1735 = vmatpush1.msra.mxu0 0.0
    %1736 = vmatprep.subr.mxu0 0.0
    %1737 = vmatpush1.msra.mxu0 0.0
    %1738 = vmatprep.subr.mxu0 0.0
    %1739 = vmatpush1.msra.mxu0 0.0
    %1740 = vmatprep.subr.mxu0 0.0
    %1741 = vmatpush1.msra.mxu0 0.0
    %1742 = vmatprep.subr.mxu0 0.0
    %1743 = vmatpush1.msra.mxu0 0.0
    %1744 = vmatprep.subr.mxu0 %v353
    %1745 = vmatpush1.msra.mxu0 %v352
    %1746 = vmatprep.subr.mxu0 %v351
    %1747 = vmatpush1.msra.mxu0 %v350
    %1748 = vmatprep.subr.mxu0 %v349
    %1749 = vmatpush1.msra.mxu0 %v348
    %1750 = vmatprep.subr.mxu0 %v347
    %1751 = vmatpush1.msra.mxu0 %v346
    %1752 = vmatprep.subr.mxu0 %v345
    %1753 = vmatpush1.msra.mxu0 %v344
    %1754 = vmatprep.subr.mxu0 %v343
    %1755 = vmatpush1.msra.mxu0 %v342
    %1756 = vmatprep.subr.mxu0 %v341
    %1757 = vmatpush1.msra.mxu0 %v340
    %1758 = vmatprep.subr.mxu0 %v339
    %1759 = vmatpush1.msra.mxu0 %v338
    %1760 = vmatprep.subr.mxu0 0.0
    %1761 = vmatpush2.msra.mxu0 0.0
    %1762 = vmatprep.subr.mxu0 0.0
    %1763 = vmatpush2.msra.mxu0 0.0
    %1764 = vmatprep.subr.mxu0 0.0
    %1765 = vmatpush2.msra.mxu0 0.0
    %1766 = vmatprep.subr.mxu0 0.0
    %1767 = vmatpush2.msra.mxu0 0.0
    %1768 = vmatprep.subr.mxu0 0.0
    %1769 = vmatpush2.msra.mxu0 0.0
    %1770 = vmatprep.subr.mxu0 0.0
    %1771 = vmatpush2.msra.mxu0 0.0
    %1772 = vmatprep.subr.mxu0 0.0
    %1773 = vmatpush2.msra.mxu0 0.0
    %1774 = vmatprep.subr.mxu0 0.0
    %1775 = vmatpush2.msra.mxu0 0.0
    %1776 = vmatprep.subr.mxu0 0.0
    %1777 = vmatpush2.msra.mxu0 0.0
    %1778 = vmatprep.subr.mxu0 0.0
    %1779 = vmatpush2.msra.mxu0 0.0
    %1780 = vmatprep.subr.mxu0 0.0
    %1781 = vmatpush2.msra.mxu0 0.0
    %1782 = vmatprep.subr.mxu0 0.0
    %1783 = vmatpush2.msra.mxu0 0.0
    %1784 = vmatprep.subr.mxu0 0.0
    %1785 = vmatpush2.msra.mxu0 0.0
    %1786 = vmatprep.subr.mxu0 0.0
    %1787 = vmatpush2.msra.mxu0 0.0
    %1788 = vmatprep.subr.mxu0 0.0
    %1789 = vmatpush2.msra.mxu0 0.0
    %1790 = vmatprep.subr.mxu0 0.0
    %1791 = vmatpush2.msra.mxu0 0.0
    %1792 = vmatprep.mubr.f32.mxu0 0.0
    %1793 = vmatmul.mubr.f32.gmra.mxu0 %v1726
    %v1794 = vpop.f32.mrf.mxu0
    %v1795 = vadd.f32 0.0, %v1794
    %v1796 = vpop.f32.mrf.mxu0
    %v1797 = vadd.f32 0.0, %v1796
    %1798 = vdwg.mxu0
    %v1799 = vadd.f32 %v1719, %v1795
    %v1800 = vadd.f32 %v1721, %v1797
    %v1801 = vxor.u32 %v1799, 2147483648
    %v1802 = vmul.f32 %v1801, 1.442695
    %v1803 = vpow.pop %v1802
    %v1804 = vadd.f32 %v1803, 1.0
    %v1805 = vrcp.pop %v1804
    %v1806 = vmul.f32 1.0, %v1805
    %v1807 = vtanh.pop %v1800
    %v1808 = vxor.u32 %v1800, 2147483648
    %v1809 = vmul.f32 %v1808, 1.442695
    %v1810 = vpow.pop %v1809
    %v1811 = vadd.f32 %v1810, 1.0
    %v1812 = vrcp.pop %v1811
    %v1813 = vmul.f32 1.0, %v1812
    %v1814 = vmul.f32 %v1806, %v1547
    %v1815 = vmul.f32 %v1806, %v1807
    %1817 = vrot.lane.b32.xlu0 %v1815, 64
    %v1818 = vpop.permute.xlu0 %1817
    %v1820 = vadd.f32 %v1814, %v1818
    %v1821 = vtanh.pop %v1820
    %v1822 = vmul.f32 %v1813, %v1821
    %v1823 = vld [vmem:[#allocation7 + $0x60] sm:$0xff]
    %v1824 = vld [vmem:[#allocation7 + $0x68] sm:$0xff]
    %1825 = vmatprep.subr.mxu0 0.0
    %1826 = vmatpush1.msra.mxu0 0.0
    %1827 = vmatprep.subr.mxu0 0.0
    %1828 = vmatpush1.msra.mxu0 0.0
    %1829 = vmatprep.subr.mxu0 0.0
    %1830 = vmatpush1.msra.mxu0 0.0
    %1831 = vmatprep.subr.mxu0 0.0
    %1832 = vmatpush1.msra.mxu0 0.0
    %1833 = vmatprep.subr.mxu0 0.0
    %1834 = vmatpush1.msra.mxu0 0.0
    %1835 = vmatprep.subr.mxu0 0.0
    %1836 = vmatpush1.msra.mxu0 0.0
    %1837 = vmatprep.subr.mxu0 0.0
    %1838 = vmatpush1.msra.mxu0 0.0
    %1839 = vmatprep.subr.mxu0 0.0
    %1840 = vmatpush1.msra.mxu0 0.0
    %1841 = vmatprep.subr.mxu0 %v160
    %1842 = vmatpush1.msra.mxu0 %v159
    %1843 = vmatprep.subr.mxu0 %v158
    %1844 = vmatpush1.msra.mxu0 %v157
    %1845 = vmatprep.subr.mxu0 %v156
    %1846 = vmatpush1.msra.mxu0 %v155
    %1847 = vmatprep.subr.mxu0 %v154
    %1848 = vmatpush1.msra.mxu0 %v153
    %1849 = vmatprep.subr.mxu0 %v152
    %1850 = vmatpush1.msra.mxu0 %v151
    %1851 = vmatprep.subr.mxu0 %v150
    %1852 = vmatpush1.msra.mxu0 %v149
    %1853 = vmatprep.subr.mxu0 %v148
    %1854 = vmatpush1.msra.mxu0 %v147
    %1855 = vmatprep.subr.mxu0 %v146
    %1856 = vmatpush1.msra.mxu0 %v145
    %1857 = vmatprep.subr.mxu0 0.0
    %1858 = vmatpush2.msra.mxu0 0.0
    %1859 = vmatprep.subr.mxu0 0.0
    %1860 = vmatpush2.msra.mxu0 0.0
    %1861 = vmatprep.subr.mxu0 0.0
    %1862 = vmatpush2.msra.mxu0 0.0
    %1863 = vmatprep.subr.mxu0 0.0
    %1864 = vmatpush2.msra.mxu0 0.0
    %1865 = vmatprep.subr.mxu0 0.0
    %1866 = vmatpush2.msra.mxu0 0.0
    %1867 = vmatprep.subr.mxu0 0.0
    %1868 = vmatpush2.msra.mxu0 0.0
    %1869 = vmatprep.subr.mxu0 0.0
    %1870 = vmatpush2.msra.mxu0 0.0
    %1871 = vmatprep.subr.mxu0 0.0
    %1872 = vmatpush2.msra.mxu0 0.0
    %1873 = vmatprep.subr.mxu0 0.0
    %1874 = vmatpush2.msra.mxu0 0.0
    %1875 = vmatprep.subr.mxu0 0.0
    %1876 = vmatpush2.msra.mxu0 0.0
    %1877 = vmatprep.subr.mxu0 0.0
    %1878 = vmatpush2.msra.mxu0 0.0
    %1879 = vmatprep.subr.mxu0 0.0
    %1880 = vmatpush2.msra.mxu0 0.0
    %1881 = vmatprep.subr.mxu0 0.0
    %1882 = vmatpush2.msra.mxu0 0.0
    %1883 = vmatprep.subr.mxu0 0.0
    %1884 = vmatpush2.msra.mxu0 0.0
    %1885 = vmatprep.subr.mxu0 0.0
    %1886 = vmatpush2.msra.mxu0 0.0
    %1887 = vmatprep.subr.mxu0 0.0
    %1888 = vmatpush2.msra.mxu0 0.0
    %1889 = vmatprep.mubr.f32.mxu0 0.0
    %1890 = vmatmul.mubr.f32.gmra.mxu0 %v1726
    %v1891 = vpop.f32.mrf.mxu0
    %v1892 = vadd.f32 0.0, %v1891
    %v1893 = vpop.f32.mrf.mxu0
    %v1894 = vadd.f32 0.0, %v1893
    %1895 = vdwg.mxu0
    %v1896 = vadd.f32 %v1823, %v1892
    %v1897 = vadd.f32 %v1824, %v1894
    %v1898 = vxor.u32 %v1896, 2147483648
    %v1899 = vmul.f32 %v1898, 1.442695
    %v1900 = vpow.pop %v1899
    %v1901 = vadd.f32 %v1900, 1.0
    %v1902 = vrcp.pop %v1901
    %v1903 = vmul.f32 1.0, %v1902
    %v1904 = vtanh.pop %v1897
    %v1905 = vxor.u32 %v1897, 2147483648
    %v1906 = vmul.f32 %v1905, 1.442695
    %v1907 = vpow.pop %v1906
    %v1908 = vadd.f32 %v1907, 1.0
    %v1909 = vrcp.pop %v1908
    %v1910 = vmul.f32 1.0, %v1909
    %v1911 = vmul.f32 %v1903, %v1644
    %v1912 = vmul.f32 %v1903, %v1904
    %1914 = vrot.lane.b32.xlu0 %v1912, 64
    %v1915 = vpop.permute.xlu0 %1914
    %v1917 = vadd.f32 %v1911, %v1915
    %v1918 = vtanh.pop %v1917
    %v1919 = vmul.f32 %v1910, %v1918
    %1921 = vrot.lane.b32.xlu0 %v1822, 64
    %v1922 = vpop.permute.xlu0 %1921
    %v1923 = vsel %vm161, %v1922, 0
    %1925 = vmatprep.subr.mxu0 0.0
    %1926 = vmatpush1.msra.mxu0 0.0
    %1927 = vmatprep.subr.mxu0 0.0
    %1928 = vmatpush1.msra.mxu0 0.0
    %1929 = vmatprep.subr.mxu0 0.0
    %1930 = vmatpush1.msra.mxu0 0.0
    %1931 = vmatprep.subr.mxu0 0.0
    %1932 = vmatpush1.msra.mxu0 0.0
    %1933 = vmatprep.subr.mxu0 0.0
    %1934 = vmatpush1.msra.mxu0 0.0
    %1935 = vmatprep.subr.mxu0 0.0
    %1936 = vmatpush1.msra.mxu0 0.0
    %1937 = vmatprep.subr.mxu0 0.0
    %1938 = vmatpush1.msra.mxu0 0.0
    %1939 = vmatprep.subr.mxu0 0.0
    %1940 = vmatpush1.msra.mxu0 0.0
    %1941 = vmatprep.subr.mxu0 %v144
    %1942 = vmatpush1.msra.mxu0 %v143
    %1943 = vmatprep.subr.mxu0 %v142
    %1944 = vmatpush1.msra.mxu0 %v141
    %1945 = vmatprep.subr.mxu0 %v140
    %1946 = vmatpush1.msra.mxu0 %v139
    %1947 = vmatprep.subr.mxu0 %v138
    %1948 = vmatpush1.msra.mxu0 %v137
    %1949 = vmatprep.subr.mxu0 %v136
    %1950 = vmatpush1.msra.mxu0 %v135
    %1951 = vmatprep.subr.mxu0 %v134
    %1952 = vmatpush1.msra.mxu0 %v133
    %1953 = vmatprep.subr.mxu0 %v132
    %1954 = vmatpush1.msra.mxu0 %v131
    %1955 = vmatprep.subr.mxu0 %v130
    %1956 = vmatpush1.msra.mxu0 %v129
    %1957 = vmatprep.subr.mxu0 0.0
    %1958 = vmatpush2.msra.mxu0 0.0
    %1959 = vmatprep.subr.mxu0 0.0
    %1960 = vmatpush2.msra.mxu0 0.0
    %1961 = vmatprep.subr.mxu0 0.0
    %1962 = vmatpush2.msra.mxu0 0.0
    %1963 = vmatprep.subr.mxu0 0.0
    %1964 = vmatpush2.msra.mxu0 0.0
    %1965 = vmatprep.subr.mxu0 0.0
    %1966 = vmatpush2.msra.mxu0 0.0
    %1967 = vmatprep.subr.mxu0 0.0
    %1968 = vmatpush2.msra.mxu0 0.0
    %1969 = vmatprep.subr.mxu0 0.0
    %1970 = vmatpush2.msra.mxu0 0.0
    %1971 = vmatprep.subr.mxu0 0.0
    %1972 = vmatpush2.msra.mxu0 0.0
    %1973 = vmatprep.subr.mxu0 0.0
    %1974 = vmatpush2.msra.mxu0 0.0
    %1975 = vmatprep.subr.mxu0 0.0
    %1976 = vmatpush2.msra.mxu0 0.0
    %1977 = vmatprep.subr.mxu0 0.0
    %1978 = vmatpush2.msra.mxu0 0.0
    %1979 = vmatprep.subr.mxu0 0.0
    %1980 = vmatpush2.msra.mxu0 0.0
    %1981 = vmatprep.subr.mxu0 0.0
    %1982 = vmatpush2.msra.mxu0 0.0
    %1983 = vmatprep.subr.mxu0 0.0
    %1984 = vmatpush2.msra.mxu0 0.0
    %1985 = vmatprep.subr.mxu0 0.0
    %1986 = vmatpush2.msra.mxu0 0.0
    %1987 = vmatprep.subr.mxu0 0.0
    %1988 = vmatpush2.msra.mxu0 0.0
    %1989 = vmatprep.mubr.f32.mxu0 0.0
    %1990 = vmatmul.mubr.f32.gmra.mxu0 %v1923
    %v1991 = vpop.f32.mrf.mxu0
    %v1992 = vadd.f32 %v116, %v1991
    %v1993 = vpop.f32.mrf.mxu0
    %v1994 = vadd.f32 %v120, %v1993
    %1995 = vdwg.mxu0
    %1997 = vrot.lane.b32.xlu0 %v1919, 64
    %v1998 = vpop.permute.xlu0 %1997
    %v1999 = vsel %vm161, %v1998, 0
    %2001 = vmatprep.subr.mxu0 0.0
    %2002 = vmatpush1.msra.mxu0 0.0
    %2003 = vmatprep.subr.mxu0 0.0
    %2004 = vmatpush1.msra.mxu0 0.0
    %2005 = vmatprep.subr.mxu0 0.0
    %2006 = vmatpush1.msra.mxu0 0.0
    %2007 = vmatprep.subr.mxu0 0.0
    %2008 = vmatpush1.msra.mxu0 0.0
    %2009 = vmatprep.subr.mxu0 0.0
    %2010 = vmatpush1.msra.mxu0 0.0
    %2011 = vmatprep.subr.mxu0 0.0
    %2012 = vmatpush1.msra.mxu0 0.0
    %2013 = vmatprep.subr.mxu0 0.0
    %2014 = vmatpush1.msra.mxu0 0.0
    %2015 = vmatprep.subr.mxu0 0.0
    %2016 = vmatpush1.msra.mxu0 0.0
    %2017 = vmatprep.subr.mxu0 %v353
    %2018 = vmatpush1.msra.mxu0 %v352
    %2019 = vmatprep.subr.mxu0 %v351
    %2020 = vmatpush1.msra.mxu0 %v350
    %2021 = vmatprep.subr.mxu0 %v349
    %2022 = vmatpush1.msra.mxu0 %v348
    %2023 = vmatprep.subr.mxu0 %v347
    %2024 = vmatpush1.msra.mxu0 %v346
    %2025 = vmatprep.subr.mxu0 %v345
    %2026 = vmatpush1.msra.mxu0 %v344
    %2027 = vmatprep.subr.mxu0 %v343
    %2028 = vmatpush1.msra.mxu0 %v342
    %2029 = vmatprep.subr.mxu0 %v341
    %2030 = vmatpush1.msra.mxu0 %v340
    %2031 = vmatprep.subr.mxu0 %v339
    %2032 = vmatpush1.msra.mxu0 %v338
    %2033 = vmatprep.subr.mxu0 0.0
    %2034 = vmatpush2.msra.mxu0 0.0
    %2035 = vmatprep.subr.mxu0 0.0
    %2036 = vmatpush2.msra.mxu0 0.0
    %2037 = vmatprep.subr.mxu0 0.0
    %2038 = vmatpush2.msra.mxu0 0.0
    %2039 = vmatprep.subr.mxu0 0.0
    %2040 = vmatpush2.msra.mxu0 0.0
    %2041 = vmatprep.subr.mxu0 0.0
    %2042 = vmatpush2.msra.mxu0 0.0
    %2043 = vmatprep.subr.mxu0 0.0
    %2044 = vmatpush2.msra.mxu0 0.0
    %2045 = vmatprep.subr.mxu0 0.0
    %2046 = vmatpush2.msra.mxu0 0.0
    %2047 = vmatprep.subr.mxu0 0.0
    %2048 = vmatpush2.msra.mxu0 0.0
    %2049 = vmatprep.subr.mxu0 0.0
    %2050 = vmatpush2.msra.mxu0 0.0
    %2051 = vmatprep.subr.mxu0 0.0
    %2052 = vmatpush2.msra.mxu0 0.0
    %2053 = vmatprep.subr.mxu0 0.0
    %2054 = vmatpush2.msra.mxu0 0.0
    %2055 = vmatprep.subr.mxu0 0.0
    %2056 = vmatpush2.msra.mxu0 0.0
    %2057 = vmatprep.subr.mxu0 0.0
    %2058 = vmatpush2.msra.mxu0 0.0
    %2059 = vmatprep.subr.mxu0 0.0
    %2060 = vmatpush2.msra.mxu0 0.0
    %2061 = vmatprep.subr.mxu0 0.0
    %2062 = vmatpush2.msra.mxu0 0.0
    %2063 = vmatprep.subr.mxu0 0.0
    %2064 = vmatpush2.msra.mxu0 0.0
    %2065 = vmatprep.mubr.f32.mxu0 0.0
    %2066 = vmatmul.mubr.f32.gmra.mxu0 %v1999
    %v2067 = vpop.f32.mrf.mxu0
    %v2068 = vadd.f32 0.0, %v2067
    %v2069 = vpop.f32.mrf.mxu0
    %v2070 = vadd.f32 0.0, %v2069
    %2071 = vdwg.mxu0
    %v2072 = vadd.f32 %v1992, %v2068
    %v2073 = vadd.f32 %v1994, %v2070
    %v2074 = vxor.u32 %v2072, 2147483648
    %v2075 = vmul.f32 %v2074, 1.442695
    %v2076 = vpow.pop %v2075
    %v2077 = vadd.f32 %v2076, 1.0
    %v2078 = vrcp.pop %v2077
    %v2079 = vmul.f32 1.0, %v2078
    %v2080 = vtanh.pop %v2073
    %v2081 = vxor.u32 %v2073, 2147483648
    %v2082 = vmul.f32 %v2081, 1.442695
    %v2083 = vpow.pop %v2082
    %v2084 = vadd.f32 %v2083, 1.0
    %v2085 = vrcp.pop %v2084
    %v2086 = vmul.f32 1.0, %v2085
    %v2087 = vmul.f32 %v2079, %v1820
    %v2088 = vmul.f32 %v2079, %v2080
    %2090 = vrot.lane.b32.xlu0 %v2088, 64
    %v2091 = vpop.permute.xlu0 %2090
    %v2093 = vadd.f32 %v2087, %v2091
    %v2094 = vtanh.pop %v2093
    %v2095 = vmul.f32 %v2086, %v2094
    %v2096 = vld [vmem:[#allocation7 + $0x70] sm:$0xff]
    %v2097 = vld [vmem:[#allocation7 + $0x78] sm:$0xff]
    %2098 = vmatprep.subr.mxu0 0.0
    %2099 = vmatpush1.msra.mxu0 0.0
    %2100 = vmatprep.subr.mxu0 0.0
    %2101 = vmatpush1.msra.mxu0 0.0
    %2102 = vmatprep.subr.mxu0 0.0
    %2103 = vmatpush1.msra.mxu0 0.0
    %2104 = vmatprep.subr.mxu0 0.0
    %2105 = vmatpush1.msra.mxu0 0.0
    %2106 = vmatprep.subr.mxu0 0.0
    %2107 = vmatpush1.msra.mxu0 0.0
    %2108 = vmatprep.subr.mxu0 0.0
    %2109 = vmatpush1.msra.mxu0 0.0
    %2110 = vmatprep.subr.mxu0 0.0
    %2111 = vmatpush1.msra.mxu0 0.0
    %2112 = vmatprep.subr.mxu0 0.0
    %2113 = vmatpush1.msra.mxu0 0.0
    %2114 = vmatprep.subr.mxu0 %v160
    %2115 = vmatpush1.msra.mxu0 %v159
    %2116 = vmatprep.subr.mxu0 %v158
    %2117 = vmatpush1.msra.mxu0 %v157
    %2118 = vmatprep.subr.mxu0 %v156
    %2119 = vmatpush1.msra.mxu0 %v155
    %2120 = vmatprep.subr.mxu0 %v154
    %2121 = vmatpush1.msra.mxu0 %v153
    %2122 = vmatprep.subr.mxu0 %v152
    %2123 = vmatpush1.msra.mxu0 %v151
    %2124 = vmatprep.subr.mxu0 %v150
    %2125 = vmatpush1.msra.mxu0 %v149
    %2126 = vmatprep.subr.mxu0 %v148
    %2127 = vmatpush1.msra.mxu0 %v147
    %2128 = vmatprep.subr.mxu0 %v146
    %2129 = vmatpush1.msra.mxu0 %v145
    %2130 = vmatprep.subr.mxu0 0.0
    %2131 = vmatpush2.msra.mxu0 0.0
    %2132 = vmatprep.subr.mxu0 0.0
    %2133 = vmatpush2.msra.mxu0 0.0
    %2134 = vmatprep.subr.mxu0 0.0
    %2135 = vmatpush2.msra.mxu0 0.0
    %2136 = vmatprep.subr.mxu0 0.0
    %2137 = vmatpush2.msra.mxu0 0.0
    %2138 = vmatprep.subr.mxu0 0.0
    %2139 = vmatpush2.msra.mxu0 0.0
    %2140 = vmatprep.subr.mxu0 0.0
    %2141 = vmatpush2.msra.mxu0 0.0
    %2142 = vmatprep.subr.mxu0 0.0
    %2143 = vmatpush2.msra.mxu0 0.0
    %2144 = vmatprep.subr.mxu0 0.0
    %2145 = vmatpush2.msra.mxu0 0.0
    %2146 = vmatprep.subr.mxu0 0.0
    %2147 = vmatpush2.msra.mxu0 0.0
    %2148 = vmatprep.subr.mxu0 0.0
    %2149 = vmatpush2.msra.mxu0 0.0
    %2150 = vmatprep.subr.mxu0 0.0
    %2151 = vmatpush2.msra.mxu0 0.0
    %2152 = vmatprep.subr.mxu0 0.0
    %2153 = vmatpush2.msra.mxu0 0.0
    %2154 = vmatprep.subr.mxu0 0.0
    %2155 = vmatpush2.msra.mxu0 0.0
    %2156 = vmatprep.subr.mxu0 0.0
    %2157 = vmatpush2.msra.mxu0 0.0
    %2158 = vmatprep.subr.mxu0 0.0
    %2159 = vmatpush2.msra.mxu0 0.0
    %2160 = vmatprep.subr.mxu0 0.0
    %2161 = vmatpush2.msra.mxu0 0.0
    %2162 = vmatprep.mubr.f32.mxu0 0.0
    %2163 = vmatmul.mubr.f32.gmra.mxu0 %v1999
    %v2164 = vpop.f32.mrf.mxu0
    %v2165 = vadd.f32 0.0, %v2164
    %v2166 = vpop.f32.mrf.mxu0
    %v2167 = vadd.f32 0.0, %v2166
    %2168 = vdwg.mxu0
    %v2169 = vadd.f32 %v2096, %v2165
    %v2170 = vadd.f32 %v2097, %v2167
    %v2171 = vxor.u32 %v2169, 2147483648
    %v2172 = vmul.f32 %v2171, 1.442695
    %v2173 = vpow.pop %v2172
    %v2174 = vadd.f32 %v2173, 1.0
    %v2175 = vrcp.pop %v2174
    %v2176 = vmul.f32 1.0, %v2175
    %v2177 = vtanh.pop %v2170
    %v2178 = vxor.u32 %v2170, 2147483648
    %v2179 = vmul.f32 %v2178, 1.442695
    %v2180 = vpow.pop %v2179
    %v2181 = vadd.f32 %v2180, 1.0
    %v2182 = vrcp.pop %v2181
    %v2183 = vmul.f32 1.0, %v2182
    %v2184 = vmul.f32 %v2176, %v1917
    %v2185 = vmul.f32 %v2176, %v2177
    %2187 = vrot.lane.b32.xlu0 %v2185, 64
    %v2188 = vpop.permute.xlu0 %2187
    %v2190 = vadd.f32 %v2184, %v2188
    %v2191 = vtanh.pop %v2190
    %v2192 = vmul.f32 %v2183, %v2191
    %2194 = vrot.lane.b32.xlu0 %v2095, 64
    %v2195 = vpop.permute.xlu0 %2194
    %v2196 = vsel %vm161, %v2195, 0
    %2198 = vmatprep.subr.mxu0 0.0
    %2199 = vmatpush1.msra.mxu0 0.0
    %2200 = vmatprep.subr.mxu0 0.0
    %2201 = vmatpush1.msra.mxu0 0.0
    %2202 = vmatprep.subr.mxu0 0.0
    %2203 = vmatpush1.msra.mxu0 0.0
    %2204 = vmatprep.subr.mxu0 0.0
    %2205 = vmatpush1.msra.mxu0 0.0
    %2206 = vmatprep.subr.mxu0 0.0
    %2207 = vmatpush1.msra.mxu0 0.0
    %2208 = vmatprep.subr.mxu0 0.0
    %2209 = vmatpush1.msra.mxu0 0.0
    %2210 = vmatprep.subr.mxu0 0.0
    %2211 = vmatpush1.msra.mxu0 0.0
    %2212 = vmatprep.subr.mxu0 0.0
    %2213 = vmatpush1.msra.mxu0 0.0
    %2214 = vmatprep.subr.mxu0 %v144
    %2215 = vmatpush1.msra.mxu0 %v143
    %2216 = vmatprep.subr.mxu0 %v142
    %2217 = vmatpush1.msra.mxu0 %v141
    %2218 = vmatprep.subr.mxu0 %v140
    %2219 = vmatpush1.msra.mxu0 %v139
    %2220 = vmatprep.subr.mxu0 %v138
    %2221 = vmatpush1.msra.mxu0 %v137
    %2222 = vmatprep.subr.mxu0 %v136
    %2223 = vmatpush1.msra.mxu0 %v135
    %2224 = vmatprep.subr.mxu0 %v134
    %2225 = vmatpush1.msra.mxu0 %v133
    %2226 = vmatprep.subr.mxu0 %v132
    %2227 = vmatpush1.msra.mxu0 %v131
    %2228 = vmatprep.subr.mxu0 %v130
    %2229 = vmatpush1.msra.mxu0 %v129
    %2230 = vmatprep.subr.mxu0 0.0
    %2231 = vmatpush2.msra.mxu0 0.0
    %2232 = vmatprep.subr.mxu0 0.0
    %2233 = vmatpush2.msra.mxu0 0.0
    %2234 = vmatprep.subr.mxu0 0.0
    %2235 = vmatpush2.msra.mxu0 0.0
    %2236 = vmatprep.subr.mxu0 0.0
    %2237 = vmatpush2.msra.mxu0 0.0
    %2238 = vmatprep.subr.mxu0 0.0
    %2239 = vmatpush2.msra.mxu0 0.0
    %2240 = vmatprep.subr.mxu0 0.0
    %2241 = vmatpush2.msra.mxu0 0.0
    %2242 = vmatprep.subr.mxu0 0.0
    %2243 = vmatpush2.msra.mxu0 0.0
    %2244 = vmatprep.subr.mxu0 0.0
    %2245 = vmatpush2.msra.mxu0 0.0
    %2246 = vmatprep.subr.mxu0 0.0
    %2247 = vmatpush2.msra.mxu0 0.0
    %2248 = vmatprep.subr.mxu0 0.0
    %2249 = vmatpush2.msra.mxu0 0.0
    %2250 = vmatprep.subr.mxu0 0.0
    %2251 = vmatpush2.msra.mxu0 0.0
    %2252 = vmatprep.subr.mxu0 0.0
    %2253 = vmatpush2.msra.mxu0 0.0
    %2254 = vmatprep.subr.mxu0 0.0
    %2255 = vmatpush2.msra.mxu0 0.0
    %2256 = vmatprep.subr.mxu0 0.0
    %2257 = vmatpush2.msra.mxu0 0.0
    %2258 = vmatprep.subr.mxu0 0.0
    %2259 = vmatpush2.msra.mxu0 0.0
    %2260 = vmatprep.subr.mxu0 0.0
    %2261 = vmatpush2.msra.mxu0 0.0
    %2262 = vmatprep.mubr.f32.mxu0 0.0
    %2263 = vmatmul.mubr.f32.gmra.mxu0 %v2196
    %v2264 = vpop.f32.mrf.mxu0
    %v2265 = vadd.f32 %v116, %v2264
    %v2266 = vpop.f32.mrf.mxu0
    %v2267 = vadd.f32 %v120, %v2266
    %2268 = vdwg.mxu0
    %2270 = vrot.lane.b32.xlu0 %v2192, 64
    %v2271 = vpop.permute.xlu0 %2270
    %v2272 = vsel %vm161, %v2271, 0
    %2274 = vmatprep.subr.mxu0 0.0
    %2275 = vmatpush1.msra.mxu0 0.0
    %2276 = vmatprep.subr.mxu0 0.0
    %2277 = vmatpush1.msra.mxu0 0.0
    %2278 = vmatprep.subr.mxu0 0.0
    %2279 = vmatpush1.msra.mxu0 0.0
    %2280 = vmatprep.subr.mxu0 0.0
    %2281 = vmatpush1.msra.mxu0 0.0
    %2282 = vmatprep.subr.mxu0 0.0
    %2283 = vmatpush1.msra.mxu0 0.0
    %2284 = vmatprep.subr.mxu0 0.0
    %2285 = vmatpush1.msra.mxu0 0.0
    %2286 = vmatprep.subr.mxu0 0.0
    %2287 = vmatpush1.msra.mxu0 0.0
    %2288 = vmatprep.subr.mxu0 0.0
    %2289 = vmatpush1.msra.mxu0 0.0
    %2290 = vmatprep.subr.mxu0 %v353
    %2291 = vmatpush1.msra.mxu0 %v352
    %2292 = vmatprep.subr.mxu0 %v351
    %2293 = vmatpush1.msra.mxu0 %v350
    %2294 = vmatprep.subr.mxu0 %v349
    %2295 = vmatpush1.msra.mxu0 %v348
    %2296 = vmatprep.subr.mxu0 %v347
    %2297 = vmatpush1.msra.mxu0 %v346
    %2298 = vmatprep.subr.mxu0 %v345
    %2299 = vmatpush1.msra.mxu0 %v344
    %2300 = vmatprep.subr.mxu0 %v343
    %2301 = vmatpush1.msra.mxu0 %v342
    %2302 = vmatprep.subr.mxu0 %v341
    %2303 = vmatpush1.msra.mxu0 %v340
    %2304 = vmatprep.subr.mxu0 %v339
    %2305 = vmatpush1.msra.mxu0 %v338
    %2306 = vmatprep.subr.mxu0 0.0
    %2307 = vmatpush2.msra.mxu0 0.0
    %2308 = vmatprep.subr.mxu0 0.0
    %2309 = vmatpush2.msra.mxu0 0.0
    %2310 = vmatprep.subr.mxu0 0.0
    %2311 = vmatpush2.msra.mxu0 0.0
    %2312 = vmatprep.subr.mxu0 0.0
    %2313 = vmatpush2.msra.mxu0 0.0
    %2314 = vmatprep.subr.mxu0 0.0
    %2315 = vmatpush2.msra.mxu0 0.0
    %2316 = vmatprep.subr.mxu0 0.0
    %2317 = vmatpush2.msra.mxu0 0.0
    %2318 = vmatprep.subr.mxu0 0.0
    %2319 = vmatpush2.msra.mxu0 0.0
    %2320 = vmatprep.subr.mxu0 0.0
    %2321 = vmatpush2.msra.mxu0 0.0
    %2322 = vmatprep.subr.mxu0 0.0
    %2323 = vmatpush2.msra.mxu0 0.0
    %2324 = vmatprep.subr.mxu0 0.0
    %2325 = vmatpush2.msra.mxu0 0.0
    %2326 = vmatprep.subr.mxu0 0.0
    %2327 = vmatpush2.msra.mxu0 0.0
    %2328 = vmatprep.subr.mxu0 0.0
    %2329 = vmatpush2.msra.mxu0 0.0
    %2330 = vmatprep.subr.mxu0 0.0
    %2331 = vmatpush2.msra.mxu0 0.0
    %2332 = vmatprep.subr.mxu0 0.0
    %2333 = vmatpush2.msra.mxu0 0.0
    %2334 = vmatprep.subr.mxu0 0.0
    %2335 = vmatpush2.msra.mxu0 0.0
    %2336 = vmatprep.subr.mxu0 0.0
    %2337 = vmatpush2.msra.mxu0 0.0
    %2338 = vmatprep.mubr.f32.mxu0 0.0
    %2339 = vmatmul.mubr.f32.gmra.mxu0 %v2272
    %v2340 = vpop.f32.mrf.mxu0
    %v2341 = vadd.f32 0.0, %v2340
    %v2342 = vpop.f32.mrf.mxu0
    %v2343 = vadd.f32 0.0, %v2342
    %2344 = vdwg.mxu0
    %v2345 = vadd.f32 %v2265, %v2341
    %v2346 = vadd.f32 %v2267, %v2343
    %v2347 = vxor.u32 %v2345, 2147483648
    %v2348 = vmul.f32 %v2347, 1.442695
    %v2349 = vpow.pop %v2348
    %v2350 = vadd.f32 %v2349, 1.0
    %v2351 = vrcp.pop %v2350
    %v2352 = vmul.f32 1.0, %v2351
    %v2353 = vtanh.pop %v2346
    %v2354 = vxor.u32 %v2346, 2147483648
    %v2355 = vmul.f32 %v2354, 1.442695
    %v2356 = vpow.pop %v2355
    %v2357 = vadd.f32 %v2356, 1.0
    %v2358 = vrcp.pop %v2357
    %v2359 = vmul.f32 1.0, %v2358
    %v2360 = vmul.f32 %v2352, %v2093
    %v2361 = vmul.f32 %v2352, %v2353
    %2363 = vrot.lane.b32.xlu0 %v2361, 64
    %v2364 = vpop.permute.xlu0 %2363
    %v2366 = vadd.f32 %v2360, %v2364
    %v2367 = vtanh.pop %v2366
    %v2368 = vmul.f32 %v2359, %v2367
    %2370 = vst.msk [vmem:[#allocation2] sm:$0xff] %vm161, %v2271
    %2372 = vrot.lane.b32.xlu0 %v2190, 64
    %v2373 = vpop.permute.xlu0 %2372
    %2375 = vst.msk [vmem:[#allocation3] sm:$0xff] %vm161, %v2373
    %2377 = vrot.lane.b32.xlu0 %v2368, 64
    %v2378 = vpop.permute.xlu0 %2377
    %2380 = vst.msk [vmem:[#allocation4] sm:$0xff] %vm161, %v2378
    %2382 = vrot.lane.b32.xlu0 %v2366, 64
    %v2383 = vpop.permute.xlu0 %2382
    %2385 = vst.msk [vmem:[#allocation5] sm:$0xff] %vm161, %v2383
    // Predicated region
    $region62: #{tpu_custom_call.1} parent=1 // pred_check
      %p2386 = pneg %p102
    $region63: #{tpu_custom_call.1} parent=1 // pred_check_branch
      %2388 = sbr.rel (%p2386) target = $region65
    $region64: #{tpu_custom_call.1} parent=1 // pred_region
      %v2389 = vld [vmem:[#allocation14] sm:$0xff]
      %v2390 = vld [vmem:[#allocation14 + $0x8] sm:$0xff]
      %v2391 = vld [vmem:[#allocation14 + $0x10] sm:$0xff]
      %v2392 = vld [vmem:[#allocation14 + $0x18] sm:$0xff]
      %v2393 = vld [vmem:[#allocation14 + $0x20] sm:$0xff]
      %v2394 = vld [vmem:[#allocation14 + $0x28] sm:$0xff]
      %v2395 = vld [vmem:[#allocation14 + $0x30] sm:$0xff]
      %v2396 = vld [vmem:[#allocation14 + $0x38] sm:$0xff]
      %v2397 = vld [vmem:[%s6] sm:$0x1]
      %v2399 = vlaneseq
      %v2400 = vshrl.u32 %v2399, 7
      %v2401 = vsub.s32 0, %v2400
      %v2402 = vrot.slane %v2397, %v2401
      %v2404 = vsel %vm161, %v2378, 0
      %2406 = vmatprep.subr.mxu0 0.0
      %2407 = vmatpush1.msra.mxu0 0.0
      %2408 = vmatprep.subr.mxu0 0.0
      %2409 = vmatpush1.msra.mxu0 0.0
      %2410 = vmatprep.subr.mxu0 0.0
      %2411 = vmatpush1.msra.mxu0 0.0
      %2412 = vmatprep.subr.mxu0 0.0
      %2413 = vmatpush1.msra.mxu0 0.0
      %2414 = vmatprep.subr.mxu0 0.0
      %2415 = vmatpush1.msra.mxu0 0.0
      %2416 = vmatprep.subr.mxu0 0.0
      %2417 = vmatpush1.msra.mxu0 0.0
      %2418 = vmatprep.subr.mxu0 0.0
      %2419 = vmatpush1.msra.mxu0 0.0
      %2420 = vmatprep.subr.mxu0 0.0
      %2421 = vmatpush1.msra.mxu0 0.0
      %2422 = vmatprep.subr.mxu0 0.0
      %2423 = vmatpush1.msra.mxu0 %v2396
      %2424 = vmatprep.subr.mxu0 0.0
      %2425 = vmatpush1.msra.mxu0 %v2395
      %2426 = vmatprep.subr.mxu0 0.0
      %2427 = vmatpush1.msra.mxu0 %v2394
      %2428 = vmatprep.subr.mxu0 0.0
      %2429 = vmatpush1.msra.mxu0 %v2393
      %2430 = vmatprep.subr.mxu0 0.0
      %2431 = vmatpush1.msra.mxu0 %v2392
      %2432 = vmatprep.subr.mxu0 0.0
      %2433 = vmatpush1.msra.mxu0 %v2391
      %2434 = vmatprep.subr.mxu0 0.0
      %2435 = vmatpush1.msra.mxu0 %v2390
      %2436 = vmatprep.subr.mxu0 0.0
      %2437 = vmatpush1.msra.mxu0 %v2389
      %2438 = vmatprep.subr.mxu0 0.0
      %2439 = vmatpush2.msra.mxu0 0.0
      %2440 = vmatprep.subr.mxu0 0.0
      %2441 = vmatpush2.msra.mxu0 0.0
      %2442 = vmatprep.subr.mxu0 0.0
      %2443 = vmatpush2.msra.mxu0 0.0
      %2444 = vmatprep.subr.mxu0 0.0
      %2445 = vmatpush2.msra.mxu0 0.0
      %2446 = vmatprep.subr.mxu0 0.0
      %2447 = vmatpush2.msra.mxu0 0.0
      %2448 = vmatprep.subr.mxu0 0.0
      %2449 = vmatpush2.msra.mxu0 0.0
      %2450 = vmatprep.subr.mxu0 0.0
      %2451 = vmatpush2.msra.mxu0 0.0
      %2452 = vmatprep.subr.mxu0 0.0
      %2453 = vmatpush2.msra.mxu0 0.0
      %2454 = vmatprep.subr.mxu0 0.0
      %2455 = vmatpush2.msra.mxu0 0.0
      %2456 = vmatprep.subr.mxu0 0.0
      %2457 = vmatpush2.msra.mxu0 0.0
      %2458 = vmatprep.subr.mxu0 0.0
      %2459 = vmatpush2.msra.mxu0 0.0
      %2460 = vmatprep.subr.mxu0 0.0
      %2461 = vmatpush2.msra.mxu0 0.0
      %2462 = vmatprep.subr.mxu0 0.0
      %2463 = vmatpush2.msra.mxu0 0.0
      %2464 = vmatprep.subr.mxu0 0.0
      %2465 = vmatpush2.msra.mxu0 0.0
      %2466 = vmatprep.subr.mxu0 0.0
      %2467 = vmatpush2.msra.mxu0 0.0
      %2468 = vmatprep.subr.mxu0 0.0
      %2469 = vmatpush2.msra.mxu0 0.0
      %2470 = vmatprep.mubr.f32.mxu0 0.0
      %2471 = vmatmul.mubr.f32.gmra.mxu0 %v2404
      %v2472 = vpop.f32.mrf.mxu0
      %v2473 = vadd.f32 %v2402, %v2472
      %v2474 = vpop.f32.mrf.mxu0
      %2475 = vdwg.mxu0
      %v2476 = vmax.f32 %v2473, 0.0
      %v2477 = vld [vmem:[%s7] sm:$0x1]
      %v2479 = vlaneseq
      %v2480 = vshrl.u32 %v2479, 7
      %v2481 = vsub.s32 0, %v2480
      %v2482 = vrot.slane %v2477, %v2481
      %v2484 = vmul.f32 %v2476, %v2482
      %v2485 = vsel %vm161, %v2484, 0.0
      %2486 = vadd.xlane.f32.xlu0 %v2485
      %v2487 = vpop.xlane.xlu0 %2486
      %v2488 = vld [vmem:[#allocation6] sm:$0x1]
      %v2490 = vlaneseq
      %v2491 = vshrl.u32 %v2490, 7
      %v2492 = vsub.s32 0, %v2491
      %v2493 = vrot.slane %v2488, %v2492
      %v2495 = vadd.f32 %v2487, %v2493
      %vm2496 = vcmask 7168
      %2497 = vst.msk [vmem:[%s9] sm:$0xff] %vm2496, %v2495
    $region65: #{tpu_custom_call.1} parent=1 // pred_fallthru
      _
    // Predicated region
    $region66: #{tpu_custom_call.1} parent=1 // pred_check
      _
    $region67: #{tpu_custom_call.1} parent=1 // pred_check_branch
      %2499 = sbr.rel (0) target = $region69
    $region68: #{tpu_custom_call.1} parent=1 // pred_region
      _
    $region69: #{tpu_custom_call.1} parent=1 // pred_fallthru
      _
    // Predicated region
    $region70: #{tpu_custom_call.1} parent=1 // pred_check
      _
    $region71: #{tpu_custom_call.1} parent=1 // pred_check_branch
      %2501 = sbr.rel (0) target = $region73
    $region72: #{tpu_custom_call.1} parent=1 // pred_region
      _
    $region73: #{tpu_custom_call.1} parent=1 // pred_fallthru
      _
    %2502 = vsyncpa [#allocation8], 1
    %2503 = vsyncpa [#allocation10], 1
    %2504 = vsyncpa [#allocation13], 1

</llo_original>
